<compile_context>
chip_gen: v5e
topology: v5e:2x2
jax: 0.10.0
libtpu: 0.0.40
codegen_flags: <defaults>
</compile_context>

<pallas_src>
import functools
import numpy as np
import jax
import jax.numpy as jnp
from jax.experimental import pallas as pl
from jax.experimental.pallas import tpu as pltpu


def _ru(x, m):
    return (x + m - 1) // m * m


_TK_MAX = 4096  # max K-tile; keeps the streamed weight block ~<=4 MB even at tn=512


def _k_tiling(K):
    """Return (Kp, tk, nk) with Kp = nk * tk, tk <= _TK_MAX, tk % 128 == 0 (idempotent)."""
    kp0 = _ru(K, 128)
    nk = -(-kp0 // _TK_MAX)
    tk = _ru(-(-kp0 // nk), 128)
    return nk * tk, tk, nk


def _pick_tn(Np):
    """Lane tile: prefer >=2 N tiles (v7x 2-TC sharding) with tn in {512,256,128}."""
    for tn in (512, 256, 128):
        if Np >= 2 * tn and Np % tn == 0:
            return tn
    return 128


# ----------------------------------------------------------------------------
# Pallas kernels
# ----------------------------------------------------------------------------

@functools.lru_cache(maxsize=None)
def _mm_call(Mp, Kp, Np, tm, tn, tk, act, has_res, out_dtype_name):
    """Fused bf16 matmul: act((A @ B) + bias [+ residual]); f32 VMEM accumulator."""
    out_dtype = jnp.dtype(out_dtype_name)

    def kernel(*refs):
        if has_res:
            a_ref, b_ref, bias_ref, res_ref, o_ref, acc_ref = refs
        else:
            a_ref, b_ref, bias_ref, o_ref, acc_ref = refs
        k = pl.program_id(2)

        @pl.when(k == 0)
        def _():
            acc_ref[...] = jnp.zeros_like(acc_ref)

        acc_ref[...] += jnp.dot(a_ref[...], b_ref[...],
                                preferred_element_type=jnp.float32)

        @pl.when(k == pl.num_programs(2) - 1)
        def _():
            y = acc_ref[...] + bias_ref[...]
            if has_res:
                y = y + refs[3][...].astype(jnp.float32)
            if act == "relu":
                y = jnp.maximum(y, 0.0)
            o_ref[...] = y.astype(out_dtype)

    in_specs = [
        pl.BlockSpec((tm, tk), lambda i, j, k: (i, k)),
        pl.BlockSpec((tk, tn), lambda i, j, k: (k, j)),
        pl.BlockSpec((1, tn), lambda i, j, k: (0, j)),
    ]
    if has_res:
        in_specs.append(pl.BlockSpec((tm, tn), lambda i, j, k: (i, j)))

    return pl.pallas_call(
        kernel,
        out_shape=jax.ShapeDtypeStruct((Mp, Np), out_dtype),
        grid_spec=pltpu.PrefetchScalarGridSpec(
            num_scalar_prefetch=0,
            grid=(Mp // tm, Np // tn, Kp // tk),
            in_specs=in_specs,
            out_specs=pl.BlockSpec((tm, tn), lambda i, j, k: (i, j)),
            scratch_shapes=[pltpu.VMEM((tm, tn), jnp.float32)],
        ),
        compiler_params=pltpu.CompilerParams(
            dimension_semantics=("parallel", "parallel", "arbitrary")),
    )


def matmul_fused(a, b, bias=None, res=None, act="none", out_dtype=jnp.bfloat16):
    """act(a @ b + bias [+ res]).  b may be pre-padded bf16 [Kp, Np] (no copy then)."""
    M, Ka = a.shape
    Kb, Nb = b.shape
    Kp, tk, _ = _k_tiling(Kb)
    Np = _ru(Nb, 128)
    tn = _pick_tn(Np)
    Mp = _ru(M, 8)
    tm = Mp
    assert Ka <= Kp

    a = a.astype(jnp.bfloat16)
    if (Mp != M) or (Kp != Ka):
        a = jnp.pad(a, ((0, Mp - M), (0, Kp - Ka)))
    if b.dtype != jnp.bfloat16:
        b = b.astype(jnp.bfloat16)
    if (Kp != Kb) or (Np != Nb):
        b = jnp.pad(b, ((0, Kp - Kb), (0, Np - Nb)))
    if bias is None:
        bias_p = jnp.zeros((1, Np), jnp.float32)
    else:
        bias_p = bias.astype(jnp.float32).reshape(1, -1)
        if bias_p.shape[1] != Np:
            bias_p = jnp.pad(bias_p, ((0, 0), (0, Np - bias_p.shape[1])))

    args = [a, b, bias_p]
    has_res = res is not None
    if has_res:
        r = res.astype(jnp.bfloat16)
        if r.shape != (Mp, Np):
            r = jnp.pad(r, ((0, Mp - r.shape[0]), (0, Np - r.shape[1])))
        args.append(r)

    out = _mm_call(Mp, Kp, Np, tm, tn, tk, act, has_res,
                   jnp.dtype(out_dtype).name)(*args)
    if (Mp != M) or (Np != Nb):
        out = out[:M, :Nb]
    return out


@functools.lru_cache(maxsize=None)
def _max_reduce_fn(KK, R, C, rb, dtype_name):
    """Elementwise max over the leading axis of a [KK, R, C] stack, tiled over rows."""
    dtype = jnp.dtype(dtype_name)

    def kernel(x_ref, o_ref):
        acc = x_ref[0]
        for i in range(1, KK):
            acc = jnp.maximum(acc, x_ref[i])
        o_ref[...] = acc

    return pl.pallas_call(
        kernel,
        out_shape=jax.ShapeDtypeStruct((R, C), dtype),
        grid=(R // rb,),
        in_specs=[pl.BlockSpec((KK, rb, C), lambda i: (0, i, 0))],
        out_specs=pl.BlockSpec((rb, C), lambda i: (i, 0)),
    )


@functools.lru_cache(maxsize=None)
def _sigmoid_fn(R, rb, C):
    def kernel(x_ref, o_ref):
        x = x_ref[...].astype(jnp.float32)
        z = jnp.exp(-jnp.abs(x))            # numerically stable logistic
        o_ref[...] = jnp.where(x >= 0, 1.0 / (1.0 + z), z / (1.0 + z))

    return pl.pallas_call(
        kernel,
        out_shape=jax.ShapeDtypeStruct((R, C), jnp.float32),
        grid=(R // rb,),
        in_specs=[pl.BlockSpec((rb, C), lambda i: (i, 0))],
        out_specs=pl.BlockSpec((rb, C), lambda i: (i, 0)),
    )


def sigmoid_pallas(x):
    shape = x.shape
    flat = x.reshape(-1)
    n = flat.shape[0]
    r0 = -(-n // 128)
    rb = r0 if r0 <= 2048 else 1024
    rp = _ru(r0, rb)
    npad = rp * 128
    if npad != n:
        flat = jnp.pad(flat, (0, npad - n))
    out = _sigmoid_fn(rp, rb, 128)(flat.reshape(rp, 128))
    return out.reshape(-1)[:n].reshape(shape)


# ----------------------------------------------------------------------------
# NN building blocks (im2col / pooling / resize glue around the Pallas kernels)
# ----------------------------------------------------------------------------

def conv_bn_act(x, cp, res=None):
    """Conv2d (no bias) + folded BatchNorm (+ optional fused residual) + optional ReLU."""
    N, H, W, Cin = x.shape
    kh, kw = cp['kh'], cp['kw']
    stride, padding, dil = cp['stride'], cp['pad'], cp['dil']
    assert Cin == cp['cin']
    OH = (H + 2 * padding - dil * (kh - 1) - 1) // stride + 1
    OW = (W + 2 * padding - dil * (kw - 1) - 1) // stride + 1

    if kh == 1 and kw == 1 and padding == 0:
        xs = x if stride == 1 else x[:, ::stride, ::stride, :]
        patches = xs.reshape(N * OH * OW, Cin)
    else:
        xp = jnp.pad(x, ((0, 0), (padding, padding), (padding, padding), (0, 0)))
        cols = []
        for i in range(kh):
            for j in range(kw):
                h0, w0 = i * dil, j * dil
                cols.append(xp[:, h0:h0 + (OH - 1) * stride + 1:stride,
                               w0:w0 + (OW - 1) * stride + 1:stride, :])
        patches = jnp.stack(cols, axis=3).reshape(N * OH * OW, kh * kw * Cin)

    res_mat = res.reshape(N * OH * OW, -1) if res is not None else None
    out = matmul_fused(patches, cp['w'], cp['b'], res=res_mat, act=cp['act'])
    if out.shape[1] != cp['cout']:
        out = out[:, :cp['cout']]
    return out.reshape(N, OH, OW, cp['cout'])


def maxpool2d_3x3_s2_p1(x):
    N, H, W, C = x.shape
    k, stride, pad = 3, 2, 1
    OH = (H + 2 * pad - k) // stride + 1
    OW = (W + 2 * pad - k) // stride + 1
    xp = jnp.pad(x, ((0, 0), (pad, pad), (pad, pad), (0, 0)),
                 constant_values=-jnp.inf)
    cols = []
    for kh in range(k):
        for kw in range(k):
            cols.append(xp[:, kh:kh + (OH - 1) * stride + 1:stride,
                           kw:kw + (OW - 1) * stride + 1:stride, :])
    M = N * OH * OW
    stacked = jnp.stack(cols, axis=0).reshape(k * k, M, C)
    # Lane-densify: fold spatial rows into the lane dim so the block is 128 wide.
    f = 1
    if C < 128 and 128 % C == 0 and M % (128 // C) == 0:
        f = 128 // C
    R, CC = M // f, C * f
    stacked = stacked.reshape(k * k, R, CC)
    rb = R if R <= 1024 else 512
    Rp = _ru(R, rb)
    if Rp != R:
        stacked = jnp.pad(stacked, ((0, 0), (0, Rp - R), (0, 0)),
                          constant_values=-jnp.inf)
    out = _max_reduce_fn(k * k, Rp, CC, rb, jnp.dtype(x.dtype).name)(stacked)
    if Rp != R:
        out = out[:R]
    return out.reshape(N, OH, OW, C)


def _adaptive_pool_1d(out_size, in_size):
    m = np.zeros((out_size, in_size), np.float64)
    for i in range(out_size):
        start = (i * in_size) // out_size
        end = -(-(i + 1) * in_size // out_size)
        m[i, start:end] = 1.0 / (end - start)
    return m


@functools.lru_cache(maxsize=None)
def _pool_matrix(fh, fw, scales):
    """Stacked AdaptiveAvgPool2d matrices for all PPM scales: [sum s*s, fh*fw] (bf16)."""
    rows = []
    for s in scales:
        ph = _adaptive_pool_1d(s, fh)
        pw = _adaptive_pool_1d(s, fw)
        rows.append(np.einsum('ah,bw->abhw', ph, pw).reshape(s * s, fh * fw))
    return jnp.asarray(np.concatenate(rows, 0), jnp.bfloat16)


@functools.lru_cache(maxsize=None)
def _interp_matrix(out_size, in_size):
    # TODO(synk): bilinear with align_corners=False (modern F.interpolate default);
    # verify against the reference checkpoint if it used align_corners=True.
    o = np.arange(out_size, dtype=np.float64)
    src = np.maximum((o + 0.5) * (in_size / out_size) - 0.5, 0.0)
    lo = np.minimum(np.floor(src).astype(np.int64), in_size - 1)
    hi = np.minimum(lo + 1, in_size - 1)
    w_hi = src - lo
    w_lo = 1.0 - w_hi
    m = np.zeros((out_size, in_size), np.float64)
    m[np.arange(out_size), lo] += w_lo
    m[np.arange(out_size), hi] += w_hi
    return jnp.asarray(m, jnp.bfloat16)


def bilinear_resize(x, out_h, out_w):
    """Separable bilinear resize as two fused Pallas matmuls with interp matrices."""
    N, H, W, C = x.shape
    if H == out_h and W == out_w:          # identity (e.g. PPM scale 6 at a 6x6 map)
        return x
    if H == 1 and W == 1:                  # upsample of a single pixel is a broadcast
        return jnp.broadcast_to(x, (N, out_h, out_w, C))
    wh = _interp_matrix(out_h, H)
    ww = _interp_matrix(out_w, W)
    t = jnp.transpose(x, (1, 0, 2, 3)).reshape(H, N * W * C)
    t = matmul_fused(wh, t)
    t = t.reshape(out_h, N, W, C).transpose(1, 0, 2, 3)       # [N, out_h, W, C]
    u = jnp.transpose(t, (2, 0, 1, 3)).reshape(W, N * out_h * C)
    u = matmul_fused(ww, u)
    return u.reshape(out_w, N, out_h, C).transpose(1, 2, 0, 3)


# ----------------------------------------------------------------------------
# Deterministic synthetic parameters (ResNet-101 + PPM + head shapes)
# ----------------------------------------------------------------------------

def _prep_conv(w, scale, bias, stride, padding, dil, act):
    """Fold BN scale into the weight, flatten, pad to (Kp, Np) and cast to bf16 once."""
    kh, kw, cin, cout = w.shape
    w = w * scale.reshape(1, 1, 1, cout)
    wm = w.reshape(kh * kw * cin, cout)
    K, N = wm.shape
    Kp, _, _ = _k_tiling(K)
    Np = _ru(N, 128)
    if (Kp, Np) != (K, N):
        wm = jnp.pad(wm, ((0, Kp - K), (0, Np - N)))
    wm = wm.astype(jnp.bfloat16)
    b = bias.reshape(1, N).astype(jnp.float32)
    if Np != N:
        b = jnp.pad(b, ((0, 0), (0, Np - N)))
    return {'w': wm, 'b': b, 'kh': kh, 'kw': kw, 'cin': cin, 'cout': cout,
            'stride': stride, 'pad': padding, 'dil': dil, 'act': act}


class ParamGen:
    def __init__(self, key):
        self._key = key

    def _next(self):
        self._key, sub = jax.random.split(self._key)
        return sub

    def _conv_w(self, kh, kw, cin, cout):
        fan_in = kh * kw * cin
        std = 0.5 * (2.0 / fan_in) ** 0.5
        return std * jax.random.normal(self._next(), (kh, kw, cin, cout), jnp.float32)

    def _bn(self, c):
        # Folded inference-mode BatchNorm: y = x * scale + bias.
        gamma = 1.0 + 0.1 * jax.random.normal(self._next(), (c,), jnp.float32)
        beta = 0.1 * jax.random.normal(self._next(), (c,), jnp.float32)
        mean = 0.1 * jax.random.normal(self._next(), (c,), jnp.float32)
        var = 1.0 + 0.1 * jax.random.uniform(self._next(), (c,), jnp.float32)
        scale = gamma * jax.lax.rsqrt(var + 1e-5)
        bias = beta - mean * scale
        return scale, bias

    def conv_bn(self, kh, kw, cin, cout, stride=1, pad=0, dil=1, act="relu"):
        w = self._conv_w(kh, kw, cin, cout)
        scale, bias = self._bn(cout)
        return _prep_conv(w, scale, bias, stride, pad, dil, act)

    def conv_bias(self, kh, kw, cin, cout, stride=1, pad=0, dil=1, act="none"):
        w = self._conv_w(kh, kw, cin, cout)
        bias = 0.01 * jax.random.normal(self._next(), (cout,), jnp.float32)
        return _prep_conv(w, jnp.ones((cout,), jnp.float32), bias, stride, pad, dil, act)


def _bottleneck_params(gen, inplanes, planes, conv2_stride, dilation, with_down,
                       down_stride):
    p = {
        'conv1': gen.conv_bn(1, 1, inplanes, planes, act="relu"),
        'conv2': gen.conv_bn(3, 3, planes, planes, stride=conv2_stride,
                             pad=dilation, dil=dilation, act="relu"),
        # ReLU of conv3 is applied after the fused residual add in the matmul epilogue.
        'conv3': gen.conv_bn(1, 1, planes, planes * 4, act="relu"),
    }
    if with_down:
        p['down'] = gen.conv_bn(1, 1, inplanes, planes * 4, stride=down_stride,
                                act="none")
    return p


def _make_layer(gen, inplanes, planes, blocks, stride, dilation=1):
    with_down = (stride != 1) or (inplanes != planes * 4)
    if dilation > 1:
        # PSPNet modification: conv2 stride -> 1 (dilated), downsample stride -> 1.
        conv2_stride_first, down_stride = 1, 1
    else:
        conv2_stride_first, down_stride = stride, stride
    params = [_bottleneck_params(gen, inplanes, planes, conv2_stride_first,
                                 dilation, with_down, down_stride)]
    for _ in range(1, blocks):
        params.append(_bottleneck_params(gen, planes * 4, planes, 1, dilation,
                                         False, 1))
    return params, planes * 4


def build_pspnet_params(key, num_classes):
    gen = ParamGen(key)
    params = {'l0_conv': gen.conv_bn(7, 7, 3, 64, stride=2, pad=3, act="relu")}
    inpl = 64
    params['layer1'], inpl = _make_layer(gen, inpl, 64, 3, 1)
    params['layer2'], inpl = _make_layer(gen, inpl, 128, 4, 2)
    params['layer3'], inpl = _make_layer(gen, inpl, 256, 23, 2, dilation=2)
    params['layer4'], inpl = _make_layer(gen, inpl, 512, 3, 2, dilation=4)
    params['ppm'] = [(s, gen.conv_bn(1, 1, 2048, 512, act="relu"))
                     for s in (1, 2, 3, 6)]
    params['final'] = {
        'conv1': gen.conv_bn(3, 3, 4096, 512, pad=1, act="relu"),
        'conv2': gen.conv_bias(1, 1, 512, num_classes, act="none"),
    }
    return params


# ----------------------------------------------------------------------------
# Forward pass
# ----------------------------------------------------------------------------

def bottleneck_forward(x, p):
    identity = conv_bn_act(x, p['down']) if 'down' in p else x
    out = conv_bn_act(x, p['conv1'])
    out = conv_bn_act(out, p['conv2'])
    # conv3 + BN + residual add + ReLU fused into one Pallas matmul epilogue.
    return conv_bn_act(out, p['conv3'], res=identity)


def pspnet_forward(x, params, is_need_sigmoid=True):
    # TODO(synk): preprocess branch (nn.Transpose2d, colordim != 3) does not exist in
    # PyTorch and is only taken when colordim != 3; colordim = 3 path implemented.
    N, H, W, _ = x.shape
    y = x.astype(jnp.bfloat16)
    y = conv_bn_act(y, params['l0_conv'])
    y = maxpool2d_3x3_s2_p1(y)
    for layer in ('layer1', 'layer2', 'layer3', 'layer4'):
        for blk in params[layer]:
            y = bottleneck_forward(y, blk)

    # Pyramid Pooling Module: all 4 adaptive avg-pools as a single stacked matmul.
    Nb, fh, fw, C = y.shape
    scales = tuple(s for s, _ in params['ppm'])
    pool_m = _pool_matrix(fh, fw, scales)                       # [sum s*s, fh*fw]
    x_t = y.reshape(Nb, fh * fw, C).transpose(1, 0, 2).reshape(fh * fw, Nb * C)
    pooled = matmul_fused(pool_m, x_t)                          # [sum s*s, Nb*C]

    outs = [y]
    off = 0
    for (s, cp) in params['ppm']:
        rows = pooled[off:off + s * s]
        off += s * s
        feat = rows.reshape(s, s, Nb, C).transpose(2, 0, 1, 3).reshape(Nb * s * s, C)
        o = matmul_fused(feat, cp['w'], cp['b'], act=cp['act'])
        o = o.reshape(Nb, s, s, cp['cout'])
        outs.append(bilinear_resize(o, fh, fw))
    y = jnp.concatenate(outs, axis=-1)                          # 2048 + 4*512 = 4096

    # Final head.
    f = params['final']
    y = conv_bn_act(y, f['conv1'])
    # TODO(synk): nn.Dropout(0.1) is identity in inference mode (not implemented for
    # training mode).
    y = conv_bn_act(y, f['conv2'])
    score = bilinear_resize(y, H, W)
    if is_need_sigmoid:
        score = sigmoid_pallas(score)
    else:
        score = score.astype(jnp.float32)
    return score


if __name__ == "__main__":
    num_classes = 3
    key = jax.random.PRNGKey(0)
    pkey, xkey = jax.random.split(key)
    params = build_pspnet_params(pkey, num_classes)

    # PyTorch input is NCHW; convert once to the NHWC layout used internally.
    x_nchw = jax.random.normal(xkey, (2, 3, 48, 48), jnp.float32)
    x = jnp.transpose(x_nchw, (0, 2, 3, 1))

    out = pspnet_forward(x, params, is_need_sigmoid=True)
    out = jax.block_until_ready(out)
    assert out.shape == (2, 48, 48, num_classes), out.shape
    assert bool(jnp.all(jnp.isfinite(out)))
    print("KERNEL_OK")
</pallas_src>

<mosaic_0001>
module attributes {stable_mosaic.version = 11 : i64} {
  func.func @kernel(%arg0: i32, %arg1: i32, %arg2: i32, %arg3: memref<1152x256xbf16, #tpu.memory_space<vmem>>, %arg4: memref<256x128xbf16, #tpu.memory_space<vmem>>, %arg5: memref<1x128xf32, #tpu.memory_space<vmem>>, %arg6: memref<1152x128xbf16, #tpu.memory_space<vmem>>, %arg7: memref<1152x128xf32, #tpu.memory_space<vmem>>) attributes {dimension_semantics = [#tpu.dimension_semantics<parallel>, #tpu.dimension_semantics<parallel>, #tpu.dimension_semantics<arbitrary>], iteration_bounds = array<i64: 1, 1, 1>, scalar_prefetch = 0 : i64, scratch_operands = 1 : i64, tpu.core_type = #tpu.core_type<tc>, window_params = [{transform_indices = @transform_0, window_bounds = array<i64: 1152, 256>}, {transform_indices = @transform_1, window_bounds = array<i64: 256, 128>}, {transform_indices = @transform_2, window_bounds = array<i64: 1, 128>}, {transform_indices = @transform_3, window_bounds = array<i64: 1152, 128>}]} {
    %c0_i32 = arith.constant 0 : i32
    %0 = arith.cmpi eq, %arg2, %c0_i32 : i32
    %1 = arith.extui %0 : i1 to i32
    %c0_i32_0 = arith.constant 0 : i32
    %2 = arith.cmpi ne, %1, %c0_i32_0 : i32
    scf.if %2 {
      %cst_10 = arith.constant 0.000000e+00 : f32
      %12 = vector.broadcast %cst_10 : f32 to vector<1152x128xf32>
      %c0_11 = arith.constant 0 : index
      %c0_12 = arith.constant 0 : index
      %13 = vector.load %arg7[%c0_11, %c0_12] : memref<1152x128xf32, #tpu.memory_space<vmem>>, vector<1152x128xf32>
      tpu.vector_store %arg7[%c0_11, %c0_12], %12 {strides = array<i32>} : memref<1152x128xf32, #tpu.memory_space<vmem>>, vector<1152x128xf32>,
    } else {
    }
    %c0 = arith.constant 0 : index
    %c0_1 = arith.constant 0 : index
    %3 = vector.load %arg7[%c0, %c0_1] : memref<1152x128xf32, #tpu.memory_space<vmem>>, vector<1152x128xf32>
    %c0_2 = arith.constant 0 : index
    %c0_3 = arith.constant 0 : index
    %4 = vector.load %arg3[%c0_2, %c0_3] : memref<1152x256xbf16, #tpu.memory_space<vmem>>, vector<1152x256xbf16>
    %c0_4 = arith.constant 0 : index
    %c0_5 = arith.constant 0 : index
    %5 = vector.load %arg4[%c0_4, %c0_5] : memref<256x128xbf16, #tpu.memory_space<vmem>>, vector<256x128xbf16>
    %cst = arith.constant dense<0.000000e+00> : vector<1152x128xf32>
    %6 = tpu.matmul %4, %5, %cst {dimension_numbers = #tpu.dot_dimension_numbers<[1], [0], [0], [1], [0, 0, 1, 1], [], []>} : vector<1152x256xbf16>, vector<256x128xbf16>, vector<1152x128xf32> -> vector<1152x128xf32>
    %7 = arith.addf %3, %6 : vector<1152x128xf32>
    %c0_6 = arith.constant 0 : index
    %c0_7 = arith.constant 0 : index
    %8 = vector.load %arg7[%c0_6, %c0_7] : memref<1152x128xf32, #tpu.memory_space<vmem>>, vector<1152x128xf32>
    tpu.vector_store %arg7[%c0_6, %c0_7], %7 {strides = array<i32>} : memref<1152x128xf32, #tpu.memory_space<vmem>>, vector<1152x128xf32>,
    %c0_i32_8 = arith.constant 0 : i32
    %9 = arith.cmpi eq, %arg2, %c0_i32_8 : i32
    %10 = arith.extui %9 : i1 to i32
    %c0_i32_9 = arith.constant 0 : i32
    %11 = arith.cmpi ne, %10, %c0_i32_9 : i32
    scf.if %11 {
      %c0_10 = arith.constant 0 : index
      %c0_11 = arith.constant 0 : index
      %12 = vector.load %arg7[%c0_10, %c0_11] : memref<1152x128xf32, #tpu.memory_space<vmem>>, vector<1152x128xf32>
      %c0_12 = arith.constant 0 : index
      %c0_13 = arith.constant 0 : index
      %13 = vector.load %arg5[%c0_12, %c0_13] : memref<1x128xf32, #tpu.memory_space<vmem>>, vector<1x128xf32>
      %14 = vector.broadcast %13 : vector<1x128xf32> to vector<1152x128xf32>
      %15 = arith.addf %12, %14 : vector<1152x128xf32>
      %cst_14 = arith.constant 0.000000e+00 : f32
      %16 = vector.broadcast %cst_14 : f32 to vector<1152x128xf32>
      %17 = arith.maximumf %15, %16 : vector<1152x128xf32>
      %18 = arith.truncf %17 : vector<1152x128xf32> to vector<1152x128xbf16>
      %c0_15 = arith.constant 0 : index
      %c0_16 = arith.constant 0 : index
      %19 = vector.load %arg6[%c0_15, %c0_16] : memref<1152x128xbf16, #tpu.memory_space<vmem>>, vector<1152x128xbf16>
      tpu.vector_store %arg6[%c0_15, %c0_16], %18 {strides = array<i32>} : memref<1152x128xbf16, #tpu.memory_space<vmem>>, vector<1152x128xbf16>,
    } else {
    }
    return
  }
  func.func @transform_0(%arg0: i32, %arg1: i32, %arg2: i32) -> (i32, i32) {
    %c0_i32 = arith.constant 0 : i32
    return %arg0, %arg2 : i32, i32
  }
  func.func @transform_1(%arg0: i32, %arg1: i32, %arg2: i32) -> (i32, i32) {
    %c0_i32 = arith.constant 0 : i32
    return %arg2, %arg1 : i32, i32
  }
  func.func @transform_2(%arg0: i32, %arg1: i32, %arg2: i32) -> (i32, i32) {
    %c0_i32 = arith.constant 0 : i32
    %c0_i32_0 = arith.constant 0 : i32
    return %c0_i32, %arg1 : i32, i32
  }
  func.func @transform_3(%arg0: i32, %arg1: i32, %arg2: i32) -> (i32, i32) {
    %c0_i32 = arith.constant 0 : i32
    return %arg0, %arg1 : i32, i32
  }
}

</mosaic_0001>

<llo_original>
// kernel: tpu_custom_call.1
$region0: #{tpu_custom_call.1}
  #allocation0 [shape = 'u32[]', space=smem, size = 0x4, offset = 0x4, fixed_abs, tag = 'smem constant byte address 0x4 - core index']
  #allocation1 [shape = 'u32[72,128]{1,0:T(1,128)}', space=vmem, size = 0x9000, scoped, tag = 'internal scratch']
  #allocation2 [shape = 'f32[1152,128]{1,0:T(8,128)}', space=vmem, size = 0x90000, scoped, tag = 'scratch operand']
  %s0 = inlined_call_operand.hbm [shape: bf16[1152,256], index: 0, kind: input, shape index: {}]
  %s1 = inlined_call_operand.hbm [shape: bf16[256,128], index: 1, kind: input, shape index: {}]
  %s2 = inlined_call_operand.vmem [shape: f32[1,128], index: 2, kind: input, shape index: {}]
  %s3 = inlined_call_operand.hbm [shape: bf16[1152,128], index: 3, kind: output, shape index: {}]
  %s4 = sld [smem:[#allocation0]]
  $region38: #{tpu_custom_call.1} parent=0
    _
  %s6 = ssub.s32 1, %s4
  %s7 = scalar_select 0, %s6, %s4
  $region1: #{tpu_custom_call.1} parent=0
    #allocation3 [shape = 'u8[589824]{0}', space=vmem, size = 0x90000, scoped, tag = 'input window, operand 0, single buffered']
    #allocation4 [shape = 's32[1]{0}', space=sflag, size = 0x4, scoped, tag = 'scoped memory for tpu_custom_call.1']
    #allocation5 [shape = 's32[1]{0}', space=sflag, size = 0x4, scoped, tag = 'scoped memory for tpu_custom_call.1']
    #allocation6 [shape = 'u8[65536]{0}', space=vmem, size = 0x10000, scoped, tag = 'input window, operand 1, single buffered']
    #allocation7 [shape = 's32[1]{0}', space=sflag, size = 0x4, scoped, tag = 'scoped memory for tpu_custom_call.1']
    #allocation8 [shape = 'u8[294912]{0}', space=vmem, size = 0x48000, scoped, tag = 'output window, operand 0, single buffered']
    %8 = vsyncpa [#allocation4], 0
    %9 = vsyncpa [#allocation7], 0
    %10 = vsyncpa [#allocation5], 0
    // Predicated region
    $region2: #{tpu_custom_call.1} parent=1 // pred_check
      _
    $region3: #{tpu_custom_call.1} parent=1 // pred_check_branch
      %12 = sbr.rel (0) target = $region5
    $region4: #{tpu_custom_call.1} parent=1 // pred_region
      %14 = vsyncadd [#allocation4], 0
      %s15 = sshll.u32 %s0, 4
      %s16 = int_to_ptr.hbm [resolvable:$true] %s15
      %s17 = sshll.u32 [#allocation3], 4
      %s18 = int_to_ptr.vmem [resolvable:$true] %s17
      %23 = dma.hbm_to_vmem [thread:$0]  %s16, 18432, %s18, [#allocation4], 128, 128, 8
    $region5: #{tpu_custom_call.1} parent=1 // pred_fallthru
      _
    // Predicated region
    $region6: #{tpu_custom_call.1} parent=1 // pred_check
      _
    $region7: #{tpu_custom_call.1} parent=1 // pred_check_branch
      %25 = sbr.rel (0) target = $region9
    $region8: #{tpu_custom_call.1} parent=1 // pred_region
      %27 = vsyncadd [#allocation7], 0
      %s28 = sshll.u32 %s1, 4
      %s29 = int_to_ptr.hbm [resolvable:$true] %s28
      %s30 = sshll.u32 [#allocation6], 4
      %s31 = int_to_ptr.vmem [resolvable:$true] %s30
      %36 = dma.hbm_to_vmem [thread:$0]  %s29, 2048, %s31, [#allocation7], 64, 64, 4
    $region9: #{tpu_custom_call.1} parent=1 // pred_fallthru
      _
    // Predicated region
    $region10: #{tpu_custom_call.1} parent=1 // pred_check
      _
    $region11: #{tpu_custom_call.1} parent=1 // pred_check_branch
      %38 = sbr.rel (0) target = $region13
    $region12: #{tpu_custom_call.1} parent=1 // pred_region
      _
    $region13: #{tpu_custom_call.1} parent=1 // pred_fallthru
      _
    // Predicated region
    $region14: #{tpu_custom_call.1} parent=1 // pred_check
      _
    $region15: #{tpu_custom_call.1} parent=1 // pred_check_branch
      %40 = sbr.rel (0) target = $region17
    $region16: #{tpu_custom_call.1} parent=1 // pred_region
      %42 = dma.done [#allocation4], 18432
    $region17: #{tpu_custom_call.1} parent=1 // pred_fallthru
      _
    // Predicated region
    $region18: #{tpu_custom_call.1} parent=1 // pred_check
      _
    $region19: #{tpu_custom_call.1} parent=1 // pred_check_branch
      %44 = sbr.rel (0) target = $region21
    $region20: #{tpu_custom_call.1} parent=1 // pred_region
      %46 = dma.done [#allocation7], 2048
    $region21: #{tpu_custom_call.1} parent=1 // pred_fallthru
      _
    %p47 = scmp.eq.s32.totalorder 0, 0
    // Predicated region
    $region22: #{tpu_custom_call.1} parent=1 // pred_check
      %p48 = pneg %p47
    $region23: #{tpu_custom_call.1} parent=1 // pred_check_branch
      %50 = sbr.rel (%p48) target = $region25
    $region24: #{tpu_custom_call.1} parent=1 // pred_region
      %51 = vst [vmem:[#allocation2] sm:$0xff] 0.0
      %52 = vst [vmem:[#allocation2 + $0x8] sm:$0xff] 0.0
      %53 = vst [vmem:[#allocation2 + $0x10] sm:$0xff] 0.0
      %54 = vst [vmem:[#allocation2 + $0x18] sm:$0xff] 0.0
      %55 = vst [vmem:[#allocation2 + $0x20] sm:$0xff] 0.0
      %56 = vst [vmem:[#allocation2 + $0x28] sm:$0xff] 0.0
      %57 = vst [vmem:[#allocation2 + $0x30] sm:$0xff] 0.0
      %58 = vst [vmem:[#allocation2 + $0x38] sm:$0xff] 0.0
      %59 = vst [vmem:[#allocation2 + $0x40] sm:$0xff] 0.0
      %60 = vst [vmem:[#allocation2 + $0x48] sm:$0xff] 0.0
      %61 = vst [vmem:[#allocation2 + $0x50] sm:$0xff] 0.0
      %62 = vst [vmem:[#allocation2 + $0x58] sm:$0xff] 0.0
      %63 = vst [vmem:[#allocation2 + $0x60] sm:$0xff] 0.0
      %64 = vst [vmem:[#allocation2 + $0x68] sm:$0xff] 0.0
      %65 = vst [vmem:[#allocation2 + $0x70] sm:$0xff] 0.0
      %66 = vst [vmem:[#allocation2 + $0x78] sm:$0xff] 0.0
      %67 = vst [vmem:[#allocation2 + $0x80] sm:$0xff] 0.0
      %68 = vst [vmem:[#allocation2 + $0x88] sm:$0xff] 0.0
      %69 = vst [vmem:[#allocation2 + $0x90] sm:$0xff] 0.0
      %70 = vst [vmem:[#allocation2 + $0x98] sm:$0xff] 0.0
      %71 = vst [vmem:[#allocation2 + $0xa0] sm:$0xff] 0.0
      %72 = vst [vmem:[#allocation2 + $0xa8] sm:$0xff] 0.0
      %73 = vst [vmem:[#allocation2 + $0xb0] sm:$0xff] 0.0
      %74 = vst [vmem:[#allocation2 + $0xb8] sm:$0xff] 0.0
      %75 = vst [vmem:[#allocation2 + $0xc0] sm:$0xff] 0.0
      %76 = vst [vmem:[#allocation2 + $0xc8] sm:$0xff] 0.0
      %77 = vst [vmem:[#allocation2 + $0xd0] sm:$0xff] 0.0
      %78 = vst [vmem:[#allocation2 + $0xd8] sm:$0xff] 0.0
      %79 = vst [vmem:[#allocation2 + $0xe0] sm:$0xff] 0.0
      %80 = vst [vmem:[#allocation2 + $0xe8] sm:$0xff] 0.0
      %81 = vst [vmem:[#allocation2 + $0xf0] sm:$0xff] 0.0
      %82 = vst [vmem:[#allocation2 + $0xf8] sm:$0xff] 0.0
      %83 = vst [vmem:[#allocation2 + $0x100] sm:$0xff] 0.0
      %84 = vst [vmem:[#allocation2 + $0x108] sm:$0xff] 0.0
      %85 = vst [vmem:[#allocation2 + $0x110] sm:$0xff] 0.0
      %86 = vst [vmem:[#allocation2 + $0x118] sm:$0xff] 0.0
      %87 = vst [vmem:[#allocation2 + $0x120] sm:$0xff] 0.0
      %88 = vst [vmem:[#allocation2 + $0x128] sm:$0xff] 0.0
      %89 = vst [vmem:[#allocation2 + $0x130] sm:$0xff] 0.0
      %90 = vst [vmem:[#allocation2 + $0x138] sm:$0xff] 0.0
      %91 = vst [vmem:[#allocation2 + $0x140] sm:$0xff] 0.0
      %92 = vst [vmem:[#allocation2 + $0x148] sm:$0xff] 0.0
      %93 = vst [vmem:[#allocation2 + $0x150] sm:$0xff] 0.0
      %94 = vst [vmem:[#allocation2 + $0x158] sm:$0xff] 0.0
      %95 = vst [vmem:[#allocation2 + $0x160] sm:$0xff] 0.0
      %96 = vst [vmem:[#allocation2 + $0x168] sm:$0xff] 0.0
      %97 = vst [vmem:[#allocation2 + $0x170] sm:$0xff] 0.0
      %98 = vst [vmem:[#allocation2 + $0x178] sm:$0xff] 0.0
      %99 = vst [vmem:[#allocation2 + $0x180] sm:$0xff] 0.0
      %100 = vst [vmem:[#allocation2 + $0x188] sm:$0xff] 0.0
      %101 = vst [vmem:[#allocation2 + $0x190] sm:$0xff] 0.0
      %102 = vst [vmem:[#allocation2 + $0x198] sm:$0xff] 0.0
      %103 = vst [vmem:[#allocation2 + $0x1a0] sm:$0xff] 0.0
      %104 = vst [vmem:[#allocation2 + $0x1a8] sm:$0xff] 0.0
      %105 = vst [vmem:[#allocation2 + $0x1b0] sm:$0xff] 0.0
      %106 = vst [vmem:[#allocation2 + $0x1b8] sm:$0xff] 0.0
      %107 = vst [vmem:[#allocation2 + $0x1c0] sm:$0xff] 0.0
      %108 = vst [vmem:[#allocation2 + $0x1c8] sm:$0xff] 0.0
      %109 = vst [vmem:[#allocation2 + $0x1d0] sm:$0xff] 0.0
      %110 = vst [vmem:[#allocation2 + $0x1d8] sm:$0xff] 0.0
      %111 = vst [vmem:[#allocation2 + $0x1e0] sm:$0xff] 0.0
      %112 = vst [vmem:[#allocation2 + $0x1e8] sm:$0xff] 0.0
      %113 = vst [vmem:[#allocation2 + $0x1f0] sm:$0xff] 0.0
      %114 = vst [vmem:[#allocation2 + $0x1f8] sm:$0xff] 0.0
      %115 = vst [vmem:[#allocation2 + $0x200] sm:$0xff] 0.0
      %116 = vst [vmem:[#allocation2 + $0x208] sm:$0xff] 0.0
      %117 = vst [vmem:[#allocation2 + $0x210] sm:$0xff] 0.0
      %118 = vst [vmem:[#allocation2 + $0x218] sm:$0xff] 0.0
      %119 = vst [vmem:[#allocation2 + $0x220] sm:$0xff] 0.0
      %120 = vst [vmem:[#allocation2 + $0x228] sm:$0xff] 0.0
      %121 = vst [vmem:[#allocation2 + $0x230] sm:$0xff] 0.0
      %122 = vst [vmem:[#allocation2 + $0x238] sm:$0xff] 0.0
      %123 = vst [vmem:[#allocation2 + $0x240] sm:$0xff] 0.0
      %124 = vst [vmem:[#allocation2 + $0x248] sm:$0xff] 0.0
      %125 = vst [vmem:[#allocation2 + $0x250] sm:$0xff] 0.0
      %126 = vst [vmem:[#allocation2 + $0x258] sm:$0xff] 0.0
      %127 = vst [vmem:[#allocation2 + $0x260] sm:$0xff] 0.0
      %128 = vst [vmem:[#allocation2 + $0x268] sm:$0xff] 0.0
      %129 = vst [vmem:[#allocation2 + $0x270] sm:$0xff] 0.0
      %130 = vst [vmem:[#allocation2 + $0x278] sm:$0xff] 0.0
      %131 = vst [vmem:[#allocation2 + $0x280] sm:$0xff] 0.0
      %132 = vst [vmem:[#allocation2 + $0x288] sm:$0xff] 0.0
      %133 = vst [vmem:[#allocation2 + $0x290] sm:$0xff] 0.0
      %134 = vst [vmem:[#allocation2 + $0x298] sm:$0xff] 0.0
      %135 = vst [vmem:[#allocation2 + $0x2a0] sm:$0xff] 0.0
      %136 = vst [vmem:[#allocation2 + $0x2a8] sm:$0xff] 0.0
      %137 = vst [vmem:[#allocation2 + $0x2b0] sm:$0xff] 0.0
      %138 = vst [vmem:[#allocation2 + $0x2b8] sm:$0xff] 0.0
      %139 = vst [vmem:[#allocation2 + $0x2c0] sm:$0xff] 0.0
      %140 = vst [vmem:[#allocation2 + $0x2c8] sm:$0xff] 0.0
      %141 = vst [vmem:[#allocation2 + $0x2d0] sm:$0xff] 0.0
      %142 = vst [vmem:[#allocation2 + $0x2d8] sm:$0xff] 0.0
      %143 = vst [vmem:[#allocation2 + $0x2e0] sm:$0xff] 0.0
      %144 = vst [vmem:[#allocation2 + $0x2e8] sm:$0xff] 0.0
      %145 = vst [vmem:[#allocation2 + $0x2f0] sm:$0xff] 0.0
      %146 = vst [vmem:[#allocation2 + $0x2f8] sm:$0xff] 0.0
      %147 = vst [vmem:[#allocation2 + $0x300] sm:$0xff] 0.0
      %148 = vst [vmem:[#allocation2 + $0x308] sm:$0xff] 0.0
      %149 = vst [vmem:[#allocation2 + $0x310] sm:$0xff] 0.0
      %150 = vst [vmem:[#allocation2 + $0x318] sm:$0xff] 0.0
      %151 = vst [vmem:[#allocation2 + $0x320] sm:$0xff] 0.0
      %152 = vst [vmem:[#allocation2 + $0x328] sm:$0xff] 0.0
      %153 = vst [vmem:[#allocation2 + $0x330] sm:$0xff] 0.0
      %154 = vst [vmem:[#allocation2 + $0x338] sm:$0xff] 0.0
      %155 = vst [vmem:[#allocation2 + $0x340] sm:$0xff] 0.0
      %156 = vst [vmem:[#allocation2 + $0x348] sm:$0xff] 0.0
      %157 = vst [vmem:[#allocation2 + $0x350] sm:$0xff] 0.0
      %158 = vst [vmem:[#allocation2 + $0x358] sm:$0xff] 0.0
      %159 = vst [vmem:[#allocation2 + $0x360] sm:$0xff] 0.0
      %160 = vst [vmem:[#allocation2 + $0x368] sm:$0xff] 0.0
      %161 = vst [vmem:[#allocation2 + $0x370] sm:$0xff] 0.0
      %162 = vst [vmem:[#allocation2 + $0x378] sm:$0xff] 0.0
      %163 = vst [vmem:[#allocation2 + $0x380] sm:$0xff] 0.0
      %164 = vst [vmem:[#allocation2 + $0x388] sm:$0xff] 0.0
      %165 = vst [vmem:[#allocation2 + $0x390] sm:$0xff] 0.0
      %166 = vst [vmem:[#allocation2 + $0x398] sm:$0xff] 0.0
      %167 = vst [vmem:[#allocation2 + $0x3a0] sm:$0xff] 0.0
      %168 = vst [vmem:[#allocation2 + $0x3a8] sm:$0xff] 0.0
      %169 = vst [vmem:[#allocation2 + $0x3b0] sm:$0xff] 0.0
      %170 = vst [vmem:[#allocation2 + $0x3b8] sm:$0xff] 0.0
      %171 = vst [vmem:[#allocation2 + $0x3c0] sm:$0xff] 0.0
      %172 = vst [vmem:[#allocation2 + $0x3c8] sm:$0xff] 0.0
      %173 = vst [vmem:[#allocation2 + $0x3d0] sm:$0xff] 0.0
      %174 = vst [vmem:[#allocation2 + $0x3d8] sm:$0xff] 0.0
      %175 = vst [vmem:[#allocation2 + $0x3e0] sm:$0xff] 0.0
      %176 = vst [vmem:[#allocation2 + $0x3e8] sm:$0xff] 0.0
      %177 = vst [vmem:[#allocation2 + $0x3f0] sm:$0xff] 0.0
      %178 = vst [vmem:[#allocation2 + $0x3f8] sm:$0xff] 0.0
      %179 = vst [vmem:[#allocation2 + $0x400] sm:$0xff] 0.0
      %180 = vst [vmem:[#allocation2 + $0x408] sm:$0xff] 0.0
      %181 = vst [vmem:[#allocation2 + $0x410] sm:$0xff] 0.0
      %182 = vst [vmem:[#allocation2 + $0x418] sm:$0xff] 0.0
      %183 = vst [vmem:[#allocation2 + $0x420] sm:$0xff] 0.0
      %184 = vst [vmem:[#allocation2 + $0x428] sm:$0xff] 0.0
      %185 = vst [vmem:[#allocation2 + $0x430] sm:$0xff] 0.0
      %186 = vst [vmem:[#allocation2 + $0x438] sm:$0xff] 0.0
      %187 = vst [vmem:[#allocation2 + $0x440] sm:$0xff] 0.0
      %188 = vst [vmem:[#allocation2 + $0x448] sm:$0xff] 0.0
      %189 = vst [vmem:[#allocation2 + $0x450] sm:$0xff] 0.0
      %190 = vst [vmem:[#allocation2 + $0x458] sm:$0xff] 0.0
      %191 = vst [vmem:[#allocation2 + $0x460] sm:$0xff] 0.0
      %192 = vst [vmem:[#allocation2 + $0x468] sm:$0xff] 0.0
      %193 = vst [vmem:[#allocation2 + $0x470] sm:$0xff] 0.0
      %194 = vst [vmem:[#allocation2 + $0x478] sm:$0xff] 0.0
    $region25: #{tpu_custom_call.1} parent=1 // pred_fallthru
      _
    %v195 = vld [vmem:[#allocation2] sm:$0xff]
    %v196 = vld [vmem:[#allocation2 + $0x8] sm:$0xff]
    %v197 = vld [vmem:[#allocation2 + $0x10] sm:$0xff]
    %v198 = vld [vmem:[#allocation2 + $0x18] sm:$0xff]
    %v199 = vld [vmem:[#allocation2 + $0x20] sm:$0xff]
    %v200 = vld [vmem:[#allocation2 + $0x28] sm:$0xff]
    %v201 = vld [vmem:[#allocation2 + $0x30] sm:$0xff]
    %v202 = vld [vmem:[#allocation2 + $0x38] sm:$0xff]
    %v203 = vld [vmem:[#allocation2 + $0x40] sm:$0xff]
    %v204 = vld [vmem:[#allocation2 + $0x48] sm:$0xff]
    %v205 = vld [vmem:[#allocation2 + $0x50] sm:$0xff]
    %v206 = vld [vmem:[#allocation2 + $0x58] sm:$0xff]
    %v207 = vld [vmem:[#allocation2 + $0x60] sm:$0xff]
    %v208 = vld [vmem:[#allocation2 + $0x68] sm:$0xff]
    %v209 = vld [vmem:[#allocation2 + $0x70] sm:$0xff]
    %v210 = vld [vmem:[#allocation2 + $0x78] sm:$0xff]
    %v211 = vld [vmem:[#allocation2 + $0x80] sm:$0xff]
    %v212 = vld [vmem:[#allocation2 + $0x88] sm:$0xff]
    %v213 = vld [vmem:[#allocation2 + $0x90] sm:$0xff]
    %v214 = vld [vmem:[#allocation2 + $0x98] sm:$0xff]
    %v215 = vld [vmem:[#allocation2 + $0xa0] sm:$0xff]
    %v216 = vld [vmem:[#allocation2 + $0xa8] sm:$0xff]
    %v217 = vld [vmem:[#allocation2 + $0xb0] sm:$0xff]
    %v218 = vld [vmem:[#allocation2 + $0xb8] sm:$0xff]
    %v219 = vld [vmem:[#allocation2 + $0xc0] sm:$0xff]
    %v220 = vld [vmem:[#allocation2 + $0xc8] sm:$0xff]
    %v221 = vld [vmem:[#allocation2 + $0xd0] sm:$0xff]
    %v222 = vld [vmem:[#allocation2 + $0xd8] sm:$0xff]
    %v223 = vld [vmem:[#allocation2 + $0xe0] sm:$0xff]
    %v224 = vld [vmem:[#allocation2 + $0xe8] sm:$0xff]
    %v225 = vld [vmem:[#allocation2 + $0xf0] sm:$0xff]
    %v226 = vld [vmem:[#allocation2 + $0xf8] sm:$0xff]
    %v227 = vld [vmem:[#allocation2 + $0x100] sm:$0xff]
    %v228 = vld [vmem:[#allocation2 + $0x108] sm:$0xff]
    %v229 = vld [vmem:[#allocation2 + $0x110] sm:$0xff]
    %v230 = vld [vmem:[#allocation2 + $0x118] sm:$0xff]
    %v231 = vld [vmem:[#allocation2 + $0x120] sm:$0xff]
    %v232 = vld [vmem:[#allocation2 + $0x128] sm:$0xff]
    %v233 = vld [vmem:[#allocation2 + $0x130] sm:$0xff]
    %v234 = vld [vmem:[#allocation2 + $0x138] sm:$0xff]
    %v235 = vld [vmem:[#allocation2 + $0x140] sm:$0xff]
    %v236 = vld [vmem:[#allocation2 + $0x148] sm:$0xff]
    %v237 = vld [vmem:[#allocation2 + $0x150] sm:$0xff]
    %v238 = vld [vmem:[#allocation2 + $0x158] sm:$0xff]
    %v239 = vld [vmem:[#allocation2 + $0x160] sm:$0xff]
    %v240 = vld [vmem:[#allocation2 + $0x168] sm:$0xff]
    %v241 = vld [vmem:[#allocation2 + $0x170] sm:$0xff]
    %v242 = vld [vmem:[#allocation2 + $0x178] sm:$0xff]
    %v243 = vld [vmem:[#allocation2 + $0x180] sm:$0xff]
    %v244 = vld [vmem:[#allocation2 + $0x188] sm:$0xff]
    %v245 = vld [vmem:[#allocation2 + $0x190] sm:$0xff]
    %v246 = vld [vmem:[#allocation2 + $0x198] sm:$0xff]
    %v247 = vld [vmem:[#allocation2 + $0x1a0] sm:$0xff]
    %v248 = vld [vmem:[#allocation2 + $0x1a8] sm:$0xff]
    %v249 = vld [vmem:[#allocation2 + $0x1b0] sm:$0xff]
    %v250 = vld [vmem:[#allocation2 + $0x1b8] sm:$0xff]
    %v251 = vld [vmem:[#allocation2 + $0x1c0] sm:$0xff]
    %v252 = vld [vmem:[#allocation2 + $0x1c8] sm:$0xff]
    %v253 = vld [vmem:[#allocation2 + $0x1d0] sm:$0xff]
    %v254 = vld [vmem:[#allocation2 + $0x1d8] sm:$0xff]
    %v255 = vld [vmem:[#allocation2 + $0x1e0] sm:$0xff]
    %v256 = vld [vmem:[#allocation2 + $0x1e8] sm:$0xff]
    %v257 = vld [vmem:[#allocation2 + $0x1f0] sm:$0xff]
    %v258 = vld [vmem:[#allocation2 + $0x1f8] sm:$0xff]
    %v259 = vld [vmem:[#allocation2 + $0x200] sm:$0xff]
    %v260 = vld [vmem:[#allocation2 + $0x208] sm:$0xff]
    %v261 = vld [vmem:[#allocation2 + $0x210] sm:$0xff]
    %v262 = vld [vmem:[#allocation2 + $0x218] sm:$0xff]
    %v263 = vld [vmem:[#allocation2 + $0x220] sm:$0xff]
    %v264 = vld [vmem:[#allocation2 + $0x228] sm:$0xff]
    %v265 = vld [vmem:[#allocation2 + $0x230] sm:$0xff]
    %v266 = vld [vmem:[#allocation2 + $0x238] sm:$0xff]
    %v267 = vld [vmem:[#allocation2 + $0x240] sm:$0xff]
    %v268 = vld [vmem:[#allocation2 + $0x248] sm:$0xff]
    %v269 = vld [vmem:[#allocation2 + $0x250] sm:$0xff]
    %v270 = vld [vmem:[#allocation2 + $0x258] sm:$0xff]
    %v271 = vld [vmem:[#allocation2 + $0x260] sm:$0xff]
    %v272 = vld [vmem:[#allocation2 + $0x268] sm:$0xff]
    %v273 = vld [vmem:[#allocation2 + $0x270] sm:$0xff]
    %v274 = vld [vmem:[#allocation2 + $0x278] sm:$0xff]
    %v275 = vld [vmem:[#allocation2 + $0x280] sm:$0xff]
    %v276 = vld [vmem:[#allocation2 + $0x288] sm:$0xff]
    %v277 = vld [vmem:[#allocation2 + $0x290] sm:$0xff]
    %v278 = vld [vmem:[#allocation2 + $0x298] sm:$0xff]
    %v279 = vld [vmem:[#allocation2 + $0x2a0] sm:$0xff]
    %v280 = vld [vmem:[#allocation2 + $0x2a8] sm:$0xff]
    %v281 = vld [vmem:[#allocation2 + $0x2b0] sm:$0xff]
    %v282 = vld [vmem:[#allocation2 + $0x2b8] sm:$0xff]
    %v283 = vld [vmem:[#allocation2 + $0x2c0] sm:$0xff]
    %v284 = vld [vmem:[#allocation2 + $0x2c8] sm:$0xff]
    %v285 = vld [vmem:[#allocation2 + $0x2d0] sm:$0xff]
    %v286 = vld [vmem:[#allocation2 + $0x2d8] sm:$0xff]
    %v287 = vld [vmem:[#allocation2 + $0x2e0] sm:$0xff]
    %v288 = vld [vmem:[#allocation2 + $0x2e8] sm:$0xff]
    %v289 = vld [vmem:[#allocation2 + $0x2f0] sm:$0xff]
    %v290 = vld [vmem:[#allocation2 + $0x2f8] sm:$0xff]
    %v291 = vld [vmem:[#allocation2 + $0x300] sm:$0xff]
    %v292 = vld [vmem:[#allocation2 + $0x308] sm:$0xff]
    %v293 = vld [vmem:[#allocation2 + $0x310] sm:$0xff]
    %v294 = vld [vmem:[#allocation2 + $0x318] sm:$0xff]
    %v295 = vld [vmem:[#allocation2 + $0x320] sm:$0xff]
    %v296 = vld [vmem:[#allocation2 + $0x328] sm:$0xff]
    %v297 = vld [vmem:[#allocation2 + $0x330] sm:$0xff]
    %v298 = vld [vmem:[#allocation2 + $0x338] sm:$0xff]
    %v299 = vld [vmem:[#allocation2 + $0x340] sm:$0xff]
    %v300 = vld [vmem:[#allocation2 + $0x348] sm:$0xff]
    %v301 = vld [vmem:[#allocation2 + $0x350] sm:$0xff]
    %v302 = vld [vmem:[#allocation2 + $0x358] sm:$0xff]
    %v303 = vld [vmem:[#allocation2 + $0x360] sm:$0xff]
    %v304 = vld [vmem:[#allocation2 + $0x368] sm:$0xff]
    %v305 = vld [vmem:[#allocation2 + $0x370] sm:$0xff]
    %v306 = vld [vmem:[#allocation2 + $0x378] sm:$0xff]
    %v307 = vld [vmem:[#allocation2 + $0x380] sm:$0xff]
    %v308 = vld [vmem:[#allocation2 + $0x388] sm:$0xff]
    %v309 = vld [vmem:[#allocation2 + $0x390] sm:$0xff]
    %v310 = vld [vmem:[#allocation2 + $0x398] sm:$0xff]
    %v311 = vld [vmem:[#allocation2 + $0x3a0] sm:$0xff]
    %v312 = vld [vmem:[#allocation2 + $0x3a8] sm:$0xff]
    %v313 = vld [vmem:[#allocation2 + $0x3b0] sm:$0xff]
    %v314 = vld [vmem:[#allocation2 + $0x3b8] sm:$0xff]
    %v315 = vld [vmem:[#allocation2 + $0x3c0] sm:$0xff]
    %v316 = vld [vmem:[#allocation2 + $0x3c8] sm:$0xff]
    %v317 = vld [vmem:[#allocation2 + $0x3d0] sm:$0xff]
    %v318 = vld [vmem:[#allocation2 + $0x3d8] sm:$0xff]
    %v319 = vld [vmem:[#allocation2 + $0x3e0] sm:$0xff]
    %v320 = vld [vmem:[#allocation2 + $0x3e8] sm:$0xff]
    %v321 = vld [vmem:[#allocation2 + $0x3f0] sm:$0xff]
    %v322 = vld [vmem:[#allocation2 + $0x3f8] sm:$0xff]
    %v323 = vld [vmem:[#allocation2 + $0x400] sm:$0xff]
    %v324 = vld [vmem:[#allocation2 + $0x408] sm:$0xff]
    %v325 = vld [vmem:[#allocation2 + $0x410] sm:$0xff]
    %v326 = vld [vmem:[#allocation2 + $0x418] sm:$0xff]
    %v327 = vld [vmem:[#allocation2 + $0x420] sm:$0xff]
    %v328 = vld [vmem:[#allocation2 + $0x428] sm:$0xff]
    %v329 = vld [vmem:[#allocation2 + $0x430] sm:$0xff]
    %v330 = vld [vmem:[#allocation2 + $0x438] sm:$0xff]
    %v331 = vld [vmem:[#allocation2 + $0x440] sm:$0xff]
    %v332 = vld [vmem:[#allocation2 + $0x448] sm:$0xff]
    %v333 = vld [vmem:[#allocation2 + $0x450] sm:$0xff]
    %v334 = vld [vmem:[#allocation2 + $0x458] sm:$0xff]
    %v335 = vld [vmem:[#allocation2 + $0x460] sm:$0xff]
    %v336 = vld [vmem:[#allocation2 + $0x468] sm:$0xff]
    %v337 = vld [vmem:[#allocation2 + $0x470] sm:$0xff]
    %v338 = vld [vmem:[#allocation2 + $0x478] sm:$0xff]
    %v339 = vld [vmem:[#allocation3] sm:$0xff]
    %v340 = vld [vmem:[#allocation3 + $0x8] sm:$0xff]
    %v341 = vld [vmem:[#allocation3 + $0x10] sm:$0xff]
    %v342 = vld [vmem:[#allocation3 + $0x18] sm:$0xff]
    %v343 = vld [vmem:[#allocation3 + $0x20] sm:$0xff]
    %v344 = vld [vmem:[#allocation3 + $0x28] sm:$0xff]
    %v345 = vld [vmem:[#allocation3 + $0x30] sm:$0xff]
    %v346 = vld [vmem:[#allocation3 + $0x38] sm:$0xff]
    %v347 = vld [vmem:[#allocation3 + $0x40] sm:$0xff]
    %v348 = vld [vmem:[#allocation3 + $0x48] sm:$0xff]
    %v349 = vld [vmem:[#allocation3 + $0x50] sm:$0xff]
    %v350 = vld [vmem:[#allocation3 + $0x58] sm:$0xff]
    %v351 = vld [vmem:[#allocation3 + $0x60] sm:$0xff]
    %v352 = vld [vmem:[#allocation3 + $0x68] sm:$0xff]
    %v353 = vld [vmem:[#allocation3 + $0x70] sm:$0xff]
    %v354 = vld [vmem:[#allocation3 + $0x78] sm:$0xff]
    %v355 = vld [vmem:[#allocation3 + $0x80] sm:$0xff]
    %v356 = vld [vmem:[#allocation3 + $0x88] sm:$0xff]
    %v357 = vld [vmem:[#allocation3 + $0x90] sm:$0xff]
    %v358 = vld [vmem:[#allocation3 + $0x98] sm:$0xff]
    %v359 = vld [vmem:[#allocation3 + $0xa0] sm:$0xff]
    %v360 = vld [vmem:[#allocation3 + $0xa8] sm:$0xff]
    %v361 = vld [vmem:[#allocation3 + $0xb0] sm:$0xff]
    %v362 = vld [vmem:[#allocation3 + $0xb8] sm:$0xff]
    %v363 = vld [vmem:[#allocation3 + $0xc0] sm:$0xff]
    %v364 = vld [vmem:[#allocation3 + $0xc8] sm:$0xff]
    %v365 = vld [vmem:[#allocation3 + $0xd0] sm:$0xff]
    %v366 = vld [vmem:[#allocation3 + $0xd8] sm:$0xff]
    %v367 = vld [vmem:[#allocation3 + $0xe0] sm:$0xff]
    %v368 = vld [vmem:[#allocation3 + $0xe8] sm:$0xff]
    %v369 = vld [vmem:[#allocation3 + $0xf0] sm:$0xff]
    %v370 = vld [vmem:[#allocation3 + $0xf8] sm:$0xff]
    %v371 = vld [vmem:[#allocation3 + $0x100] sm:$0xff]
    %v372 = vld [vmem:[#allocation3 + $0x108] sm:$0xff]
    %v373 = vld [vmem:[#allocation3 + $0x110] sm:$0xff]
    %v374 = vld [vmem:[#allocation3 + $0x118] sm:$0xff]
    %v375 = vld [vmem:[#allocation3 + $0x120] sm:$0xff]
    %v376 = vld [vmem:[#allocation3 + $0x128] sm:$0xff]
    %v377 = vld [vmem:[#allocation3 + $0x130] sm:$0xff]
    %v378 = vld [vmem:[#allocation3 + $0x138] sm:$0xff]
    %v379 = vld [vmem:[#allocation3 + $0x140] sm:$0xff]
    %v380 = vld [vmem:[#allocation3 + $0x148] sm:$0xff]
    %v381 = vld [vmem:[#allocation3 + $0x150] sm:$0xff]
    %v382 = vld [vmem:[#allocation3 + $0x158] sm:$0xff]
    %v383 = vld [vmem:[#allocation3 + $0x160] sm:$0xff]
    %v384 = vld [vmem:[#allocation3 + $0x168] sm:$0xff]
    %v385 = vld [vmem:[#allocation3 + $0x170] sm:$0xff]
    %v386 = vld [vmem:[#allocation3 + $0x178] sm:$0xff]
    %v387 = vld [vmem:[#allocation3 + $0x180] sm:$0xff]
    %v388 = vld [vmem:[#allocation3 + $0x188] sm:$0xff]
    %v389 = vld [vmem:[#allocation3 + $0x190] sm:$0xff]
    %v390 = vld [vmem:[#allocation3 + $0x198] sm:$0xff]
    %v391 = vld [vmem:[#allocation3 + $0x1a0] sm:$0xff]
    %v392 = vld [vmem:[#allocation3 + $0x1a8] sm:$0xff]
    %v393 = vld [vmem:[#allocation3 + $0x1b0] sm:$0xff]
    %v394 = vld [vmem:[#allocation3 + $0x1b8] sm:$0xff]
    %v395 = vld [vmem:[#allocation3 + $0x1c0] sm:$0xff]
    %v396 = vld [vmem:[#allocation3 + $0x1c8] sm:$0xff]
    %v397 = vld [vmem:[#allocation3 + $0x1d0] sm:$0xff]
    %v398 = vld [vmem:[#allocation3 + $0x1d8] sm:$0xff]
    %v399 = vld [vmem:[#allocation3 + $0x1e0] sm:$0xff]
    %v400 = vld [vmem:[#allocation3 + $0x1e8] sm:$0xff]
    %v401 = vld [vmem:[#allocation3 + $0x1f0] sm:$0xff]
    %v402 = vld [vmem:[#allocation3 + $0x1f8] sm:$0xff]
    %v403 = vld [vmem:[#allocation3 + $0x200] sm:$0xff]
    %v404 = vld [vmem:[#allocation3 + $0x208] sm:$0xff]
    %v405 = vld [vmem:[#allocation3 + $0x210] sm:$0xff]
    %v406 = vld [vmem:[#allocation3 + $0x218] sm:$0xff]
    %v407 = vld [vmem:[#allocation3 + $0x220] sm:$0xff]
    %v408 = vld [vmem:[#allocation3 + $0x228] sm:$0xff]
    %v409 = vld [vmem:[#allocation3 + $0x230] sm:$0xff]
    %v410 = vld [vmem:[#allocation3 + $0x238] sm:$0xff]
    %v411 = vld [vmem:[#allocation3 + $0x240] sm:$0xff]
    %v412 = vld [vmem:[#allocation3 + $0x248] sm:$0xff]
    %v413 = vld [vmem:[#allocation3 + $0x250] sm:$0xff]
    %v414 = vld [vmem:[#allocation3 + $0x258] sm:$0xff]
    %v415 = vld [vmem:[#allocation3 + $0x260] sm:$0xff]
    %v416 = vld [vmem:[#allocation3 + $0x268] sm:$0xff]
    %v417 = vld [vmem:[#allocation3 + $0x270] sm:$0xff]
    %v418 = vld [vmem:[#allocation3 + $0x278] sm:$0xff]
    %v419 = vld [vmem:[#allocation3 + $0x280] sm:$0xff]
    %v420 = vld [vmem:[#allocation3 + $0x288] sm:$0xff]
    %v421 = vld [vmem:[#allocation3 + $0x290] sm:$0xff]
    %v422 = vld [vmem:[#allocation3 + $0x298] sm:$0xff]
    %v423 = vld [vmem:[#allocation3 + $0x2a0] sm:$0xff]
    %v424 = vld [vmem:[#allocation3 + $0x2a8] sm:$0xff]
    %v425 = vld [vmem:[#allocation3 + $0x2b0] sm:$0xff]
    %v426 = vld [vmem:[#allocation3 + $0x2b8] sm:$0xff]
    %v427 = vld [vmem:[#allocation3 + $0x2c0] sm:$0xff]
    %v428 = vld [vmem:[#allocation3 + $0x2c8] sm:$0xff]
    %v429 = vld [vmem:[#allocation3 + $0x2d0] sm:$0xff]
    %v430 = vld [vmem:[#allocation3 + $0x2d8] sm:$0xff]
    %v431 = vld [vmem:[#allocation3 + $0x2e0] sm:$0xff]
    %v432 = vld [vmem:[#allocation3 + $0x2e8] sm:$0xff]
    %v433 = vld [vmem:[#allocation3 + $0x2f0] sm:$0xff]
    %v434 = vld [vmem:[#allocation3 + $0x2f8] sm:$0xff]
    %v435 = vld [vmem:[#allocation3 + $0x300] sm:$0xff]
    %v436 = vld [vmem:[#allocation3 + $0x308] sm:$0xff]
    %v437 = vld [vmem:[#allocation3 + $0x310] sm:$0xff]
    %v438 = vld [vmem:[#allocation3 + $0x318] sm:$0xff]
    %v439 = vld [vmem:[#allocation3 + $0x320] sm:$0xff]
    %v440 = vld [vmem:[#allocation3 + $0x328] sm:$0xff]
    %v441 = vld [vmem:[#allocation3 + $0x330] sm:$0xff]
    %v442 = vld [vmem:[#allocation3 + $0x338] sm:$0xff]
    %v443 = vld [vmem:[#allocation3 + $0x340] sm:$0xff]
    %v444 = vld [vmem:[#allocation3 + $0x348] sm:$0xff]
    %v445 = vld [vmem:[#allocation3 + $0x350] sm:$0xff]
    %v446 = vld [vmem:[#allocation3 + $0x358] sm:$0xff]
    %v447 = vld [vmem:[#allocation3 + $0x360] sm:$0xff]
    %v448 = vld [vmem:[#allocation3 + $0x368] sm:$0xff]
    %v449 = vld [vmem:[#allocation3 + $0x370] sm:$0xff]
    %v450 = vld [vmem:[#allocation3 + $0x378] sm:$0xff]
    %v451 = vld [vmem:[#allocation3 + $0x380] sm:$0xff]
    %v452 = vld [vmem:[#allocation3 + $0x388] sm:$0xff]
    %v453 = vld [vmem:[#allocation3 + $0x390] sm:$0xff]
    %v454 = vld [vmem:[#allocation3 + $0x398] sm:$0xff]
    %v455 = vld [vmem:[#allocation3 + $0x3a0] sm:$0xff]
    %v456 = vld [vmem:[#allocation3 + $0x3a8] sm:$0xff]
    %v457 = vld [vmem:[#allocation3 + $0x3b0] sm:$0xff]
    %v458 = vld [vmem:[#allocation3 + $0x3b8] sm:$0xff]
    %v459 = vld [vmem:[#allocation3 + $0x3c0] sm:$0xff]
    %v460 = vld [vmem:[#allocation3 + $0x3c8] sm:$0xff]
    %v461 = vld [vmem:[#allocation3 + $0x3d0] sm:$0xff]
    %v462 = vld [vmem:[#allocation3 + $0x3d8] sm:$0xff]
    %v463 = vld [vmem:[#allocation3 + $0x3e0] sm:$0xff]
    %v464 = vld [vmem:[#allocation3 + $0x3e8] sm:$0xff]
    %v465 = vld [vmem:[#allocation3 + $0x3f0] sm:$0xff]
    %v466 = vld [vmem:[#allocation3 + $0x3f8] sm:$0xff]
    %v467 = vld [vmem:[#allocation3 + $0x400] sm:$0xff]
    %v468 = vld [vmem:[#allocation3 + $0x408] sm:$0xff]
    %v469 = vld [vmem:[#allocation3 + $0x410] sm:$0xff]
    %v470 = vld [vmem:[#allocation3 + $0x418] sm:$0xff]
    %v471 = vld [vmem:[#allocation3 + $0x420] sm:$0xff]
    %v472 = vld [vmem:[#allocation3 + $0x428] sm:$0xff]
    %v473 = vld [vmem:[#allocation3 + $0x430] sm:$0xff]
    %v474 = vld [vmem:[#allocation3 + $0x438] sm:$0xff]
    %v475 = vld [vmem:[#allocation3 + $0x440] sm:$0xff]
    %v476 = vld [vmem:[#allocation3 + $0x448] sm:$0xff]
    %v477 = vld [vmem:[#allocation3 + $0x450] sm:$0xff]
    %v478 = vld [vmem:[#allocation3 + $0x458] sm:$0xff]
    %v479 = vld [vmem:[#allocation3 + $0x460] sm:$0xff]
    %v480 = vld [vmem:[#allocation3 + $0x468] sm:$0xff]
    %v481 = vld [vmem:[#allocation3 + $0x470] sm:$0xff]
    %v482 = vld [vmem:[#allocation3 + $0x478] sm:$0xff]
    %v483 = vld [vmem:[#allocation6] sm:$0xf]
    %v484 = vld [vmem:[#allocation6 + $0x4] sm:$0xf]
    %v485 = vld [vmem:[#allocation6 + $0x8] sm:$0xf]
    %v486 = vld [vmem:[#allocation6 + $0xc] sm:$0xf]
    %v487 = vld [vmem:[#allocation6 + $0x10] sm:$0xf]
    %v488 = vld [vmem:[#allocation6 + $0x14] sm:$0xf]
    %v489 = vld [vmem:[#allocation6 + $0x18] sm:$0xf]
    %v490 = vld [vmem:[#allocation6 + $0x1c] sm:$0xf]
    %v491 = vld [vmem:[#allocation6 + $0x20] sm:$0xf]
    %v492 = vld [vmem:[#allocation6 + $0x24] sm:$0xf]
    %v493 = vld [vmem:[#allocation6 + $0x28] sm:$0xf]
    %v494 = vld [vmem:[#allocation6 + $0x2c] sm:$0xf]
    %v495 = vld [vmem:[#allocation6 + $0x30] sm:$0xf]
    %v496 = vld [vmem:[#allocation6 + $0x34] sm:$0xf]
    %v497 = vld [vmem:[#allocation6 + $0x38] sm:$0xf]
    %v498 = vld [vmem:[#allocation6 + $0x3c] sm:$0xf]
    %v499 = vld [vmem:[#allocation6 + $0x40] sm:$0xf]
    %v500 = vld [vmem:[#allocation6 + $0x44] sm:$0xf]
    %v501 = vld [vmem:[#allocation6 + $0x48] sm:$0xf]
    %v502 = vld [vmem:[#allocation6 + $0x4c] sm:$0xf]
    %v503 = vld [vmem:[#allocation6 + $0x50] sm:$0xf]
    %v504 = vld [vmem:[#allocation6 + $0x54] sm:$0xf]
    %v505 = vld [vmem:[#allocation6 + $0x58] sm:$0xf]
    %v506 = vld [vmem:[#allocation6 + $0x5c] sm:$0xf]
    %v507 = vld [vmem:[#allocation6 + $0x60] sm:$0xf]
    %v508 = vld [vmem:[#allocation6 + $0x64] sm:$0xf]
    %v509 = vld [vmem:[#allocation6 + $0x68] sm:$0xf]
    %v510 = vld [vmem:[#allocation6 + $0x6c] sm:$0xf]
    %v511 = vld [vmem:[#allocation6 + $0x70] sm:$0xf]
    %v512 = vld [vmem:[#allocation6 + $0x74] sm:$0xf]
    %v513 = vld [vmem:[#allocation6 + $0x78] sm:$0xf]
    %v514 = vld [vmem:[#allocation6 + $0x7c] sm:$0xf]
    %v659 = vunpack.c.l.b16 %v339
    %v660 = vunpack.c.h.b16 %v339
    %v661 = vunpack.c.l.b16 %v340
    %v662 = vunpack.c.h.b16 %v340
    %v663 = vunpack.c.l.b16 %v341
    %v664 = vunpack.c.h.b16 %v341
    %v665 = vunpack.c.l.b16 %v342
    %v666 = vunpack.c.h.b16 %v342
    %v667 = vunpack.c.l.b16 %v343
    %v668 = vunpack.c.h.b16 %v343
    %v669 = vunpack.c.l.b16 %v344
    %v670 = vunpack.c.h.b16 %v344
    %v671 = vunpack.c.l.b16 %v345
    %v672 = vunpack.c.h.b16 %v345
    %v673 = vunpack.c.l.b16 %v346
    %v674 = vunpack.c.h.b16 %v346
    %v675 = vunpack.c.l.b16 %v347
    %v676 = vunpack.c.h.b16 %v347
    %v677 = vunpack.c.l.b16 %v348
    %v678 = vunpack.c.h.b16 %v348
    %v679 = vunpack.c.l.b16 %v349
    %v680 = vunpack.c.h.b16 %v349
    %v681 = vunpack.c.l.b16 %v350
    %v682 = vunpack.c.h.b16 %v350
    %v683 = vunpack.c.l.b16 %v351
    %v684 = vunpack.c.h.b16 %v351
    %v685 = vunpack.c.l.b16 %v352
    %v686 = vunpack.c.h.b16 %v352
    %v687 = vunpack.c.l.b16 %v353
    %v688 = vunpack.c.h.b16 %v353
    %v689 = vunpack.c.l.b16 %v354
    %v690 = vunpack.c.h.b16 %v354
    %v691 = vunpack.c.l.b16 %v355
    %v692 = vunpack.c.h.b16 %v355
    %v693 = vunpack.c.l.b16 %v356
    %v694 = vunpack.c.h.b16 %v356
    %v695 = vunpack.c.l.b16 %v357
    %v696 = vunpack.c.h.b16 %v357
    %v697 = vunpack.c.l.b16 %v358
    %v698 = vunpack.c.h.b16 %v358
    %v699 = vunpack.c.l.b16 %v359
    %v700 = vunpack.c.h.b16 %v359
    %v701 = vunpack.c.l.b16 %v360
    %v702 = vunpack.c.h.b16 %v360
    %v703 = vunpack.c.l.b16 %v361
    %v704 = vunpack.c.h.b16 %v361
    %v705 = vunpack.c.l.b16 %v362
    %v706 = vunpack.c.h.b16 %v362
    %v707 = vunpack.c.l.b16 %v363
    %v708 = vunpack.c.h.b16 %v363
    %v709 = vunpack.c.l.b16 %v364
    %v710 = vunpack.c.h.b16 %v364
    %v711 = vunpack.c.l.b16 %v365
    %v712 = vunpack.c.h.b16 %v365
    %v713 = vunpack.c.l.b16 %v366
    %v714 = vunpack.c.h.b16 %v366
    %v715 = vunpack.c.l.b16 %v367
    %v716 = vunpack.c.h.b16 %v367
    %v717 = vunpack.c.l.b16 %v368
    %v718 = vunpack.c.h.b16 %v368
    %v719 = vunpack.c.l.b16 %v369
    %v720 = vunpack.c.h.b16 %v369
    %v721 = vunpack.c.l.b16 %v370
    %v722 = vunpack.c.h.b16 %v370
    %v723 = vunpack.c.l.b16 %v371
    %v724 = vunpack.c.h.b16 %v371
    %v725 = vunpack.c.l.b16 %v372
    %v726 = vunpack.c.h.b16 %v372
    %v727 = vunpack.c.l.b16 %v373
    %v728 = vunpack.c.h.b16 %v373
    %v729 = vunpack.c.l.b16 %v374
    %v730 = vunpack.c.h.b16 %v374
    %v731 = vunpack.c.l.b16 %v375
    %v732 = vunpack.c.h.b16 %v375
    %v733 = vunpack.c.l.b16 %v376
    %v734 = vunpack.c.h.b16 %v376
    %v735 = vunpack.c.l.b16 %v377
    %v736 = vunpack.c.h.b16 %v377
    %v737 = vunpack.c.l.b16 %v378
    %v738 = vunpack.c.h.b16 %v378
    %v739 = vunpack.c.l.b16 %v379
    %v740 = vunpack.c.h.b16 %v379
    %v741 = vunpack.c.l.b16 %v380
    %v742 = vunpack.c.h.b16 %v380
    %v743 = vunpack.c.l.b16 %v381
    %v744 = vunpack.c.h.b16 %v381
    %v745 = vunpack.c.l.b16 %v382
    %v746 = vunpack.c.h.b16 %v382
    %v747 = vunpack.c.l.b16 %v383
    %v748 = vunpack.c.h.b16 %v383
    %v749 = vunpack.c.l.b16 %v384
    %v750 = vunpack.c.h.b16 %v384
    %v751 = vunpack.c.l.b16 %v385
    %v752 = vunpack.c.h.b16 %v385
    %v753 = vunpack.c.l.b16 %v386
    %v754 = vunpack.c.h.b16 %v386
    %v755 = vunpack.c.l.b16 %v387
    %v756 = vunpack.c.h.b16 %v387
    %v757 = vunpack.c.l.b16 %v388
    %v758 = vunpack.c.h.b16 %v388
    %v759 = vunpack.c.l.b16 %v389
    %v760 = vunpack.c.h.b16 %v389
    %v761 = vunpack.c.l.b16 %v390
    %v762 = vunpack.c.h.b16 %v390
    %v763 = vunpack.c.l.b16 %v391
    %v764 = vunpack.c.h.b16 %v391
    %v765 = vunpack.c.l.b16 %v392
    %v766 = vunpack.c.h.b16 %v392
    %v767 = vunpack.c.l.b16 %v393
    %v768 = vunpack.c.h.b16 %v393
    %v769 = vunpack.c.l.b16 %v394
    %v770 = vunpack.c.h.b16 %v394
    %v771 = vunpack.c.l.b16 %v395
    %v772 = vunpack.c.h.b16 %v395
    %v773 = vunpack.c.l.b16 %v396
    %v774 = vunpack.c.h.b16 %v396
    %v775 = vunpack.c.l.b16 %v397
    %v776 = vunpack.c.h.b16 %v397
    %v777 = vunpack.c.l.b16 %v398
    %v778 = vunpack.c.h.b16 %v398
    %v779 = vunpack.c.l.b16 %v399
    %v780 = vunpack.c.h.b16 %v399
    %v781 = vunpack.c.l.b16 %v400
    %v782 = vunpack.c.h.b16 %v400
    %v783 = vunpack.c.l.b16 %v401
    %v784 = vunpack.c.h.b16 %v401
    %v785 = vunpack.c.l.b16 %v402
    %v786 = vunpack.c.h.b16 %v402
    %v787 = vunpack.c.l.b16 %v403
    %v788 = vunpack.c.h.b16 %v403
    %v789 = vunpack.c.l.b16 %v404
    %v790 = vunpack.c.h.b16 %v404
    %v791 = vunpack.c.l.b16 %v405
    %v792 = vunpack.c.h.b16 %v405
    %v793 = vunpack.c.l.b16 %v406
    %v794 = vunpack.c.h.b16 %v406
    %v795 = vunpack.c.l.b16 %v407
    %v796 = vunpack.c.h.b16 %v407
    %v797 = vunpack.c.l.b16 %v408
    %v798 = vunpack.c.h.b16 %v408
    %v799 = vunpack.c.l.b16 %v409
    %v800 = vunpack.c.h.b16 %v409
    %v801 = vunpack.c.l.b16 %v410
    %v802 = vunpack.c.h.b16 %v410
    %v803 = vunpack.c.l.b16 %v411
    %v804 = vunpack.c.h.b16 %v411
    %v805 = vunpack.c.l.b16 %v412
    %v806 = vunpack.c.h.b16 %v412
    %v807 = vunpack.c.l.b16 %v413
    %v808 = vunpack.c.h.b16 %v413
    %v809 = vunpack.c.l.b16 %v414
    %v810 = vunpack.c.h.b16 %v414
    %v811 = vunpack.c.l.b16 %v415
    %v812 = vunpack.c.h.b16 %v415
    %v813 = vunpack.c.l.b16 %v416
    %v814 = vunpack.c.h.b16 %v416
    %v815 = vunpack.c.l.b16 %v417
    %v816 = vunpack.c.h.b16 %v417
    %v817 = vunpack.c.l.b16 %v418
    %v818 = vunpack.c.h.b16 %v418
    %v819 = vunpack.c.l.b16 %v419
    %v820 = vunpack.c.h.b16 %v419
    %v821 = vunpack.c.l.b16 %v420
    %v822 = vunpack.c.h.b16 %v420
    %v823 = vunpack.c.l.b16 %v421
    %v824 = vunpack.c.h.b16 %v421
    %v825 = vunpack.c.l.b16 %v422
    %v826 = vunpack.c.h.b16 %v422
    %v827 = vunpack.c.l.b16 %v423
    %v828 = vunpack.c.h.b16 %v423
    %v829 = vunpack.c.l.b16 %v424
    %v830 = vunpack.c.h.b16 %v424
    %v831 = vunpack.c.l.b16 %v425
    %v832 = vunpack.c.h.b16 %v425
    %v833 = vunpack.c.l.b16 %v426
    %v834 = vunpack.c.h.b16 %v426
    %v835 = vunpack.c.l.b16 %v427
    %v836 = vunpack.c.h.b16 %v427
    %v837 = vunpack.c.l.b16 %v428
    %v838 = vunpack.c.h.b16 %v428
    %v839 = vunpack.c.l.b16 %v429
    %v840 = vunpack.c.h.b16 %v429
    %v841 = vunpack.c.l.b16 %v430
    %v842 = vunpack.c.h.b16 %v430
    %v843 = vunpack.c.l.b16 %v431
    %v844 = vunpack.c.h.b16 %v431
    %v845 = vunpack.c.l.b16 %v432
    %v846 = vunpack.c.h.b16 %v432
    %v847 = vunpack.c.l.b16 %v433
    %v848 = vunpack.c.h.b16 %v433
    %v849 = vunpack.c.l.b16 %v434
    %v850 = vunpack.c.h.b16 %v434
    %v851 = vunpack.c.l.b16 %v435
    %v852 = vunpack.c.h.b16 %v435
    %v853 = vunpack.c.l.b16 %v436
    %v854 = vunpack.c.h.b16 %v436
    %v855 = vunpack.c.l.b16 %v437
    %v856 = vunpack.c.h.b16 %v437
    %v857 = vunpack.c.l.b16 %v438
    %v858 = vunpack.c.h.b16 %v438
    %v859 = vunpack.c.l.b16 %v439
    %v860 = vunpack.c.h.b16 %v439
    %v861 = vunpack.c.l.b16 %v440
    %v862 = vunpack.c.h.b16 %v440
    %v863 = vunpack.c.l.b16 %v441
    %v864 = vunpack.c.h.b16 %v441
    %v865 = vunpack.c.l.b16 %v442
    %v866 = vunpack.c.h.b16 %v442
    %v867 = vunpack.c.l.b16 %v443
    %v868 = vunpack.c.h.b16 %v443
    %v869 = vunpack.c.l.b16 %v444
    %v870 = vunpack.c.h.b16 %v444
    %v871 = vunpack.c.l.b16 %v445
    %v872 = vunpack.c.h.b16 %v445
    %v873 = vunpack.c.l.b16 %v446
    %v874 = vunpack.c.h.b16 %v446
    %v875 = vunpack.c.l.b16 %v447
    %v876 = vunpack.c.h.b16 %v447
    %v877 = vunpack.c.l.b16 %v448
    %v878 = vunpack.c.h.b16 %v448
    %v879 = vunpack.c.l.b16 %v449
    %v880 = vunpack.c.h.b16 %v449
    %v881 = vunpack.c.l.b16 %v450
    %v882 = vunpack.c.h.b16 %v450
    %v883 = vunpack.c.l.b16 %v451
    %v884 = vunpack.c.h.b16 %v451
    %v885 = vunpack.c.l.b16 %v452
    %v886 = vunpack.c.h.b16 %v452
    %v887 = vunpack.c.l.b16 %v453
    %v888 = vunpack.c.h.b16 %v453
    %v889 = vunpack.c.l.b16 %v454
    %v890 = vunpack.c.h.b16 %v454
    %v891 = vunpack.c.l.b16 %v455
    %v892 = vunpack.c.h.b16 %v455
    %v893 = vunpack.c.l.b16 %v456
    %v894 = vunpack.c.h.b16 %v456
    %v895 = vunpack.c.l.b16 %v457
    %v896 = vunpack.c.h.b16 %v457
    %v897 = vunpack.c.l.b16 %v458
    %v898 = vunpack.c.h.b16 %v458
    %v899 = vunpack.c.l.b16 %v459
    %v900 = vunpack.c.h.b16 %v459
    %v901 = vunpack.c.l.b16 %v460
    %v902 = vunpack.c.h.b16 %v460
    %v903 = vunpack.c.l.b16 %v461
    %v904 = vunpack.c.h.b16 %v461
    %v905 = vunpack.c.l.b16 %v462
    %v906 = vunpack.c.h.b16 %v462
    %v907 = vunpack.c.l.b16 %v463
    %v908 = vunpack.c.h.b16 %v463
    %v909 = vunpack.c.l.b16 %v464
    %v910 = vunpack.c.h.b16 %v464
    %v911 = vunpack.c.l.b16 %v465
    %v912 = vunpack.c.h.b16 %v465
    %v913 = vunpack.c.l.b16 %v466
    %v914 = vunpack.c.h.b16 %v466
    %v915 = vunpack.c.l.b16 %v467
    %v916 = vunpack.c.h.b16 %v467
    %v917 = vunpack.c.l.b16 %v468
    %v918 = vunpack.c.h.b16 %v468
    %v919 = vunpack.c.l.b16 %v469
    %v920 = vunpack.c.h.b16 %v469
    %v921 = vunpack.c.l.b16 %v470
    %v922 = vunpack.c.h.b16 %v470
    %v923 = vunpack.c.l.b16 %v471
    %v924 = vunpack.c.h.b16 %v471
    %v925 = vunpack.c.l.b16 %v472
    %v926 = vunpack.c.h.b16 %v472
    %v927 = vunpack.c.l.b16 %v473
    %v928 = vunpack.c.h.b16 %v473
    %v929 = vunpack.c.l.b16 %v474
    %v930 = vunpack.c.h.b16 %v474
    %v931 = vunpack.c.l.b16 %v475
    %v932 = vunpack.c.h.b16 %v475
    %v933 = vunpack.c.l.b16 %v476
    %v934 = vunpack.c.h.b16 %v476
    %v935 = vunpack.c.l.b16 %v477
    %v936 = vunpack.c.h.b16 %v477
    %v937 = vunpack.c.l.b16 %v478
    %v938 = vunpack.c.h.b16 %v478
    %v939 = vunpack.c.l.b16 %v479
    %v940 = vunpack.c.h.b16 %v479
    %v941 = vunpack.c.l.b16 %v480
    %v942 = vunpack.c.h.b16 %v480
    %v943 = vunpack.c.l.b16 %v481
    %v944 = vunpack.c.h.b16 %v481
    %v945 = vunpack.c.l.b16 %v482
    %v946 = vunpack.c.h.b16 %v482
    %v947 = vpack.c.b16 %v661, %v659
    %v948 = vpack.c.b16 %v662, %v660
    %v949 = vpack.c.b16 %v665, %v663
    %v950 = vpack.c.b16 %v666, %v664
    %v951 = vpack.c.b16 %v669, %v667
    %v952 = vpack.c.b16 %v670, %v668
    %v953 = vpack.c.b16 %v673, %v671
    %v954 = vpack.c.b16 %v674, %v672
    %v955 = vpack.c.b16 %v677, %v675
    %v956 = vpack.c.b16 %v678, %v676
    %v957 = vpack.c.b16 %v681, %v679
    %v958 = vpack.c.b16 %v682, %v680
    %v959 = vpack.c.b16 %v685, %v683
    %v960 = vpack.c.b16 %v686, %v684
    %v961 = vpack.c.b16 %v689, %v687
    %v962 = vpack.c.b16 %v690, %v688
    %v963 = vpack.c.b16 %v693, %v691
    %v964 = vpack.c.b16 %v694, %v692
    %v965 = vpack.c.b16 %v697, %v695
    %v966 = vpack.c.b16 %v698, %v696
    %v967 = vpack.c.b16 %v701, %v699
    %v968 = vpack.c.b16 %v702, %v700
    %v969 = vpack.c.b16 %v705, %v703
    %v970 = vpack.c.b16 %v706, %v704
    %v971 = vpack.c.b16 %v709, %v707
    %v972 = vpack.c.b16 %v710, %v708
    %v973 = vpack.c.b16 %v713, %v711
    %v974 = vpack.c.b16 %v714, %v712
    %v975 = vpack.c.b16 %v717, %v715
    %v976 = vpack.c.b16 %v718, %v716
    %v977 = vpack.c.b16 %v721, %v719
    %v978 = vpack.c.b16 %v722, %v720
    %v979 = vpack.c.b16 %v725, %v723
    %v980 = vpack.c.b16 %v726, %v724
    %v981 = vpack.c.b16 %v729, %v727
    %v982 = vpack.c.b16 %v730, %v728
    %v983 = vpack.c.b16 %v733, %v731
    %v984 = vpack.c.b16 %v734, %v732
    %v985 = vpack.c.b16 %v737, %v735
    %v986 = vpack.c.b16 %v738, %v736
    %v987 = vpack.c.b16 %v741, %v739
    %v988 = vpack.c.b16 %v742, %v740
    %v989 = vpack.c.b16 %v745, %v743
    %v990 = vpack.c.b16 %v746, %v744
    %v991 = vpack.c.b16 %v749, %v747
    %v992 = vpack.c.b16 %v750, %v748
    %v993 = vpack.c.b16 %v753, %v751
    %v994 = vpack.c.b16 %v754, %v752
    %v995 = vpack.c.b16 %v757, %v755
    %v996 = vpack.c.b16 %v758, %v756
    %v997 = vpack.c.b16 %v761, %v759
    %v998 = vpack.c.b16 %v762, %v760
    %v999 = vpack.c.b16 %v765, %v763
    %v1000 = vpack.c.b16 %v766, %v764
    %v1001 = vpack.c.b16 %v769, %v767
    %v1002 = vpack.c.b16 %v770, %v768
    %v1003 = vpack.c.b16 %v773, %v771
    %v1004 = vpack.c.b16 %v774, %v772
    %v1005 = vpack.c.b16 %v777, %v775
    %v1006 = vpack.c.b16 %v778, %v776
    %v1007 = vpack.c.b16 %v781, %v779
    %v1008 = vpack.c.b16 %v782, %v780
    %v1009 = vpack.c.b16 %v785, %v783
    %v1010 = vpack.c.b16 %v786, %v784
    %v1011 = vpack.c.b16 %v789, %v787
    %v1012 = vpack.c.b16 %v790, %v788
    %v1013 = vpack.c.b16 %v793, %v791
    %v1014 = vpack.c.b16 %v794, %v792
    %v1015 = vpack.c.b16 %v797, %v795
    %v1016 = vpack.c.b16 %v798, %v796
    %v1017 = vpack.c.b16 %v801, %v799
    %v1018 = vpack.c.b16 %v802, %v800
    %v1019 = vpack.c.b16 %v805, %v803
    %v1020 = vpack.c.b16 %v806, %v804
    %v1021 = vpack.c.b16 %v809, %v807
    %v1022 = vpack.c.b16 %v810, %v808
    %v1023 = vpack.c.b16 %v813, %v811
    %v1024 = vpack.c.b16 %v814, %v812
    %v1025 = vpack.c.b16 %v817, %v815
    %v1026 = vpack.c.b16 %v818, %v816
    %v1027 = vpack.c.b16 %v821, %v819
    %v1028 = vpack.c.b16 %v822, %v820
    %v1029 = vpack.c.b16 %v825, %v823
    %v1030 = vpack.c.b16 %v826, %v824
    %v1031 = vpack.c.b16 %v829, %v827
    %v1032 = vpack.c.b16 %v830, %v828
    %v1033 = vpack.c.b16 %v833, %v831
    %v1034 = vpack.c.b16 %v834, %v832
    %v1035 = vpack.c.b16 %v837, %v835
    %v1036 = vpack.c.b16 %v838, %v836
    %v1037 = vpack.c.b16 %v841, %v839
    %v1038 = vpack.c.b16 %v842, %v840
    %v1039 = vpack.c.b16 %v845, %v843
    %v1040 = vpack.c.b16 %v846, %v844
    %v1041 = vpack.c.b16 %v849, %v847
    %v1042 = vpack.c.b16 %v850, %v848
    %v1043 = vpack.c.b16 %v853, %v851
    %v1044 = vpack.c.b16 %v854, %v852
    %v1045 = vpack.c.b16 %v857, %v855
    %v1046 = vpack.c.b16 %v858, %v856
    %v1047 = vpack.c.b16 %v861, %v859
    %v1048 = vpack.c.b16 %v862, %v860
    %v1049 = vpack.c.b16 %v865, %v863
    %v1050 = vpack.c.b16 %v866, %v864
    %v1051 = vpack.c.b16 %v869, %v867
    %v1052 = vpack.c.b16 %v870, %v868
    %v1053 = vpack.c.b16 %v873, %v871
    %v1054 = vpack.c.b16 %v874, %v872
    %v1055 = vpack.c.b16 %v877, %v875
    %v1056 = vpack.c.b16 %v878, %v876
    %v1057 = vpack.c.b16 %v881, %v879
    %v1058 = vpack.c.b16 %v882, %v880
    %v1059 = vpack.c.b16 %v885, %v883
    %v1060 = vpack.c.b16 %v886, %v884
    %v1061 = vpack.c.b16 %v889, %v887
    %v1062 = vpack.c.b16 %v890, %v888
    %v1063 = vpack.c.b16 %v893, %v891
    %v1064 = vpack.c.b16 %v894, %v892
    %v1065 = vpack.c.b16 %v897, %v895
    %v1066 = vpack.c.b16 %v898, %v896
    %v1067 = vpack.c.b16 %v901, %v899
    %v1068 = vpack.c.b16 %v902, %v900
    %v1069 = vpack.c.b16 %v905, %v903
    %v1070 = vpack.c.b16 %v906, %v904
    %v1071 = vpack.c.b16 %v909, %v907
    %v1072 = vpack.c.b16 %v910, %v908
    %v1073 = vpack.c.b16 %v913, %v911
    %v1074 = vpack.c.b16 %v914, %v912
    %v1075 = vpack.c.b16 %v917, %v915
    %v1076 = vpack.c.b16 %v918, %v916
    %v1077 = vpack.c.b16 %v921, %v919
    %v1078 = vpack.c.b16 %v922, %v920
    %v1079 = vpack.c.b16 %v925, %v923
    %v1080 = vpack.c.b16 %v926, %v924
    %v1081 = vpack.c.b16 %v929, %v927
    %v1082 = vpack.c.b16 %v930, %v928
    %v1083 = vpack.c.b16 %v933, %v931
    %v1084 = vpack.c.b16 %v934, %v932
    %v1085 = vpack.c.b16 %v937, %v935
    %v1086 = vpack.c.b16 %v938, %v936
    %v1087 = vpack.c.b16 %v941, %v939
    %v1088 = vpack.c.b16 %v942, %v940
    %v1089 = vpack.c.b16 %v945, %v943
    %v1090 = vpack.c.b16 %v946, %v944
    %v1267 = vunpack.c.l.b16 %v483
    %v1268 = vunpack.c.l.b16 %v484
    %v1269 = vunpack.c.l.b16 %v485
    %v1270 = vunpack.c.l.b16 %v486
    %v1271 = vunpack.c.l.b16 %v487
    %v1272 = vunpack.c.l.b16 %v488
    %v1273 = vunpack.c.l.b16 %v489
    %v1274 = vunpack.c.l.b16 %v490
    %v1275 = vunpack.c.l.b16 %v491
    %v1276 = vunpack.c.l.b16 %v492
    %v1277 = vunpack.c.l.b16 %v493
    %v1278 = vunpack.c.l.b16 %v494
    %v1279 = vunpack.c.l.b16 %v495
    %v1280 = vunpack.c.l.b16 %v496
    %v1281 = vunpack.c.l.b16 %v497
    %v1282 = vunpack.c.l.b16 %v498
    %v1283 = vunpack.c.l.b16 %v499
    %v1284 = vunpack.c.l.b16 %v500
    %v1285 = vunpack.c.l.b16 %v501
    %v1286 = vunpack.c.l.b16 %v502
    %v1287 = vunpack.c.l.b16 %v503
    %v1288 = vunpack.c.l.b16 %v504
    %v1289 = vunpack.c.l.b16 %v505
    %v1290 = vunpack.c.l.b16 %v506
    %v1291 = vunpack.c.l.b16 %v507
    %v1292 = vunpack.c.l.b16 %v508
    %v1293 = vunpack.c.l.b16 %v509
    %v1294 = vunpack.c.l.b16 %v510
    %v1295 = vunpack.c.l.b16 %v511
    %v1296 = vunpack.c.l.b16 %v512
    %v1297 = vunpack.c.l.b16 %v513
    %v1298 = vunpack.c.l.b16 %v514
    %v1299 = vpack.c.b16 %v1268, %v1267
    %v1300 = vpack.c.b16 %v1270, %v1269
    %v1301 = vpack.c.b16 %v1272, %v1271
    %v1302 = vpack.c.b16 %v1274, %v1273
    %v1303 = vpack.c.b16 %v1276, %v1275
    %v1304 = vpack.c.b16 %v1278, %v1277
    %v1305 = vpack.c.b16 %v1280, %v1279
    %v1306 = vpack.c.b16 %v1282, %v1281
    %v1307 = vpack.c.b16 %v1284, %v1283
    %v1308 = vpack.c.b16 %v1286, %v1285
    %v1309 = vpack.c.b16 %v1288, %v1287
    %v1310 = vpack.c.b16 %v1290, %v1289
    %v1311 = vpack.c.b16 %v1292, %v1291
    %v1312 = vpack.c.b16 %v1294, %v1293
    %v1313 = vpack.c.b16 %v1296, %v1295
    %v1314 = vpack.c.b16 %v1298, %v1297
    %1331 = vmatpush.bf16.msra.mxu0 %v1306
    %1332 = vmatpush.bf16.msra.mxu0 %v1305
    %1333 = vmatpush.bf16.msra.mxu0 %v1304
    %1334 = vmatpush.bf16.msra.mxu0 %v1303
    %1335 = vmatpush.bf16.msra.mxu0 %v1302
    %1336 = vmatpush.bf16.msra.mxu0 %v1301
    %1337 = vmatpush.bf16.msra.mxu0 %v1300
    %1338 = vmatpush.bf16.msra.mxu0 %v1299
    %1339 = vmatmul.bf16.gmra.mxu0 %v947
    %v1340 = vpop.f32.mrf.mxu0
    %v1341 = vadd.f32 0.0, %v1340
    %v1342 = vpop.f32.mrf.mxu0
    %v1343 = vadd.f32 0.0, %v1342
    %1344 = vmatmul.bf16.gmra.mxu0 %v949
    %v1345 = vpop.f32.mrf.mxu0
    %v1346 = vadd.f32 0.0, %v1345
    %v1347 = vpop.f32.mrf.mxu0
    %v1348 = vadd.f32 0.0, %v1347
    %1349 = vmatmul.bf16.gmra.mxu0 %v951
    %v1350 = vpop.f32.mrf.mxu0
    %v1351 = vadd.f32 0.0, %v1350
    %v1352 = vpop.f32.mrf.mxu0
    %v1353 = vadd.f32 0.0, %v1352
    %1354 = vmatmul.bf16.gmra.mxu0 %v953
    %v1355 = vpop.f32.mrf.mxu0
    %v1356 = vadd.f32 0.0, %v1355
    %v1357 = vpop.f32.mrf.mxu0
    %v1358 = vadd.f32 0.0, %v1357
    %1359 = vmatmul.bf16.gmra.mxu0 %v955
    %v1360 = vpop.f32.mrf.mxu0
    %v1361 = vadd.f32 0.0, %v1360
    %v1362 = vpop.f32.mrf.mxu0
    %v1363 = vadd.f32 0.0, %v1362
    %1364 = vmatmul.bf16.gmra.mxu0 %v957
    %v1365 = vpop.f32.mrf.mxu0
    %v1366 = vadd.f32 0.0, %v1365
    %v1367 = vpop.f32.mrf.mxu0
    %v1368 = vadd.f32 0.0, %v1367
    %1369 = vmatmul.bf16.gmra.mxu0 %v959
    %v1370 = vpop.f32.mrf.mxu0
    %v1371 = vadd.f32 0.0, %v1370
    %v1372 = vpop.f32.mrf.mxu0
    %v1373 = vadd.f32 0.0, %v1372
    %1374 = vmatmul.bf16.gmra.mxu0 %v961
    %v1375 = vpop.f32.mrf.mxu0
    %v1376 = vadd.f32 0.0, %v1375
    %v1377 = vpop.f32.mrf.mxu0
    %v1378 = vadd.f32 0.0, %v1377
    %1379 = vmatmul.bf16.gmra.mxu0 %v963
    %v1380 = vpop.f32.mrf.mxu0
    %v1381 = vadd.f32 0.0, %v1380
    %v1382 = vpop.f32.mrf.mxu0
    %v1383 = vadd.f32 0.0, %v1382
    %1384 = vmatmul.bf16.gmra.mxu0 %v965
    %v1385 = vpop.f32.mrf.mxu0
    %v1386 = vadd.f32 0.0, %v1385
    %v1387 = vpop.f32.mrf.mxu0
    %v1388 = vadd.f32 0.0, %v1387
    %1389 = vmatmul.bf16.gmra.mxu0 %v967
    %v1390 = vpop.f32.mrf.mxu0
    %v1391 = vadd.f32 0.0, %v1390
    %v1392 = vpop.f32.mrf.mxu0
    %v1393 = vadd.f32 0.0, %v1392
    %1394 = vmatmul.bf16.gmra.mxu0 %v969
    %v1395 = vpop.f32.mrf.mxu0
    %v1396 = vadd.f32 0.0, %v1395
    %v1397 = vpop.f32.mrf.mxu0
    %v1398 = vadd.f32 0.0, %v1397
    %1399 = vmatmul.bf16.gmra.mxu0 %v971
    %v1400 = vpop.f32.mrf.mxu0
    %v1401 = vadd.f32 0.0, %v1400
    %v1402 = vpop.f32.mrf.mxu0
    %v1403 = vadd.f32 0.0, %v1402
    %1404 = vmatmul.bf16.gmra.mxu0 %v973
    %v1405 = vpop.f32.mrf.mxu0
    %v1406 = vadd.f32 0.0, %v1405
    %v1407 = vpop.f32.mrf.mxu0
    %v1408 = vadd.f32 0.0, %v1407
    %1409 = vmatmul.bf16.gmra.mxu0 %v975
    %v1410 = vpop.f32.mrf.mxu0
    %v1411 = vadd.f32 0.0, %v1410
    %v1412 = vpop.f32.mrf.mxu0
    %v1413 = vadd.f32 0.0, %v1412
    %1414 = vmatmul.bf16.gmra.mxu0 %v977
    %v1415 = vpop.f32.mrf.mxu0
    %v1416 = vadd.f32 0.0, %v1415
    %v1417 = vpop.f32.mrf.mxu0
    %v1418 = vadd.f32 0.0, %v1417
    %1419 = vmatmul.bf16.gmra.mxu0 %v979
    %v1420 = vpop.f32.mrf.mxu0
    %v1421 = vadd.f32 0.0, %v1420
    %v1422 = vpop.f32.mrf.mxu0
    %v1423 = vadd.f32 0.0, %v1422
    %1424 = vmatmul.bf16.gmra.mxu0 %v981
    %v1425 = vpop.f32.mrf.mxu0
    %v1426 = vadd.f32 0.0, %v1425
    %v1427 = vpop.f32.mrf.mxu0
    %v1428 = vadd.f32 0.0, %v1427
    %1429 = vmatmul.bf16.gmra.mxu0 %v983
    %v1430 = vpop.f32.mrf.mxu0
    %v1431 = vadd.f32 0.0, %v1430
    %v1432 = vpop.f32.mrf.mxu0
    %v1433 = vadd.f32 0.0, %v1432
    %1434 = vmatmul.bf16.gmra.mxu0 %v985
    %v1435 = vpop.f32.mrf.mxu0
    %v1436 = vadd.f32 0.0, %v1435
    %v1437 = vpop.f32.mrf.mxu0
    %v1438 = vadd.f32 0.0, %v1437
    %1439 = vmatmul.bf16.gmra.mxu0 %v987
    %v1440 = vpop.f32.mrf.mxu0
    %v1441 = vadd.f32 0.0, %v1440
    %v1442 = vpop.f32.mrf.mxu0
    %v1443 = vadd.f32 0.0, %v1442
    %1444 = vmatmul.bf16.gmra.mxu0 %v989
    %v1445 = vpop.f32.mrf.mxu0
    %v1446 = vadd.f32 0.0, %v1445
    %v1447 = vpop.f32.mrf.mxu0
    %v1448 = vadd.f32 0.0, %v1447
    %1449 = vmatmul.bf16.gmra.mxu0 %v991
    %v1450 = vpop.f32.mrf.mxu0
    %v1451 = vadd.f32 0.0, %v1450
    %v1452 = vpop.f32.mrf.mxu0
    %v1453 = vadd.f32 0.0, %v1452
    %1454 = vmatmul.bf16.gmra.mxu0 %v993
    %v1455 = vpop.f32.mrf.mxu0
    %v1456 = vadd.f32 0.0, %v1455
    %v1457 = vpop.f32.mrf.mxu0
    %v1458 = vadd.f32 0.0, %v1457
    %1459 = vmatmul.bf16.gmra.mxu0 %v995
    %v1460 = vpop.f32.mrf.mxu0
    %v1461 = vadd.f32 0.0, %v1460
    %v1462 = vpop.f32.mrf.mxu0
    %v1463 = vadd.f32 0.0, %v1462
    %1464 = vmatmul.bf16.gmra.mxu0 %v997
    %v1465 = vpop.f32.mrf.mxu0
    %v1466 = vadd.f32 0.0, %v1465
    %v1467 = vpop.f32.mrf.mxu0
    %v1468 = vadd.f32 0.0, %v1467
    %1469 = vmatmul.bf16.gmra.mxu0 %v999
    %v1470 = vpop.f32.mrf.mxu0
    %v1471 = vadd.f32 0.0, %v1470
    %v1472 = vpop.f32.mrf.mxu0
    %v1473 = vadd.f32 0.0, %v1472
    %1474 = vmatmul.bf16.gmra.mxu0 %v1001
    %v1475 = vpop.f32.mrf.mxu0
    %v1476 = vadd.f32 0.0, %v1475
    %v1477 = vpop.f32.mrf.mxu0
    %v1478 = vadd.f32 0.0, %v1477
    %1479 = vmatmul.bf16.gmra.mxu0 %v1003
    %v1480 = vpop.f32.mrf.mxu0
    %v1481 = vadd.f32 0.0, %v1480
    %v1482 = vpop.f32.mrf.mxu0
    %v1483 = vadd.f32 0.0, %v1482
    %1484 = vmatmul.bf16.gmra.mxu0 %v1005
    %v1485 = vpop.f32.mrf.mxu0
    %v1486 = vadd.f32 0.0, %v1485
    %v1487 = vpop.f32.mrf.mxu0
    %v1488 = vadd.f32 0.0, %v1487
    %1489 = vmatmul.bf16.gmra.mxu0 %v1007
    %v1490 = vpop.f32.mrf.mxu0
    %v1491 = vadd.f32 0.0, %v1490
    %v1492 = vpop.f32.mrf.mxu0
    %v1493 = vadd.f32 0.0, %v1492
    %1494 = vmatmul.bf16.gmra.mxu0 %v1009
    %v1495 = vpop.f32.mrf.mxu0
    %v1496 = vadd.f32 0.0, %v1495
    %v1497 = vpop.f32.mrf.mxu0
    %v1498 = vadd.f32 0.0, %v1497
    %1499 = vmatmul.bf16.gmra.mxu0 %v1011
    %v1500 = vpop.f32.mrf.mxu0
    %v1501 = vadd.f32 0.0, %v1500
    %v1502 = vpop.f32.mrf.mxu0
    %v1503 = vadd.f32 0.0, %v1502
    %1504 = vmatmul.bf16.gmra.mxu0 %v1013
    %v1505 = vpop.f32.mrf.mxu0
    %v1506 = vadd.f32 0.0, %v1505
    %v1507 = vpop.f32.mrf.mxu0
    %v1508 = vadd.f32 0.0, %v1507
    %1509 = vmatmul.bf16.gmra.mxu0 %v1015
    %v1510 = vpop.f32.mrf.mxu0
    %v1511 = vadd.f32 0.0, %v1510
    %v1512 = vpop.f32.mrf.mxu0
    %v1513 = vadd.f32 0.0, %v1512
    %1514 = vmatmul.bf16.gmra.mxu0 %v1017
    %v1515 = vpop.f32.mrf.mxu0
    %v1516 = vadd.f32 0.0, %v1515
    %v1517 = vpop.f32.mrf.mxu0
    %v1518 = vadd.f32 0.0, %v1517
    %1519 = vmatmul.bf16.gmra.mxu0 %v1019
    %v1520 = vpop.f32.mrf.mxu0
    %v1521 = vadd.f32 0.0, %v1520
    %v1522 = vpop.f32.mrf.mxu0
    %v1523 = vadd.f32 0.0, %v1522
    %1524 = vmatmul.bf16.gmra.mxu0 %v1021
    %v1525 = vpop.f32.mrf.mxu0
    %v1526 = vadd.f32 0.0, %v1525
    %v1527 = vpop.f32.mrf.mxu0
    %v1528 = vadd.f32 0.0, %v1527
    %1529 = vmatmul.bf16.gmra.mxu0 %v1023
    %v1530 = vpop.f32.mrf.mxu0
    %v1531 = vadd.f32 0.0, %v1530
    %v1532 = vpop.f32.mrf.mxu0
    %v1533 = vadd.f32 0.0, %v1532
    %1534 = vmatmul.bf16.gmra.mxu0 %v1025
    %v1535 = vpop.f32.mrf.mxu0
    %v1536 = vadd.f32 0.0, %v1535
    %v1537 = vpop.f32.mrf.mxu0
    %v1538 = vadd.f32 0.0, %v1537
    %1539 = vmatmul.bf16.gmra.mxu0 %v1027
    %v1540 = vpop.f32.mrf.mxu0
    %v1541 = vadd.f32 0.0, %v1540
    %v1542 = vpop.f32.mrf.mxu0
    %v1543 = vadd.f32 0.0, %v1542
    %1544 = vmatmul.bf16.gmra.mxu0 %v1029
    %v1545 = vpop.f32.mrf.mxu0
    %v1546 = vadd.f32 0.0, %v1545
    %v1547 = vpop.f32.mrf.mxu0
    %v1548 = vadd.f32 0.0, %v1547
    %1549 = vmatmul.bf16.gmra.mxu0 %v1031
    %v1550 = vpop.f32.mrf.mxu0
    %v1551 = vadd.f32 0.0, %v1550
    %v1552 = vpop.f32.mrf.mxu0
    %v1553 = vadd.f32 0.0, %v1552
    %1554 = vmatmul.bf16.gmra.mxu0 %v1033
    %v1555 = vpop.f32.mrf.mxu0
    %v1556 = vadd.f32 0.0, %v1555
    %v1557 = vpop.f32.mrf.mxu0
    %v1558 = vadd.f32 0.0, %v1557
    %1559 = vmatmul.bf16.gmra.mxu0 %v1035
    %v1560 = vpop.f32.mrf.mxu0
    %v1561 = vadd.f32 0.0, %v1560
    %v1562 = vpop.f32.mrf.mxu0
    %v1563 = vadd.f32 0.0, %v1562
    %1564 = vmatmul.bf16.gmra.mxu0 %v1037
    %v1565 = vpop.f32.mrf.mxu0
    %v1566 = vadd.f32 0.0, %v1565
    %v1567 = vpop.f32.mrf.mxu0
    %v1568 = vadd.f32 0.0, %v1567
    %1569 = vmatmul.bf16.gmra.mxu0 %v1039
    %v1570 = vpop.f32.mrf.mxu0
    %v1571 = vadd.f32 0.0, %v1570
    %v1572 = vpop.f32.mrf.mxu0
    %v1573 = vadd.f32 0.0, %v1572
    %1574 = vmatmul.bf16.gmra.mxu0 %v1041
    %v1575 = vpop.f32.mrf.mxu0
    %v1576 = vadd.f32 0.0, %v1575
    %v1577 = vpop.f32.mrf.mxu0
    %v1578 = vadd.f32 0.0, %v1577
    %1579 = vmatmul.bf16.gmra.mxu0 %v1043
    %v1580 = vpop.f32.mrf.mxu0
    %v1581 = vadd.f32 0.0, %v1580
    %v1582 = vpop.f32.mrf.mxu0
    %v1583 = vadd.f32 0.0, %v1582
    %1584 = vmatmul.bf16.gmra.mxu0 %v1045
    %v1585 = vpop.f32.mrf.mxu0
    %v1586 = vadd.f32 0.0, %v1585
    %v1587 = vpop.f32.mrf.mxu0
    %v1588 = vadd.f32 0.0, %v1587
    %1589 = vmatmul.bf16.gmra.mxu0 %v1047
    %v1590 = vpop.f32.mrf.mxu0
    %v1591 = vadd.f32 0.0, %v1590
    %v1592 = vpop.f32.mrf.mxu0
    %v1593 = vadd.f32 0.0, %v1592
    %1594 = vmatmul.bf16.gmra.mxu0 %v1049
    %v1595 = vpop.f32.mrf.mxu0
    %v1596 = vadd.f32 0.0, %v1595
    %v1597 = vpop.f32.mrf.mxu0
    %v1598 = vadd.f32 0.0, %v1597
    %1599 = vmatmul.bf16.gmra.mxu0 %v1051
    %v1600 = vpop.f32.mrf.mxu0
    %v1601 = vadd.f32 0.0, %v1600
    %v1602 = vpop.f32.mrf.mxu0
    %v1603 = vadd.f32 0.0, %v1602
    %1604 = vmatmul.bf16.gmra.mxu0 %v1053
    %v1605 = vpop.f32.mrf.mxu0
    %v1606 = vadd.f32 0.0, %v1605
    %v1607 = vpop.f32.mrf.mxu0
    %v1608 = vadd.f32 0.0, %v1607
    %1609 = vmatmul.bf16.gmra.mxu0 %v1055
    %v1610 = vpop.f32.mrf.mxu0
    %v1611 = vadd.f32 0.0, %v1610
    %v1612 = vpop.f32.mrf.mxu0
    %v1613 = vadd.f32 0.0, %v1612
    %1614 = vmatmul.bf16.gmra.mxu0 %v1057
    %v1615 = vpop.f32.mrf.mxu0
    %v1616 = vadd.f32 0.0, %v1615
    %v1617 = vpop.f32.mrf.mxu0
    %v1618 = vadd.f32 0.0, %v1617
    %1619 = vmatmul.bf16.gmra.mxu0 %v1059
    %v1620 = vpop.f32.mrf.mxu0
    %v1621 = vadd.f32 0.0, %v1620
    %v1622 = vpop.f32.mrf.mxu0
    %v1623 = vadd.f32 0.0, %v1622
    %1624 = vmatmul.bf16.gmra.mxu0 %v1061
    %v1625 = vpop.f32.mrf.mxu0
    %v1626 = vadd.f32 0.0, %v1625
    %v1627 = vpop.f32.mrf.mxu0
    %v1628 = vadd.f32 0.0, %v1627
    %1629 = vmatmul.bf16.gmra.mxu0 %v1063
    %v1630 = vpop.f32.mrf.mxu0
    %v1631 = vadd.f32 0.0, %v1630
    %v1632 = vpop.f32.mrf.mxu0
    %v1633 = vadd.f32 0.0, %v1632
    %1634 = vmatmul.bf16.gmra.mxu0 %v1065
    %v1635 = vpop.f32.mrf.mxu0
    %v1636 = vadd.f32 0.0, %v1635
    %v1637 = vpop.f32.mrf.mxu0
    %v1638 = vadd.f32 0.0, %v1637
    %1639 = vmatmul.bf16.gmra.mxu0 %v1067
    %v1640 = vpop.f32.mrf.mxu0
    %v1641 = vadd.f32 0.0, %v1640
    %v1642 = vpop.f32.mrf.mxu0
    %v1643 = vadd.f32 0.0, %v1642
    %1644 = vmatmul.bf16.gmra.mxu0 %v1069
    %v1645 = vpop.f32.mrf.mxu0
    %v1646 = vadd.f32 0.0, %v1645
    %v1647 = vpop.f32.mrf.mxu0
    %v1648 = vadd.f32 0.0, %v1647
    %1649 = vmatmul.bf16.gmra.mxu0 %v1071
    %v1650 = vpop.f32.mrf.mxu0
    %v1651 = vadd.f32 0.0, %v1650
    %v1652 = vpop.f32.mrf.mxu0
    %v1653 = vadd.f32 0.0, %v1652
    %1654 = vmatmul.bf16.gmra.mxu0 %v1073
    %v1655 = vpop.f32.mrf.mxu0
    %v1656 = vadd.f32 0.0, %v1655
    %v1657 = vpop.f32.mrf.mxu0
    %v1658 = vadd.f32 0.0, %v1657
    %1659 = vmatmul.bf16.gmra.mxu0 %v1075
    %v1660 = vpop.f32.mrf.mxu0
    %v1661 = vadd.f32 0.0, %v1660
    %v1662 = vpop.f32.mrf.mxu0
    %v1663 = vadd.f32 0.0, %v1662
    %1664 = vmatmul.bf16.gmra.mxu0 %v1077
    %v1665 = vpop.f32.mrf.mxu0
    %v1666 = vadd.f32 0.0, %v1665
    %v1667 = vpop.f32.mrf.mxu0
    %v1668 = vadd.f32 0.0, %v1667
    %1669 = vmatmul.bf16.gmra.mxu0 %v1079
    %v1670 = vpop.f32.mrf.mxu0
    %v1671 = vadd.f32 0.0, %v1670
    %v1672 = vpop.f32.mrf.mxu0
    %v1673 = vadd.f32 0.0, %v1672
    %1674 = vmatmul.bf16.gmra.mxu0 %v1081
    %v1675 = vpop.f32.mrf.mxu0
    %v1676 = vadd.f32 0.0, %v1675
    %v1677 = vpop.f32.mrf.mxu0
    %v1678 = vadd.f32 0.0, %v1677
    %1679 = vmatmul.bf16.gmra.mxu0 %v1083
    %v1680 = vpop.f32.mrf.mxu0
    %v1681 = vadd.f32 0.0, %v1680
    %v1682 = vpop.f32.mrf.mxu0
    %v1683 = vadd.f32 0.0, %v1682
    %1684 = vmatmul.bf16.gmra.mxu0 %v1085
    %v1685 = vpop.f32.mrf.mxu0
    %v1686 = vadd.f32 0.0, %v1685
    %v1687 = vpop.f32.mrf.mxu0
    %v1688 = vadd.f32 0.0, %v1687
    %1689 = vmatmul.bf16.gmra.mxu0 %v1087
    %v1690 = vpop.f32.mrf.mxu0
    %v1691 = vadd.f32 0.0, %v1690
    %v1692 = vpop.f32.mrf.mxu0
    %v1693 = vadd.f32 0.0, %v1692
    %1694 = vmatmul.bf16.gmra.mxu0 %v1089
    %v1695 = vpop.f32.mrf.mxu0
    %v1696 = vadd.f32 0.0, %v1695
    %v1697 = vpop.f32.mrf.mxu0
    %v1698 = vadd.f32 0.0, %v1697
    %1699 = vdwg.mxu0
    %1700 = vmatpush.bf16.msra.mxu0 %v1314
    %1701 = vmatpush.bf16.msra.mxu0 %v1313
    %1702 = vmatpush.bf16.msra.mxu0 %v1312
    %1703 = vmatpush.bf16.msra.mxu0 %v1311
    %1704 = vmatpush.bf16.msra.mxu0 %v1310
    %1705 = vmatpush.bf16.msra.mxu0 %v1309
    %1706 = vmatpush.bf16.msra.mxu0 %v1308
    %1707 = vmatpush.bf16.msra.mxu0 %v1307
    %1708 = vmatmul.bf16.gmra.mxu0 %v948
    %v1709 = vpop.f32.mrf.mxu0
    %v1710 = vadd.f32 %v1341, %v1709
    %v1711 = vpop.f32.mrf.mxu0
    %v1712 = vadd.f32 %v1343, %v1711
    %1713 = vmatmul.bf16.gmra.mxu0 %v950
    %v1714 = vpop.f32.mrf.mxu0
    %v1715 = vadd.f32 %v1346, %v1714
    %v1716 = vpop.f32.mrf.mxu0
    %v1717 = vadd.f32 %v1348, %v1716
    %1718 = vmatmul.bf16.gmra.mxu0 %v952
    %v1719 = vpop.f32.mrf.mxu0
    %v1720 = vadd.f32 %v1351, %v1719
    %v1721 = vpop.f32.mrf.mxu0
    %v1722 = vadd.f32 %v1353, %v1721
    %1723 = vmatmul.bf16.gmra.mxu0 %v954
    %v1724 = vpop.f32.mrf.mxu0
    %v1725 = vadd.f32 %v1356, %v1724
    %v1726 = vpop.f32.mrf.mxu0
    %v1727 = vadd.f32 %v1358, %v1726
    %1728 = vmatmul.bf16.gmra.mxu0 %v956
    %v1729 = vpop.f32.mrf.mxu0
    %v1730 = vadd.f32 %v1361, %v1729
    %v1731 = vpop.f32.mrf.mxu0
    %v1732 = vadd.f32 %v1363, %v1731
    %1733 = vmatmul.bf16.gmra.mxu0 %v958
    %v1734 = vpop.f32.mrf.mxu0
    %v1735 = vadd.f32 %v1366, %v1734
    %v1736 = vpop.f32.mrf.mxu0
    %v1737 = vadd.f32 %v1368, %v1736
    %1738 = vmatmul.bf16.gmra.mxu0 %v960
    %v1739 = vpop.f32.mrf.mxu0
    %v1740 = vadd.f32 %v1371, %v1739
    %v1741 = vpop.f32.mrf.mxu0
    %v1742 = vadd.f32 %v1373, %v1741
    %1743 = vmatmul.bf16.gmra.mxu0 %v962
    %v1744 = vpop.f32.mrf.mxu0
    %v1745 = vadd.f32 %v1376, %v1744
    %v1746 = vpop.f32.mrf.mxu0
    %v1747 = vadd.f32 %v1378, %v1746
    %1748 = vmatmul.bf16.gmra.mxu0 %v964
    %v1749 = vpop.f32.mrf.mxu0
    %v1750 = vadd.f32 %v1381, %v1749
    %v1751 = vpop.f32.mrf.mxu0
    %v1752 = vadd.f32 %v1383, %v1751
    %1753 = vmatmul.bf16.gmra.mxu0 %v966
    %v1754 = vpop.f32.mrf.mxu0
    %v1755 = vadd.f32 %v1386, %v1754
    %v1756 = vpop.f32.mrf.mxu0
    %v1757 = vadd.f32 %v1388, %v1756
    %1758 = vmatmul.bf16.gmra.mxu0 %v968
    %v1759 = vpop.f32.mrf.mxu0
    %v1760 = vadd.f32 %v1391, %v1759
    %v1761 = vpop.f32.mrf.mxu0
    %v1762 = vadd.f32 %v1393, %v1761
    %1763 = vmatmul.bf16.gmra.mxu0 %v970
    %v1764 = vpop.f32.mrf.mxu0
    %v1765 = vadd.f32 %v1396, %v1764
    %v1766 = vpop.f32.mrf.mxu0
    %v1767 = vadd.f32 %v1398, %v1766
    %1768 = vmatmul.bf16.gmra.mxu0 %v972
    %v1769 = vpop.f32.mrf.mxu0
    %v1770 = vadd.f32 %v1401, %v1769
    %v1771 = vpop.f32.mrf.mxu0
    %v1772 = vadd.f32 %v1403, %v1771
    %1773 = vmatmul.bf16.gmra.mxu0 %v974
    %v1774 = vpop.f32.mrf.mxu0
    %v1775 = vadd.f32 %v1406, %v1774
    %v1776 = vpop.f32.mrf.mxu0
    %v1777 = vadd.f32 %v1408, %v1776
    %1778 = vmatmul.bf16.gmra.mxu0 %v976
    %v1779 = vpop.f32.mrf.mxu0
    %v1780 = vadd.f32 %v1411, %v1779
    %v1781 = vpop.f32.mrf.mxu0
    %v1782 = vadd.f32 %v1413, %v1781
    %1783 = vmatmul.bf16.gmra.mxu0 %v978
    %v1784 = vpop.f32.mrf.mxu0
    %v1785 = vadd.f32 %v1416, %v1784
    %v1786 = vpop.f32.mrf.mxu0
    %v1787 = vadd.f32 %v1418, %v1786
    %1788 = vmatmul.bf16.gmra.mxu0 %v980
    %v1789 = vpop.f32.mrf.mxu0
    %v1790 = vadd.f32 %v1421, %v1789
    %v1791 = vpop.f32.mrf.mxu0
    %v1792 = vadd.f32 %v1423, %v1791
    %1793 = vmatmul.bf16.gmra.mxu0 %v982
    %v1794 = vpop.f32.mrf.mxu0
    %v1795 = vadd.f32 %v1426, %v1794
    %v1796 = vpop.f32.mrf.mxu0
    %v1797 = vadd.f32 %v1428, %v1796
    %1798 = vmatmul.bf16.gmra.mxu0 %v984
    %v1799 = vpop.f32.mrf.mxu0
    %v1800 = vadd.f32 %v1431, %v1799
    %v1801 = vpop.f32.mrf.mxu0
    %v1802 = vadd.f32 %v1433, %v1801
    %1803 = vmatmul.bf16.gmra.mxu0 %v986
    %v1804 = vpop.f32.mrf.mxu0
    %v1805 = vadd.f32 %v1436, %v1804
    %v1806 = vpop.f32.mrf.mxu0
    %v1807 = vadd.f32 %v1438, %v1806
    %1808 = vmatmul.bf16.gmra.mxu0 %v988
    %v1809 = vpop.f32.mrf.mxu0
    %v1810 = vadd.f32 %v1441, %v1809
    %v1811 = vpop.f32.mrf.mxu0
    %v1812 = vadd.f32 %v1443, %v1811
    %1813 = vmatmul.bf16.gmra.mxu0 %v990
    %v1814 = vpop.f32.mrf.mxu0
    %v1815 = vadd.f32 %v1446, %v1814
    %v1816 = vpop.f32.mrf.mxu0
    %v1817 = vadd.f32 %v1448, %v1816
    %1818 = vmatmul.bf16.gmra.mxu0 %v992
    %v1819 = vpop.f32.mrf.mxu0
    %v1820 = vadd.f32 %v1451, %v1819
    %v1821 = vpop.f32.mrf.mxu0
    %v1822 = vadd.f32 %v1453, %v1821
    %1823 = vmatmul.bf16.gmra.mxu0 %v994
    %v1824 = vpop.f32.mrf.mxu0
    %v1825 = vadd.f32 %v1456, %v1824
    %v1826 = vpop.f32.mrf.mxu0
    %v1827 = vadd.f32 %v1458, %v1826
    %1828 = vmatmul.bf16.gmra.mxu0 %v996
    %v1829 = vpop.f32.mrf.mxu0
    %v1830 = vadd.f32 %v1461, %v1829
    %v1831 = vpop.f32.mrf.mxu0
    %v1832 = vadd.f32 %v1463, %v1831
    %1833 = vmatmul.bf16.gmra.mxu0 %v998
    %v1834 = vpop.f32.mrf.mxu0
    %v1835 = vadd.f32 %v1466, %v1834
    %v1836 = vpop.f32.mrf.mxu0
    %v1837 = vadd.f32 %v1468, %v1836
    %1838 = vmatmul.bf16.gmra.mxu0 %v1000
    %v1839 = vpop.f32.mrf.mxu0
    %v1840 = vadd.f32 %v1471, %v1839
    %v1841 = vpop.f32.mrf.mxu0
    %v1842 = vadd.f32 %v1473, %v1841
    %1843 = vmatmul.bf16.gmra.mxu0 %v1002
    %v1844 = vpop.f32.mrf.mxu0
    %v1845 = vadd.f32 %v1476, %v1844
    %v1846 = vpop.f32.mrf.mxu0
    %v1847 = vadd.f32 %v1478, %v1846
    %1848 = vmatmul.bf16.gmra.mxu0 %v1004
    %v1849 = vpop.f32.mrf.mxu0
    %v1850 = vadd.f32 %v1481, %v1849
    %v1851 = vpop.f32.mrf.mxu0
    %v1852 = vadd.f32 %v1483, %v1851
    %1853 = vmatmul.bf16.gmra.mxu0 %v1006
    %v1854 = vpop.f32.mrf.mxu0
    %v1855 = vadd.f32 %v1486, %v1854
    %v1856 = vpop.f32.mrf.mxu0
    %v1857 = vadd.f32 %v1488, %v1856
    %1858 = vmatmul.bf16.gmra.mxu0 %v1008
    %v1859 = vpop.f32.mrf.mxu0
    %v1860 = vadd.f32 %v1491, %v1859
    %v1861 = vpop.f32.mrf.mxu0
    %v1862 = vadd.f32 %v1493, %v1861
    %1863 = vmatmul.bf16.gmra.mxu0 %v1010
    %v1864 = vpop.f32.mrf.mxu0
    %v1865 = vadd.f32 %v1496, %v1864
    %v1866 = vpop.f32.mrf.mxu0
    %v1867 = vadd.f32 %v1498, %v1866
    %1868 = vmatmul.bf16.gmra.mxu0 %v1012
    %v1869 = vpop.f32.mrf.mxu0
    %v1870 = vadd.f32 %v1501, %v1869
    %v1871 = vpop.f32.mrf.mxu0
    %v1872 = vadd.f32 %v1503, %v1871
    %1873 = vmatmul.bf16.gmra.mxu0 %v1014
    %v1874 = vpop.f32.mrf.mxu0
    %v1875 = vadd.f32 %v1506, %v1874
    %v1876 = vpop.f32.mrf.mxu0
    %v1877 = vadd.f32 %v1508, %v1876
    %1878 = vmatmul.bf16.gmra.mxu0 %v1016
    %v1879 = vpop.f32.mrf.mxu0
    %v1880 = vadd.f32 %v1511, %v1879
    %v1881 = vpop.f32.mrf.mxu0
    %v1882 = vadd.f32 %v1513, %v1881
    %1883 = vmatmul.bf16.gmra.mxu0 %v1018
    %v1884 = vpop.f32.mrf.mxu0
    %v1885 = vadd.f32 %v1516, %v1884
    %v1886 = vpop.f32.mrf.mxu0
    %v1887 = vadd.f32 %v1518, %v1886
    %1888 = vmatmul.bf16.gmra.mxu0 %v1020
    %v1889 = vpop.f32.mrf.mxu0
    %v1890 = vadd.f32 %v1521, %v1889
    %v1891 = vpop.f32.mrf.mxu0
    %v1892 = vadd.f32 %v1523, %v1891
    %1893 = vmatmul.bf16.gmra.mxu0 %v1022
    %v1894 = vpop.f32.mrf.mxu0
    %v1895 = vadd.f32 %v1526, %v1894
    %v1896 = vpop.f32.mrf.mxu0
    %v1897 = vadd.f32 %v1528, %v1896
    %1898 = vmatmul.bf16.gmra.mxu0 %v1024
    %v1899 = vpop.f32.mrf.mxu0
    %v1900 = vadd.f32 %v1531, %v1899
    %v1901 = vpop.f32.mrf.mxu0
    %v1902 = vadd.f32 %v1533, %v1901
    %1903 = vmatmul.bf16.gmra.mxu0 %v1026
    %v1904 = vpop.f32.mrf.mxu0
    %v1905 = vadd.f32 %v1536, %v1904
    %v1906 = vpop.f32.mrf.mxu0
    %v1907 = vadd.f32 %v1538, %v1906
    %1908 = vmatmul.bf16.gmra.mxu0 %v1028
    %v1909 = vpop.f32.mrf.mxu0
    %v1910 = vadd.f32 %v1541, %v1909
    %v1911 = vpop.f32.mrf.mxu0
    %v1912 = vadd.f32 %v1543, %v1911
    %1913 = vmatmul.bf16.gmra.mxu0 %v1030
    %v1914 = vpop.f32.mrf.mxu0
    %v1915 = vadd.f32 %v1546, %v1914
    %v1916 = vpop.f32.mrf.mxu0
    %v1917 = vadd.f32 %v1548, %v1916
    %1918 = vmatmul.bf16.gmra.mxu0 %v1032
    %v1919 = vpop.f32.mrf.mxu0
    %v1920 = vadd.f32 %v1551, %v1919
    %v1921 = vpop.f32.mrf.mxu0
    %v1922 = vadd.f32 %v1553, %v1921
    %1923 = vmatmul.bf16.gmra.mxu0 %v1034
    %v1924 = vpop.f32.mrf.mxu0
    %v1925 = vadd.f32 %v1556, %v1924
    %v1926 = vpop.f32.mrf.mxu0
    %v1927 = vadd.f32 %v1558, %v1926
    %1928 = vmatmul.bf16.gmra.mxu0 %v1036
    %v1929 = vpop.f32.mrf.mxu0
    %v1930 = vadd.f32 %v1561, %v1929
    %v1931 = vpop.f32.mrf.mxu0
    %v1932 = vadd.f32 %v1563, %v1931
    %1933 = vmatmul.bf16.gmra.mxu0 %v1038
    %v1934 = vpop.f32.mrf.mxu0
    %v1935 = vadd.f32 %v1566, %v1934
    %v1936 = vpop.f32.mrf.mxu0
    %v1937 = vadd.f32 %v1568, %v1936
    %1938 = vmatmul.bf16.gmra.mxu0 %v1040
    %v1939 = vpop.f32.mrf.mxu0
    %v1940 = vadd.f32 %v1571, %v1939
    %v1941 = vpop.f32.mrf.mxu0
    %v1942 = vadd.f32 %v1573, %v1941
    %1943 = vmatmul.bf16.gmra.mxu0 %v1042
    %v1944 = vpop.f32.mrf.mxu0
    %v1945 = vadd.f32 %v1576, %v1944
    %v1946 = vpop.f32.mrf.mxu0
    %v1947 = vadd.f32 %v1578, %v1946
    %1948 = vmatmul.bf16.gmra.mxu0 %v1044
    %v1949 = vpop.f32.mrf.mxu0
    %v1950 = vadd.f32 %v1581, %v1949
    %v1951 = vpop.f32.mrf.mxu0
    %v1952 = vadd.f32 %v1583, %v1951
    %1953 = vmatmul.bf16.gmra.mxu0 %v1046
    %v1954 = vpop.f32.mrf.mxu0
    %v1955 = vadd.f32 %v1586, %v1954
    %v1956 = vpop.f32.mrf.mxu0
    %v1957 = vadd.f32 %v1588, %v1956
    %1958 = vmatmul.bf16.gmra.mxu0 %v1048
    %v1959 = vpop.f32.mrf.mxu0
    %v1960 = vadd.f32 %v1591, %v1959
    %v1961 = vpop.f32.mrf.mxu0
    %v1962 = vadd.f32 %v1593, %v1961
    %1963 = vmatmul.bf16.gmra.mxu0 %v1050
    %v1964 = vpop.f32.mrf.mxu0
    %v1965 = vadd.f32 %v1596, %v1964
    %v1966 = vpop.f32.mrf.mxu0
    %v1967 = vadd.f32 %v1598, %v1966
    %1968 = vmatmul.bf16.gmra.mxu0 %v1052
    %v1969 = vpop.f32.mrf.mxu0
    %v1970 = vadd.f32 %v1601, %v1969
    %v1971 = vpop.f32.mrf.mxu0
    %v1972 = vadd.f32 %v1603, %v1971
    %1973 = vmatmul.bf16.gmra.mxu0 %v1054
    %v1974 = vpop.f32.mrf.mxu0
    %v1975 = vadd.f32 %v1606, %v1974
    %v1976 = vpop.f32.mrf.mxu0
    %v1977 = vadd.f32 %v1608, %v1976
    %1978 = vmatmul.bf16.gmra.mxu0 %v1056
    %v1979 = vpop.f32.mrf.mxu0
    %v1980 = vadd.f32 %v1611, %v1979
    %v1981 = vpop.f32.mrf.mxu0
    %v1982 = vadd.f32 %v1613, %v1981
    %1983 = vmatmul.bf16.gmra.mxu0 %v1058
    %v1984 = vpop.f32.mrf.mxu0
    %v1985 = vadd.f32 %v1616, %v1984
    %v1986 = vpop.f32.mrf.mxu0
    %v1987 = vadd.f32 %v1618, %v1986
    %1988 = vmatmul.bf16.gmra.mxu0 %v1060
    %v1989 = vpop.f32.mrf.mxu0
    %v1990 = vadd.f32 %v1621, %v1989
    %v1991 = vpop.f32.mrf.mxu0
    %v1992 = vadd.f32 %v1623, %v1991
    %1993 = vmatmul.bf16.gmra.mxu0 %v1062
    %v1994 = vpop.f32.mrf.mxu0
    %v1995 = vadd.f32 %v1626, %v1994
    %v1996 = vpop.f32.mrf.mxu0
    %v1997 = vadd.f32 %v1628, %v1996
    %1998 = vmatmul.bf16.gmra.mxu0 %v1064
    %v1999 = vpop.f32.mrf.mxu0
    %v2000 = vadd.f32 %v1631, %v1999
    %v2001 = vpop.f32.mrf.mxu0
    %v2002 = vadd.f32 %v1633, %v2001
    %2003 = vmatmul.bf16.gmra.mxu0 %v1066
    %v2004 = vpop.f32.mrf.mxu0
    %v2005 = vadd.f32 %v1636, %v2004
    %v2006 = vpop.f32.mrf.mxu0
    %v2007 = vadd.f32 %v1638, %v2006
    %2008 = vmatmul.bf16.gmra.mxu0 %v1068
    %v2009 = vpop.f32.mrf.mxu0
    %v2010 = vadd.f32 %v1641, %v2009
    %v2011 = vpop.f32.mrf.mxu0
    %v2012 = vadd.f32 %v1643, %v2011
    %2013 = vmatmul.bf16.gmra.mxu0 %v1070
    %v2014 = vpop.f32.mrf.mxu0
    %v2015 = vadd.f32 %v1646, %v2014
    %v2016 = vpop.f32.mrf.mxu0
    %v2017 = vadd.f32 %v1648, %v2016
    %2018 = vmatmul.bf16.gmra.mxu0 %v1072
    %v2019 = vpop.f32.mrf.mxu0
    %v2020 = vadd.f32 %v1651, %v2019
    %v2021 = vpop.f32.mrf.mxu0
    %v2022 = vadd.f32 %v1653, %v2021
    %2023 = vmatmul.bf16.gmra.mxu0 %v1074
    %v2024 = vpop.f32.mrf.mxu0
    %v2025 = vadd.f32 %v1656, %v2024
    %v2026 = vpop.f32.mrf.mxu0
    %v2027 = vadd.f32 %v1658, %v2026
    %2028 = vmatmul.bf16.gmra.mxu0 %v1076
    %v2029 = vpop.f32.mrf.mxu0
    %v2030 = vadd.f32 %v1661, %v2029
    %v2031 = vpop.f32.mrf.mxu0
    %v2032 = vadd.f32 %v1663, %v2031
    %2033 = vmatmul.bf16.gmra.mxu0 %v1078
    %v2034 = vpop.f32.mrf.mxu0
    %v2035 = vadd.f32 %v1666, %v2034
    %v2036 = vpop.f32.mrf.mxu0
    %v2037 = vadd.f32 %v1668, %v2036
    %2038 = vmatmul.bf16.gmra.mxu0 %v1080
    %v2039 = vpop.f32.mrf.mxu0
    %v2040 = vadd.f32 %v1671, %v2039
    %v2041 = vpop.f32.mrf.mxu0
    %v2042 = vadd.f32 %v1673, %v2041
    %2043 = vmatmul.bf16.gmra.mxu0 %v1082
    %v2044 = vpop.f32.mrf.mxu0
    %v2045 = vadd.f32 %v1676, %v2044
    %v2046 = vpop.f32.mrf.mxu0
    %v2047 = vadd.f32 %v1678, %v2046
    %2048 = vmatmul.bf16.gmra.mxu0 %v1084
    %v2049 = vpop.f32.mrf.mxu0
    %v2050 = vadd.f32 %v1681, %v2049
    %v2051 = vpop.f32.mrf.mxu0
    %v2052 = vadd.f32 %v1683, %v2051
    %2053 = vmatmul.bf16.gmra.mxu0 %v1086
    %v2054 = vpop.f32.mrf.mxu0
    %v2055 = vadd.f32 %v1686, %v2054
    %v2056 = vpop.f32.mrf.mxu0
    %v2057 = vadd.f32 %v1688, %v2056
    %2058 = vmatmul.bf16.gmra.mxu0 %v1088
    %v2059 = vpop.f32.mrf.mxu0
    %v2060 = vadd.f32 %v1691, %v2059
    %v2061 = vpop.f32.mrf.mxu0
    %v2062 = vadd.f32 %v1693, %v2061
    %2063 = vmatmul.bf16.gmra.mxu0 %v1090
    %v2064 = vpop.f32.mrf.mxu0
    %v2065 = vadd.f32 %v1696, %v2064
    %v2066 = vpop.f32.mrf.mxu0
    %v2067 = vadd.f32 %v1698, %v2066
    %2068 = vdwg.mxu0
    %v2069 = vadd.f32 %v195, %v1710
    %v2070 = vadd.f32 %v196, %v1712
    %v2071 = vadd.f32 %v197, %v1715
    %v2072 = vadd.f32 %v198, %v1717
    %v2073 = vadd.f32 %v199, %v1720
    %v2074 = vadd.f32 %v200, %v1722
    %v2075 = vadd.f32 %v201, %v1725
    %v2076 = vadd.f32 %v202, %v1727
    %v2077 = vadd.f32 %v203, %v1730
    %v2078 = vadd.f32 %v204, %v1732
    %v2079 = vadd.f32 %v205, %v1735
    %v2080 = vadd.f32 %v206, %v1737
    %v2081 = vadd.f32 %v207, %v1740
    %v2082 = vadd.f32 %v208, %v1742
    %v2083 = vadd.f32 %v209, %v1745
    %v2084 = vadd.f32 %v210, %v1747
    %v2085 = vadd.f32 %v211, %v1750
    %v2086 = vadd.f32 %v212, %v1752
    %v2087 = vadd.f32 %v213, %v1755
    %v2088 = vadd.f32 %v214, %v1757
    %v2089 = vadd.f32 %v215, %v1760
    %v2090 = vadd.f32 %v216, %v1762
    %v2091 = vadd.f32 %v217, %v1765
    %v2092 = vadd.f32 %v218, %v1767
    %v2093 = vadd.f32 %v219, %v1770
    %v2094 = vadd.f32 %v220, %v1772
    %v2095 = vadd.f32 %v221, %v1775
    %v2096 = vadd.f32 %v222, %v1777
    %v2097 = vadd.f32 %v223, %v1780
    %v2098 = vadd.f32 %v224, %v1782
    %v2099 = vadd.f32 %v225, %v1785
    %v2100 = vadd.f32 %v226, %v1787
    %v2101 = vadd.f32 %v227, %v1790
    %v2102 = vadd.f32 %v228, %v1792
    %v2103 = vadd.f32 %v229, %v1795
    %v2104 = vadd.f32 %v230, %v1797
    %v2105 = vadd.f32 %v231, %v1800
    %v2106 = vadd.f32 %v232, %v1802
    %v2107 = vadd.f32 %v233, %v1805
    %v2108 = vadd.f32 %v234, %v1807
    %v2109 = vadd.f32 %v235, %v1810
    %v2110 = vadd.f32 %v236, %v1812
    %v2111 = vadd.f32 %v237, %v1815
    %v2112 = vadd.f32 %v238, %v1817
    %v2113 = vadd.f32 %v239, %v1820
    %v2114 = vadd.f32 %v240, %v1822
    %v2115 = vadd.f32 %v241, %v1825
    %v2116 = vadd.f32 %v242, %v1827
    %v2117 = vadd.f32 %v243, %v1830
    %v2118 = vadd.f32 %v244, %v1832
    %v2119 = vadd.f32 %v245, %v1835
    %v2120 = vadd.f32 %v246, %v1837
    %v2121 = vadd.f32 %v247, %v1840
    %v2122 = vadd.f32 %v248, %v1842
    %v2123 = vadd.f32 %v249, %v1845
    %v2124 = vadd.f32 %v250, %v1847
    %v2125 = vadd.f32 %v251, %v1850
    %v2126 = vadd.f32 %v252, %v1852
    %v2127 = vadd.f32 %v253, %v1855
    %v2128 = vadd.f32 %v254, %v1857
    %v2129 = vadd.f32 %v255, %v1860
    %v2130 = vadd.f32 %v256, %v1862
    %v2131 = vadd.f32 %v257, %v1865
    %v2132 = vadd.f32 %v258, %v1867
    %v2133 = vadd.f32 %v259, %v1870
    %v2134 = vadd.f32 %v260, %v1872
    %v2135 = vadd.f32 %v261, %v1875
    %v2136 = vadd.f32 %v262, %v1877
    %v2137 = vadd.f32 %v263, %v1880
    %v2138 = vadd.f32 %v264, %v1882
    %v2139 = vadd.f32 %v265, %v1885
    %v2140 = vadd.f32 %v266, %v1887
    %v2141 = vadd.f32 %v267, %v1890
    %v2142 = vadd.f32 %v268, %v1892
    %v2143 = vadd.f32 %v269, %v1895
    %v2144 = vadd.f32 %v270, %v1897
    %v2145 = vadd.f32 %v271, %v1900
    %v2146 = vadd.f32 %v272, %v1902
    %v2147 = vadd.f32 %v273, %v1905
    %v2148 = vadd.f32 %v274, %v1907
    %v2149 = vadd.f32 %v275, %v1910
    %v2150 = vadd.f32 %v276, %v1912
    %v2151 = vadd.f32 %v277, %v1915
    %v2152 = vadd.f32 %v278, %v1917
    %v2153 = vadd.f32 %v279, %v1920
    %v2154 = vadd.f32 %v280, %v1922
    %v2155 = vadd.f32 %v281, %v1925
    %v2156 = vadd.f32 %v282, %v1927
    %v2157 = vadd.f32 %v283, %v1930
    %v2158 = vadd.f32 %v284, %v1932
    %v2159 = vadd.f32 %v285, %v1935
    %v2160 = vadd.f32 %v286, %v1937
    %v2161 = vadd.f32 %v287, %v1940
    %v2162 = vadd.f32 %v288, %v1942
    %v2163 = vadd.f32 %v289, %v1945
    %v2164 = vadd.f32 %v290, %v1947
    %v2165 = vadd.f32 %v291, %v1950
    %v2166 = vadd.f32 %v292, %v1952
    %v2167 = vadd.f32 %v293, %v1955
    %v2168 = vadd.f32 %v294, %v1957
    %v2169 = vadd.f32 %v295, %v1960
    %v2170 = vadd.f32 %v296, %v1962
    %v2171 = vadd.f32 %v297, %v1965
    %v2172 = vadd.f32 %v298, %v1967
    %v2173 = vadd.f32 %v299, %v1970
    %v2174 = vadd.f32 %v300, %v1972
    %v2175 = vadd.f32 %v301, %v1975
    %v2176 = vadd.f32 %v302, %v1977
    %v2177 = vadd.f32 %v303, %v1980
    %v2178 = vadd.f32 %v304, %v1982
    %v2179 = vadd.f32 %v305, %v1985
    %v2180 = vadd.f32 %v306, %v1987
    %v2181 = vadd.f32 %v307, %v1990
    %v2182 = vadd.f32 %v308, %v1992
    %v2183 = vadd.f32 %v309, %v1995
    %v2184 = vadd.f32 %v310, %v1997
    %v2185 = vadd.f32 %v311, %v2000
    %v2186 = vadd.f32 %v312, %v2002
    %v2187 = vadd.f32 %v313, %v2005
    %v2188 = vadd.f32 %v314, %v2007
    %v2189 = vadd.f32 %v315, %v2010
    %v2190 = vadd.f32 %v316, %v2012
    %v2191 = vadd.f32 %v317, %v2015
    %v2192 = vadd.f32 %v318, %v2017
    %v2193 = vadd.f32 %v319, %v2020
    %v2194 = vadd.f32 %v320, %v2022
    %v2195 = vadd.f32 %v321, %v2025
    %v2196 = vadd.f32 %v322, %v2027
    %v2197 = vadd.f32 %v323, %v2030
    %v2198 = vadd.f32 %v324, %v2032
    %v2199 = vadd.f32 %v325, %v2035
    %v2200 = vadd.f32 %v326, %v2037
    %v2201 = vadd.f32 %v327, %v2040
    %v2202 = vadd.f32 %v328, %v2042
    %v2203 = vadd.f32 %v329, %v2045
    %v2204 = vadd.f32 %v330, %v2047
    %v2205 = vadd.f32 %v331, %v2050
    %v2206 = vadd.f32 %v332, %v2052
    %v2207 = vadd.f32 %v333, %v2055
    %v2208 = vadd.f32 %v334, %v2057
    %v2209 = vadd.f32 %v335, %v2060
    %v2210 = vadd.f32 %v336, %v2062
    %v2211 = vadd.f32 %v337, %v2065
    %v2212 = vadd.f32 %v338, %v2067
    %2213 = vst [vmem:[#allocation2] sm:$0xff] %v2069
    %2214 = vst [vmem:[#allocation2 + $0x8] sm:$0xff] %v2070
    %2215 = vst [vmem:[#allocation2 + $0x10] sm:$0xff] %v2071
    %2216 = vst [vmem:[#allocation2 + $0x18] sm:$0xff] %v2072
    %2217 = vst [vmem:[#allocation2 + $0x20] sm:$0xff] %v2073
    %2218 = vst [vmem:[#allocation2 + $0x28] sm:$0xff] %v2074
    %2219 = vst [vmem:[#allocation2 + $0x30] sm:$0xff] %v2075
    %2220 = vst [vmem:[#allocation2 + $0x38] sm:$0xff] %v2076
    %2221 = vst [vmem:[#allocation2 + $0x40] sm:$0xff] %v2077
    %2222 = vst [vmem:[#allocation2 + $0x48] sm:$0xff] %v2078
    %2223 = vst [vmem:[#allocation2 + $0x50] sm:$0xff] %v2079
    %2224 = vst [vmem:[#allocation2 + $0x58] sm:$0xff] %v2080
    %2225 = vst [vmem:[#allocation2 + $0x60] sm:$0xff] %v2081
    %2226 = vst [vmem:[#allocation2 + $0x68] sm:$0xff] %v2082
    %2227 = vst [vmem:[#allocation2 + $0x70] sm:$0xff] %v2083
    %2228 = vst [vmem:[#allocation2 + $0x78] sm:$0xff] %v2084
    %2229 = vst [vmem:[#allocation2 + $0x80] sm:$0xff] %v2085
    %2230 = vst [vmem:[#allocation2 + $0x88] sm:$0xff] %v2086
    %2231 = vst [vmem:[#allocation2 + $0x90] sm:$0xff] %v2087
    %2232 = vst [vmem:[#allocation2 + $0x98] sm:$0xff] %v2088
    %2233 = vst [vmem:[#allocation2 + $0xa0] sm:$0xff] %v2089
    %2234 = vst [vmem:[#allocation2 + $0xa8] sm:$0xff] %v2090
    %2235 = vst [vmem:[#allocation2 + $0xb0] sm:$0xff] %v2091
    %2236 = vst [vmem:[#allocation2 + $0xb8] sm:$0xff] %v2092
    %2237 = vst [vmem:[#allocation2 + $0xc0] sm:$0xff] %v2093
    %2238 = vst [vmem:[#allocation2 + $0xc8] sm:$0xff] %v2094
    %2239 = vst [vmem:[#allocation2 + $0xd0] sm:$0xff] %v2095
    %2240 = vst [vmem:[#allocation2 + $0xd8] sm:$0xff] %v2096
    %2241 = vst [vmem:[#allocation2 + $0xe0] sm:$0xff] %v2097
    %2242 = vst [vmem:[#allocation2 + $0xe8] sm:$0xff] %v2098
    %2243 = vst [vmem:[#allocation2 + $0xf0] sm:$0xff] %v2099
    %2244 = vst [vmem:[#allocation2 + $0xf8] sm:$0xff] %v2100
    %2245 = vst [vmem:[#allocation2 + $0x100] sm:$0xff] %v2101
    %2246 = vst [vmem:[#allocation2 + $0x108] sm:$0xff] %v2102
    %2247 = vst [vmem:[#allocation2 + $0x110] sm:$0xff] %v2103
    %2248 = vst [vmem:[#allocation2 + $0x118] sm:$0xff] %v2104
    %2249 = vst [vmem:[#allocation2 + $0x120] sm:$0xff] %v2105
    %2250 = vst [vmem:[#allocation2 + $0x128] sm:$0xff] %v2106
    %2251 = vst [vmem:[#allocation2 + $0x130] sm:$0xff] %v2107
    %2252 = vst [vmem:[#allocation2 + $0x138] sm:$0xff] %v2108
    %2253 = vst [vmem:[#allocation2 + $0x140] sm:$0xff] %v2109
    %2254 = vst [vmem:[#allocation2 + $0x148] sm:$0xff] %v2110
    %2255 = vst [vmem:[#allocation2 + $0x150] sm:$0xff] %v2111
    %2256 = vst [vmem:[#allocation2 + $0x158] sm:$0xff] %v2112
    %2257 = vst [vmem:[#allocation2 + $0x160] sm:$0xff] %v2113
    %2258 = vst [vmem:[#allocation2 + $0x168] sm:$0xff] %v2114
    %2259 = vst [vmem:[#allocation2 + $0x170] sm:$0xff] %v2115
    %2260 = vst [vmem:[#allocation2 + $0x178] sm:$0xff] %v2116
    %2261 = vst [vmem:[#allocation2 + $0x180] sm:$0xff] %v2117
    %2262 = vst [vmem:[#allocation2 + $0x188] sm:$0xff] %v2118
    %2263 = vst [vmem:[#allocation2 + $0x190] sm:$0xff] %v2119
    %2264 = vst [vmem:[#allocation2 + $0x198] sm:$0xff] %v2120
    %2265 = vst [vmem:[#allocation2 + $0x1a0] sm:$0xff] %v2121
    %2266 = vst [vmem:[#allocation2 + $0x1a8] sm:$0xff] %v2122
    %2267 = vst [vmem:[#allocation2 + $0x1b0] sm:$0xff] %v2123
    %2268 = vst [vmem:[#allocation2 + $0x1b8] sm:$0xff] %v2124
    %2269 = vst [vmem:[#allocation2 + $0x1c0] sm:$0xff] %v2125
    %2270 = vst [vmem:[#allocation2 + $0x1c8] sm:$0xff] %v2126
    %2271 = vst [vmem:[#allocation2 + $0x1d0] sm:$0xff] %v2127
    %2272 = vst [vmem:[#allocation2 + $0x1d8] sm:$0xff] %v2128
    %2273 = vst [vmem:[#allocation2 + $0x1e0] sm:$0xff] %v2129
    %2274 = vst [vmem:[#allocation2 + $0x1e8] sm:$0xff] %v2130
    %2275 = vst [vmem:[#allocation2 + $0x1f0] sm:$0xff] %v2131
    %2276 = vst [vmem:[#allocation2 + $0x1f8] sm:$0xff] %v2132
    %2277 = vst [vmem:[#allocation2 + $0x200] sm:$0xff] %v2133
    %2278 = vst [vmem:[#allocation2 + $0x208] sm:$0xff] %v2134
    %2279 = vst [vmem:[#allocation2 + $0x210] sm:$0xff] %v2135
    %2280 = vst [vmem:[#allocation2 + $0x218] sm:$0xff] %v2136
    %2281 = vst [vmem:[#allocation2 + $0x220] sm:$0xff] %v2137
    %2282 = vst [vmem:[#allocation2 + $0x228] sm:$0xff] %v2138
    %2283 = vst [vmem:[#allocation2 + $0x230] sm:$0xff] %v2139
    %2284 = vst [vmem:[#allocation2 + $0x238] sm:$0xff] %v2140
    %2285 = vst [vmem:[#allocation2 + $0x240] sm:$0xff] %v2141
    %2286 = vst [vmem:[#allocation2 + $0x248] sm:$0xff] %v2142
    %2287 = vst [vmem:[#allocation2 + $0x250] sm:$0xff] %v2143
    %2288 = vst [vmem:[#allocation2 + $0x258] sm:$0xff] %v2144
    %2289 = vst [vmem:[#allocation2 + $0x260] sm:$0xff] %v2145
    %2290 = vst [vmem:[#allocation2 + $0x268] sm:$0xff] %v2146
    %2291 = vst [vmem:[#allocation2 + $0x270] sm:$0xff] %v2147
    %2292 = vst [vmem:[#allocation2 + $0x278] sm:$0xff] %v2148
    %2293 = vst [vmem:[#allocation2 + $0x280] sm:$0xff] %v2149
    %2294 = vst [vmem:[#allocation2 + $0x288] sm:$0xff] %v2150
    %2295 = vst [vmem:[#allocation2 + $0x290] sm:$0xff] %v2151
    %2296 = vst [vmem:[#allocation2 + $0x298] sm:$0xff] %v2152
    %2297 = vst [vmem:[#allocation2 + $0x2a0] sm:$0xff] %v2153
    %2298 = vst [vmem:[#allocation2 + $0x2a8] sm:$0xff] %v2154
    %2299 = vst [vmem:[#allocation2 + $0x2b0] sm:$0xff] %v2155
    %2300 = vst [vmem:[#allocation2 + $0x2b8] sm:$0xff] %v2156
    %2301 = vst [vmem:[#allocation2 + $0x2c0] sm:$0xff] %v2157
    %2302 = vst [vmem:[#allocation2 + $0x2c8] sm:$0xff] %v2158
    %2303 = vst [vmem:[#allocation2 + $0x2d0] sm:$0xff] %v2159
    %2304 = vst [vmem:[#allocation2 + $0x2d8] sm:$0xff] %v2160
    %2305 = vst [vmem:[#allocation2 + $0x2e0] sm:$0xff] %v2161
    %2306 = vst [vmem:[#allocation2 + $0x2e8] sm:$0xff] %v2162
    %2307 = vst [vmem:[#allocation2 + $0x2f0] sm:$0xff] %v2163
    %2308 = vst [vmem:[#allocation2 + $0x2f8] sm:$0xff] %v2164
    %2309 = vst [vmem:[#allocation2 + $0x300] sm:$0xff] %v2165
    %2310 = vst [vmem:[#allocation2 + $0x308] sm:$0xff] %v2166
    %2311 = vst [vmem:[#allocation2 + $0x310] sm:$0xff] %v2167
    %2312 = vst [vmem:[#allocation2 + $0x318] sm:$0xff] %v2168
    %2313 = vst [vmem:[#allocation2 + $0x320] sm:$0xff] %v2169
    %2314 = vst [vmem:[#allocation2 + $0x328] sm:$0xff] %v2170
    %2315 = vst [vmem:[#allocation2 + $0x330] sm:$0xff] %v2171
    %2316 = vst [vmem:[#allocation2 + $0x338] sm:$0xff] %v2172
    %2317 = vst [vmem:[#allocation2 + $0x340] sm:$0xff] %v2173
    %2318 = vst [vmem:[#allocation2 + $0x348] sm:$0xff] %v2174
    %2319 = vst [vmem:[#allocation2 + $0x350] sm:$0xff] %v2175
    %2320 = vst [vmem:[#allocation2 + $0x358] sm:$0xff] %v2176
    %2321 = vst [vmem:[#allocation2 + $0x360] sm:$0xff] %v2177
    %2322 = vst [vmem:[#allocation2 + $0x368] sm:$0xff] %v2178
    %2323 = vst [vmem:[#allocation2 + $0x370] sm:$0xff] %v2179
    %2324 = vst [vmem:[#allocation2 + $0x378] sm:$0xff] %v2180
    %2325 = vst [vmem:[#allocation2 + $0x380] sm:$0xff] %v2181
    %2326 = vst [vmem:[#allocation2 + $0x388] sm:$0xff] %v2182
    %2327 = vst [vmem:[#allocation2 + $0x390] sm:$0xff] %v2183
    %2328 = vst [vmem:[#allocation2 + $0x398] sm:$0xff] %v2184
    %2329 = vst [vmem:[#allocation2 + $0x3a0] sm:$0xff] %v2185
    %2330 = vst [vmem:[#allocation2 + $0x3a8] sm:$0xff] %v2186
    %2331 = vst [vmem:[#allocation2 + $0x3b0] sm:$0xff] %v2187
    %2332 = vst [vmem:[#allocation2 + $0x3b8] sm:$0xff] %v2188
    %2333 = vst [vmem:[#allocation2 + $0x3c0] sm:$0xff] %v2189
    %2334 = vst [vmem:[#allocation2 + $0x3c8] sm:$0xff] %v2190
    %2335 = vst [vmem:[#allocation2 + $0x3d0] sm:$0xff] %v2191
    %2336 = vst [vmem:[#allocation2 + $0x3d8] sm:$0xff] %v2192
    %2337 = vst [vmem:[#allocation2 + $0x3e0] sm:$0xff] %v2193
    %2338 = vst [vmem:[#allocation2 + $0x3e8] sm:$0xff] %v2194
    %2339 = vst [vmem:[#allocation2 + $0x3f0] sm:$0xff] %v2195
    %2340 = vst [vmem:[#allocation2 + $0x3f8] sm:$0xff] %v2196
    %2341 = vst [vmem:[#allocation2 + $0x400] sm:$0xff] %v2197
    %2342 = vst [vmem:[#allocation2 + $0x408] sm:$0xff] %v2198
    %2343 = vst [vmem:[#allocation2 + $0x410] sm:$0xff] %v2199
    %2344 = vst [vmem:[#allocation2 + $0x418] sm:$0xff] %v2200
    %2345 = vst [vmem:[#allocation2 + $0x420] sm:$0xff] %v2201
    %2346 = vst [vmem:[#allocation2 + $0x428] sm:$0xff] %v2202
    %2347 = vst [vmem:[#allocation2 + $0x430] sm:$0xff] %v2203
    %2348 = vst [vmem:[#allocation2 + $0x438] sm:$0xff] %v2204
    %2349 = vst [vmem:[#allocation2 + $0x440] sm:$0xff] %v2205
    %2350 = vst [vmem:[#allocation2 + $0x448] sm:$0xff] %v2206
    %2351 = vst [vmem:[#allocation2 + $0x450] sm:$0xff] %v2207
    %2352 = vst [vmem:[#allocation2 + $0x458] sm:$0xff] %v2208
    %2353 = vst [vmem:[#allocation2 + $0x460] sm:$0xff] %v2209
    %2354 = vst [vmem:[#allocation2 + $0x468] sm:$0xff] %v2210
    %2355 = vst [vmem:[#allocation2 + $0x470] sm:$0xff] %v2211
    %2356 = vst [vmem:[#allocation2 + $0x478] sm:$0xff] %v2212
    // Predicated region
    $region26: #{tpu_custom_call.1} parent=1 // pred_check
      %p2357 = pneg %p47
    $region27: #{tpu_custom_call.1} parent=1 // pred_check_branch
      %2359 = sbr.rel (%p2357) target = $region29
    $region28: #{tpu_custom_call.1} parent=1 // pred_region
      %v2360 = vld [vmem:[#allocation2] sm:$0xff]
      %v2361 = vld [vmem:[#allocation2 + $0x8] sm:$0xff]
      %v2362 = vld [vmem:[#allocation2 + $0x10] sm:$0xff]
      %v2363 = vld [vmem:[#allocation2 + $0x18] sm:$0xff]
      %v2364 = vld [vmem:[#allocation2 + $0x20] sm:$0xff]
      %v2365 = vld [vmem:[#allocation2 + $0x28] sm:$0xff]
      %v2366 = vld [vmem:[#allocation2 + $0x30] sm:$0xff]
      %v2367 = vld [vmem:[#allocation2 + $0x38] sm:$0xff]
      %v2368 = vld [vmem:[#allocation2 + $0x40] sm:$0xff]
      %v2369 = vld [vmem:[#allocation2 + $0x48] sm:$0xff]
      %v2370 = vld [vmem:[#allocation2 + $0x50] sm:$0xff]
      %v2371 = vld [vmem:[#allocation2 + $0x58] sm:$0xff]
      %v2372 = vld [vmem:[#allocation2 + $0x60] sm:$0xff]
      %v2373 = vld [vmem:[#allocation2 + $0x68] sm:$0xff]
      %v2374 = vld [vmem:[#allocation2 + $0x70] sm:$0xff]
      %v2375 = vld [vmem:[#allocation2 + $0x78] sm:$0xff]
      %v2376 = vld [vmem:[#allocation2 + $0x80] sm:$0xff]
      %v2377 = vld [vmem:[#allocation2 + $0x88] sm:$0xff]
      %v2378 = vld [vmem:[#allocation2 + $0x90] sm:$0xff]
      %v2379 = vld [vmem:[#allocation2 + $0x98] sm:$0xff]
      %v2380 = vld [vmem:[#allocation2 + $0xa0] sm:$0xff]
      %v2381 = vld [vmem:[#allocation2 + $0xa8] sm:$0xff]
      %v2382 = vld [vmem:[#allocation2 + $0xb0] sm:$0xff]
      %v2383 = vld [vmem:[#allocation2 + $0xb8] sm:$0xff]
      %v2384 = vld [vmem:[#allocation2 + $0xc0] sm:$0xff]
      %v2385 = vld [vmem:[#allocation2 + $0xc8] sm:$0xff]
      %v2386 = vld [vmem:[#allocation2 + $0xd0] sm:$0xff]
      %v2387 = vld [vmem:[#allocation2 + $0xd8] sm:$0xff]
      %v2388 = vld [vmem:[#allocation2 + $0xe0] sm:$0xff]
      %v2389 = vld [vmem:[#allocation2 + $0xe8] sm:$0xff]
      %v2390 = vld [vmem:[#allocation2 + $0xf0] sm:$0xff]
      %v2391 = vld [vmem:[#allocation2 + $0xf8] sm:$0xff]
      %v2392 = vld [vmem:[#allocation2 + $0x100] sm:$0xff]
      %v2393 = vld [vmem:[#allocation2 + $0x108] sm:$0xff]
      %v2394 = vld [vmem:[#allocation2 + $0x110] sm:$0xff]
      %v2395 = vld [vmem:[#allocation2 + $0x118] sm:$0xff]
      %v2396 = vld [vmem:[#allocation2 + $0x120] sm:$0xff]
      %v2397 = vld [vmem:[#allocation2 + $0x128] sm:$0xff]
      %v2398 = vld [vmem:[#allocation2 + $0x130] sm:$0xff]
      %v2399 = vld [vmem:[#allocation2 + $0x138] sm:$0xff]
      %v2400 = vld [vmem:[#allocation2 + $0x140] sm:$0xff]
      %v2401 = vld [vmem:[#allocation2 + $0x148] sm:$0xff]
      %v2402 = vld [vmem:[#allocation2 + $0x150] sm:$0xff]
      %v2403 = vld [vmem:[#allocation2 + $0x158] sm:$0xff]
      %v2404 = vld [vmem:[#allocation2 + $0x160] sm:$0xff]
      %v2405 = vld [vmem:[#allocation2 + $0x168] sm:$0xff]
      %v2406 = vld [vmem:[#allocation2 + $0x170] sm:$0xff]
      %v2407 = vld [vmem:[#allocation2 + $0x178] sm:$0xff]
      %v2408 = vld [vmem:[#allocation2 + $0x180] sm:$0xff]
      %v2409 = vld [vmem:[#allocation2 + $0x188] sm:$0xff]
      %v2410 = vld [vmem:[#allocation2 + $0x190] sm:$0xff]
      %v2411 = vld [vmem:[#allocation2 + $0x198] sm:$0xff]
      %v2412 = vld [vmem:[#allocation2 + $0x1a0] sm:$0xff]
      %v2413 = vld [vmem:[#allocation2 + $0x1a8] sm:$0xff]
      %v2414 = vld [vmem:[#allocation2 + $0x1b0] sm:$0xff]
      %v2415 = vld [vmem:[#allocation2 + $0x1b8] sm:$0xff]
      %v2416 = vld [vmem:[#allocation2 + $0x1c0] sm:$0xff]
      %v2417 = vld [vmem:[#allocation2 + $0x1c8] sm:$0xff]
      %v2418 = vld [vmem:[#allocation2 + $0x1d0] sm:$0xff]
      %v2419 = vld [vmem:[#allocation2 + $0x1d8] sm:$0xff]
      %v2420 = vld [vmem:[#allocation2 + $0x1e0] sm:$0xff]
      %v2421 = vld [vmem:[#allocation2 + $0x1e8] sm:$0xff]
      %v2422 = vld [vmem:[#allocation2 + $0x1f0] sm:$0xff]
      %v2423 = vld [vmem:[#allocation2 + $0x1f8] sm:$0xff]
      %v2424 = vld [vmem:[#allocation2 + $0x200] sm:$0xff]
      %v2425 = vld [vmem:[#allocation2 + $0x208] sm:$0xff]
      %v2426 = vld [vmem:[#allocation2 + $0x210] sm:$0xff]
      %v2427 = vld [vmem:[#allocation2 + $0x218] sm:$0xff]
      %v2428 = vld [vmem:[#allocation2 + $0x220] sm:$0xff]
      %v2429 = vld [vmem:[#allocation2 + $0x228] sm:$0xff]
      %v2430 = vld [vmem:[#allocation2 + $0x230] sm:$0xff]
      %v2431 = vld [vmem:[#allocation2 + $0x238] sm:$0xff]
      %v2432 = vld [vmem:[#allocation2 + $0x240] sm:$0xff]
      %v2433 = vld [vmem:[#allocation2 + $0x248] sm:$0xff]
      %v2434 = vld [vmem:[#allocation2 + $0x250] sm:$0xff]
      %v2435 = vld [vmem:[#allocation2 + $0x258] sm:$0xff]
      %v2436 = vld [vmem:[#allocation2 + $0x260] sm:$0xff]
      %v2437 = vld [vmem:[#allocation2 + $0x268] sm:$0xff]
      %v2438 = vld [vmem:[#allocation2 + $0x270] sm:$0xff]
      %v2439 = vld [vmem:[#allocation2 + $0x278] sm:$0xff]
      %v2440 = vld [vmem:[#allocation2 + $0x280] sm:$0xff]
      %v2441 = vld [vmem:[#allocation2 + $0x288] sm:$0xff]
      %v2442 = vld [vmem:[#allocation2 + $0x290] sm:$0xff]
      %v2443 = vld [vmem:[#allocation2 + $0x298] sm:$0xff]
      %v2444 = vld [vmem:[#allocation2 + $0x2a0] sm:$0xff]
      %v2445 = vld [vmem:[#allocation2 + $0x2a8] sm:$0xff]
      %v2446 = vld [vmem:[#allocation2 + $0x2b0] sm:$0xff]
      %v2447 = vld [vmem:[#allocation2 + $0x2b8] sm:$0xff]
      %v2448 = vld [vmem:[#allocation2 + $0x2c0] sm:$0xff]
      %v2449 = vld [vmem:[#allocation2 + $0x2c8] sm:$0xff]
      %v2450 = vld [vmem:[#allocation2 + $0x2d0] sm:$0xff]
      %v2451 = vld [vmem:[#allocation2 + $0x2d8] sm:$0xff]
      %v2452 = vld [vmem:[#allocation2 + $0x2e0] sm:$0xff]
      %v2453 = vld [vmem:[#allocation2 + $0x2e8] sm:$0xff]
      %v2454 = vld [vmem:[#allocation2 + $0x2f0] sm:$0xff]
      %v2455 = vld [vmem:[#allocation2 + $0x2f8] sm:$0xff]
      %v2456 = vld [vmem:[#allocation2 + $0x300] sm:$0xff]
      %v2457 = vld [vmem:[#allocation2 + $0x308] sm:$0xff]
      %v2458 = vld [vmem:[#allocation2 + $0x310] sm:$0xff]
      %v2459 = vld [vmem:[#allocation2 + $0x318] sm:$0xff]
      %v2460 = vld [vmem:[#allocation2 + $0x320] sm:$0xff]
      %v2461 = vld [vmem:[#allocation2 + $0x328] sm:$0xff]
      %v2462 = vld [vmem:[#allocation2 + $0x330] sm:$0xff]
      %v2463 = vld [vmem:[#allocation2 + $0x338] sm:$0xff]
      %v2464 = vld [vmem:[#allocation2 + $0x340] sm:$0xff]
      %v2465 = vld [vmem:[#allocation2 + $0x348] sm:$0xff]
      %v2466 = vld [vmem:[#allocation2 + $0x350] sm:$0xff]
      %v2467 = vld [vmem:[#allocation2 + $0x358] sm:$0xff]
      %v2468 = vld [vmem:[#allocation2 + $0x360] sm:$0xff]
      %v2469 = vld [vmem:[#allocation2 + $0x368] sm:$0xff]
      %v2470 = vld [vmem:[#allocation2 + $0x370] sm:$0xff]
      %v2471 = vld [vmem:[#allocation2 + $0x378] sm:$0xff]
      %v2472 = vld [vmem:[#allocation2 + $0x380] sm:$0xff]
      %v2473 = vld [vmem:[#allocation2 + $0x388] sm:$0xff]
      %v2474 = vld [vmem:[#allocation2 + $0x390] sm:$0xff]
      %v2475 = vld [vmem:[#allocation2 + $0x398] sm:$0xff]
      %v2476 = vld [vmem:[#allocation2 + $0x3a0] sm:$0xff]
      %v2477 = vld [vmem:[#allocation2 + $0x3a8] sm:$0xff]
      %v2478 = vld [vmem:[#allocation2 + $0x3b0] sm:$0xff]
      %v2479 = vld [vmem:[#allocation2 + $0x3b8] sm:$0xff]
      %v2480 = vld [vmem:[#allocation2 + $0x3c0] sm:$0xff]
      %v2481 = vld [vmem:[#allocation2 + $0x3c8] sm:$0xff]
      %v2482 = vld [vmem:[#allocation2 + $0x3d0] sm:$0xff]
      %v2483 = vld [vmem:[#allocation2 + $0x3d8] sm:$0xff]
      %v2484 = vld [vmem:[#allocation2 + $0x3e0] sm:$0xff]
      %v2485 = vld [vmem:[#allocation2 + $0x3e8] sm:$0xff]
      %v2486 = vld [vmem:[#allocation2 + $0x3f0] sm:$0xff]
      %v2487 = vld [vmem:[#allocation2 + $0x3f8] sm:$0xff]
      %v2488 = vld [vmem:[#allocation2 + $0x400] sm:$0xff]
      %v2489 = vld [vmem:[#allocation2 + $0x408] sm:$0xff]
      %v2490 = vld [vmem:[#allocation2 + $0x410] sm:$0xff]
      %v2491 = vld [vmem:[#allocation2 + $0x418] sm:$0xff]
      %v2492 = vld [vmem:[#allocation2 + $0x420] sm:$0xff]
      %v2493 = vld [vmem:[#allocation2 + $0x428] sm:$0xff]
      %v2494 = vld [vmem:[#allocation2 + $0x430] sm:$0xff]
      %v2495 = vld [vmem:[#allocation2 + $0x438] sm:$0xff]
      %v2496 = vld [vmem:[#allocation2 + $0x440] sm:$0xff]
      %v2497 = vld [vmem:[#allocation2 + $0x448] sm:$0xff]
      %v2498 = vld [vmem:[#allocation2 + $0x450] sm:$0xff]
      %v2499 = vld [vmem:[#allocation2 + $0x458] sm:$0xff]
      %v2500 = vld [vmem:[#allocation2 + $0x460] sm:$0xff]
      %v2501 = vld [vmem:[#allocation2 + $0x468] sm:$0xff]
      %v2502 = vld [vmem:[#allocation2 + $0x470] sm:$0xff]
      %v2503 = vld [vmem:[#allocation2 + $0x478] sm:$0xff]
      %v2504 = vld [vmem:[%s2] sm:$0x1]
      %v2506 = vperm.slane %v2504, 0
      %v2508 = vadd.f32 %v2360, %v2506
      %v2509 = vadd.f32 %v2361, %v2506
      %v2510 = vadd.f32 %v2362, %v2506
      %v2511 = vadd.f32 %v2363, %v2506
      %v2512 = vadd.f32 %v2364, %v2506
      %v2513 = vadd.f32 %v2365, %v2506
      %v2514 = vadd.f32 %v2366, %v2506
      %v2515 = vadd.f32 %v2367, %v2506
      %v2516 = vadd.f32 %v2368, %v2506
      %v2517 = vadd.f32 %v2369, %v2506
      %v2518 = vadd.f32 %v2370, %v2506
      %v2519 = vadd.f32 %v2371, %v2506
      %v2520 = vadd.f32 %v2372, %v2506
      %v2521 = vadd.f32 %v2373, %v2506
      %v2522 = vadd.f32 %v2374, %v2506
      %v2523 = vadd.f32 %v2375, %v2506
      %v2524 = vadd.f32 %v2376, %v2506
      %v2525 = vadd.f32 %v2377, %v2506
      %v2526 = vadd.f32 %v2378, %v2506
      %v2527 = vadd.f32 %v2379, %v2506
      %v2528 = vadd.f32 %v2380, %v2506
      %v2529 = vadd.f32 %v2381, %v2506
      %v2530 = vadd.f32 %v2382, %v2506
      %v2531 = vadd.f32 %v2383, %v2506
      %v2532 = vadd.f32 %v2384, %v2506
      %v2533 = vadd.f32 %v2385, %v2506
      %v2534 = vadd.f32 %v2386, %v2506
      %v2535 = vadd.f32 %v2387, %v2506
      %v2536 = vadd.f32 %v2388, %v2506
      %v2537 = vadd.f32 %v2389, %v2506
      %v2538 = vadd.f32 %v2390, %v2506
      %v2539 = vadd.f32 %v2391, %v2506
      %v2540 = vadd.f32 %v2392, %v2506
      %v2541 = vadd.f32 %v2393, %v2506
      %v2542 = vadd.f32 %v2394, %v2506
      %v2543 = vadd.f32 %v2395, %v2506
      %v2544 = vadd.f32 %v2396, %v2506
      %v2545 = vadd.f32 %v2397, %v2506
      %v2546 = vadd.f32 %v2398, %v2506
      %v2547 = vadd.f32 %v2399, %v2506
      %v2548 = vadd.f32 %v2400, %v2506
      %v2549 = vadd.f32 %v2401, %v2506
      %v2550 = vadd.f32 %v2402, %v2506
      %v2551 = vadd.f32 %v2403, %v2506
      %v2552 = vadd.f32 %v2404, %v2506
      %v2553 = vadd.f32 %v2405, %v2506
      %v2554 = vadd.f32 %v2406, %v2506
      %v2555 = vadd.f32 %v2407, %v2506
      %v2556 = vadd.f32 %v2408, %v2506
      %v2557 = vadd.f32 %v2409, %v2506
      %v2558 = vadd.f32 %v2410, %v2506
      %v2559 = vadd.f32 %v2411, %v2506
      %v2560 = vadd.f32 %v2412, %v2506
      %v2561 = vadd.f32 %v2413, %v2506
      %v2562 = vadd.f32 %v2414, %v2506
      %v2563 = vadd.f32 %v2415, %v2506
      %v2564 = vadd.f32 %v2416, %v2506
      %v2565 = vadd.f32 %v2417, %v2506
      %v2566 = vadd.f32 %v2418, %v2506
      %v2567 = vadd.f32 %v2419, %v2506
      %v2568 = vadd.f32 %v2420, %v2506
      %v2569 = vadd.f32 %v2421, %v2506
      %v2570 = vadd.f32 %v2422, %v2506
      %v2571 = vadd.f32 %v2423, %v2506
      %v2572 = vadd.f32 %v2424, %v2506
      %v2573 = vadd.f32 %v2425, %v2506
      %v2574 = vadd.f32 %v2426, %v2506
      %v2575 = vadd.f32 %v2427, %v2506
      %v2576 = vadd.f32 %v2428, %v2506
      %v2577 = vadd.f32 %v2429, %v2506
      %v2578 = vadd.f32 %v2430, %v2506
      %v2579 = vadd.f32 %v2431, %v2506
      %v2580 = vadd.f32 %v2432, %v2506
      %v2581 = vadd.f32 %v2433, %v2506
      %v2582 = vadd.f32 %v2434, %v2506
      %v2583 = vadd.f32 %v2435, %v2506
      %v2584 = vadd.f32 %v2436, %v2506
      %v2585 = vadd.f32 %v2437, %v2506
      %v2586 = vadd.f32 %v2438, %v2506
      %v2587 = vadd.f32 %v2439, %v2506
      %v2588 = vadd.f32 %v2440, %v2506
      %v2589 = vadd.f32 %v2441, %v2506
      %v2590 = vadd.f32 %v2442, %v2506
      %v2591 = vadd.f32 %v2443, %v2506
      %v2592 = vadd.f32 %v2444, %v2506
      %v2593 = vadd.f32 %v2445, %v2506
      %v2594 = vadd.f32 %v2446, %v2506
      %v2595 = vadd.f32 %v2447, %v2506
      %v2596 = vadd.f32 %v2448, %v2506
      %v2597 = vadd.f32 %v2449, %v2506
      %v2598 = vadd.f32 %v2450, %v2506
      %v2599 = vadd.f32 %v2451, %v2506
      %v2600 = vadd.f32 %v2452, %v2506
      %v2601 = vadd.f32 %v2453, %v2506
      %v2602 = vadd.f32 %v2454, %v2506
      %v2603 = vadd.f32 %v2455, %v2506
      %v2604 = vadd.f32 %v2456, %v2506
      %v2605 = vadd.f32 %v2457, %v2506
      %v2606 = vadd.f32 %v2458, %v2506
      %v2607 = vadd.f32 %v2459, %v2506
      %v2608 = vadd.f32 %v2460, %v2506
      %v2609 = vadd.f32 %v2461, %v2506
      %v2610 = vadd.f32 %v2462, %v2506
      %v2611 = vadd.f32 %v2463, %v2506
      %v2612 = vadd.f32 %v2464, %v2506
      %v2613 = vadd.f32 %v2465, %v2506
      %v2614 = vadd.f32 %v2466, %v2506
      %v2615 = vadd.f32 %v2467, %v2506
      %v2616 = vadd.f32 %v2468, %v2506
      %v2617 = vadd.f32 %v2469, %v2506
      %v2618 = vadd.f32 %v2470, %v2506
      %v2619 = vadd.f32 %v2471, %v2506
      %v2620 = vadd.f32 %v2472, %v2506
      %v2621 = vadd.f32 %v2473, %v2506
      %v2622 = vadd.f32 %v2474, %v2506
      %v2623 = vadd.f32 %v2475, %v2506
      %v2624 = vadd.f32 %v2476, %v2506
      %v2625 = vadd.f32 %v2477, %v2506
      %v2626 = vadd.f32 %v2478, %v2506
      %v2627 = vadd.f32 %v2479, %v2506
      %v2628 = vadd.f32 %v2480, %v2506
      %v2629 = vadd.f32 %v2481, %v2506
      %v2630 = vadd.f32 %v2482, %v2506
      %v2631 = vadd.f32 %v2483, %v2506
      %v2632 = vadd.f32 %v2484, %v2506
      %v2633 = vadd.f32 %v2485, %v2506
      %v2634 = vadd.f32 %v2486, %v2506
      %v2635 = vadd.f32 %v2487, %v2506
      %v2636 = vadd.f32 %v2488, %v2506
      %v2637 = vadd.f32 %v2489, %v2506
      %v2638 = vadd.f32 %v2490, %v2506
      %v2639 = vadd.f32 %v2491, %v2506
      %v2640 = vadd.f32 %v2492, %v2506
      %v2641 = vadd.f32 %v2493, %v2506
      %v2642 = vadd.f32 %v2494, %v2506
      %v2643 = vadd.f32 %v2495, %v2506
      %v2644 = vadd.f32 %v2496, %v2506
      %v2645 = vadd.f32 %v2497, %v2506
      %v2646 = vadd.f32 %v2498, %v2506
      %v2647 = vadd.f32 %v2499, %v2506
      %v2648 = vadd.f32 %v2500, %v2506
      %v2649 = vadd.f32 %v2501, %v2506
      %v2650 = vadd.f32 %v2502, %v2506
      %v2651 = vadd.f32 %v2503, %v2506
      %v2652 = vmax.f32 %v2508, 0.0
      %v2653 = vmax.f32 %v2509, 0.0
      %v2654 = vmax.f32 %v2510, 0.0
      %v2655 = vmax.f32 %v2511, 0.0
      %v2656 = vmax.f32 %v2512, 0.0
      %v2657 = vmax.f32 %v2513, 0.0
      %v2658 = vmax.f32 %v2514, 0.0
      %v2659 = vmax.f32 %v2515, 0.0
      %v2660 = vmax.f32 %v2516, 0.0
      %v2661 = vmax.f32 %v2517, 0.0
      %v2662 = vmax.f32 %v2518, 0.0
      %v2663 = vmax.f32 %v2519, 0.0
      %v2664 = vmax.f32 %v2520, 0.0
      %v2665 = vmax.f32 %v2521, 0.0
      %v2666 = vmax.f32 %v2522, 0.0
      %v2667 = vmax.f32 %v2523, 0.0
      %v2668 = vmax.f32 %v2524, 0.0
      %v2669 = vmax.f32 %v2525, 0.0
      %v2670 = vmax.f32 %v2526, 0.0
      %v2671 = vmax.f32 %v2527, 0.0
      %v2672 = vmax.f32 %v2528, 0.0
      %v2673 = vmax.f32 %v2529, 0.0
      %v2674 = vmax.f32 %v2530, 0.0
      %v2675 = vmax.f32 %v2531, 0.0
      %v2676 = vmax.f32 %v2532, 0.0
      %v2677 = vmax.f32 %v2533, 0.0
      %v2678 = vmax.f32 %v2534, 0.0
      %v2679 = vmax.f32 %v2535, 0.0
      %v2680 = vmax.f32 %v2536, 0.0
      %v2681 = vmax.f32 %v2537, 0.0
      %v2682 = vmax.f32 %v2538, 0.0
      %v2683 = vmax.f32 %v2539, 0.0
      %v2684 = vmax.f32 %v2540, 0.0
      %v2685 = vmax.f32 %v2541, 0.0
      %v2686 = vmax.f32 %v2542, 0.0
      %v2687 = vmax.f32 %v2543, 0.0
      %v2688 = vmax.f32 %v2544, 0.0
      %v2689 = vmax.f32 %v2545, 0.0
      %v2690 = vmax.f32 %v2546, 0.0
      %v2691 = vmax.f32 %v2547, 0.0
      %v2692 = vmax.f32 %v2548, 0.0
      %v2693 = vmax.f32 %v2549, 0.0
      %v2694 = vmax.f32 %v2550, 0.0
      %v2695 = vmax.f32 %v2551, 0.0
      %v2696 = vmax.f32 %v2552, 0.0
      %v2697 = vmax.f32 %v2553, 0.0
      %v2698 = vmax.f32 %v2554, 0.0
      %v2699 = vmax.f32 %v2555, 0.0
      %v2700 = vmax.f32 %v2556, 0.0
      %v2701 = vmax.f32 %v2557, 0.0
      %v2702 = vmax.f32 %v2558, 0.0
      %v2703 = vmax.f32 %v2559, 0.0
      %v2704 = vmax.f32 %v2560, 0.0
      %v2705 = vmax.f32 %v2561, 0.0
      %v2706 = vmax.f32 %v2562, 0.0
      %v2707 = vmax.f32 %v2563, 0.0
      %v2708 = vmax.f32 %v2564, 0.0
      %v2709 = vmax.f32 %v2565, 0.0
      %v2710 = vmax.f32 %v2566, 0.0
      %v2711 = vmax.f32 %v2567, 0.0
      %v2712 = vmax.f32 %v2568, 0.0
      %v2713 = vmax.f32 %v2569, 0.0
      %v2714 = vmax.f32 %v2570, 0.0
      %v2715 = vmax.f32 %v2571, 0.0
      %v2716 = vmax.f32 %v2572, 0.0
      %v2717 = vmax.f32 %v2573, 0.0
      %v2718 = vmax.f32 %v2574, 0.0
      %v2719 = vmax.f32 %v2575, 0.0
      %v2720 = vmax.f32 %v2576, 0.0
      %v2721 = vmax.f32 %v2577, 0.0
      %v2722 = vmax.f32 %v2578, 0.0
      %v2723 = vmax.f32 %v2579, 0.0
      %v2724 = vmax.f32 %v2580, 0.0
      %v2725 = vmax.f32 %v2581, 0.0
      %v2726 = vmax.f32 %v2582, 0.0
      %v2727 = vmax.f32 %v2583, 0.0
      %v2728 = vmax.f32 %v2584, 0.0
      %v2729 = vmax.f32 %v2585, 0.0
      %v2730 = vmax.f32 %v2586, 0.0
      %v2731 = vmax.f32 %v2587, 0.0
      %v2732 = vmax.f32 %v2588, 0.0
      %v2733 = vmax.f32 %v2589, 0.0
      %v2734 = vmax.f32 %v2590, 0.0
      %v2735 = vmax.f32 %v2591, 0.0
      %v2736 = vmax.f32 %v2592, 0.0
      %v2737 = vmax.f32 %v2593, 0.0
      %v2738 = vmax.f32 %v2594, 0.0
      %v2739 = vmax.f32 %v2595, 0.0
      %v2740 = vmax.f32 %v2596, 0.0
      %v2741 = vmax.f32 %v2597, 0.0
      %v2742 = vmax.f32 %v2598, 0.0
      %v2743 = vmax.f32 %v2599, 0.0
      %v2744 = vmax.f32 %v2600, 0.0
      %v2745 = vmax.f32 %v2601, 0.0
      %v2746 = vmax.f32 %v2602, 0.0
      %v2747 = vmax.f32 %v2603, 0.0
      %v2748 = vmax.f32 %v2604, 0.0
      %v2749 = vmax.f32 %v2605, 0.0
      %v2750 = vmax.f32 %v2606, 0.0
      %v2751 = vmax.f32 %v2607, 0.0
      %v2752 = vmax.f32 %v2608, 0.0
      %v2753 = vmax.f32 %v2609, 0.0
      %v2754 = vmax.f32 %v2610, 0.0
      %v2755 = vmax.f32 %v2611, 0.0
      %v2756 = vmax.f32 %v2612, 0.0
      %v2757 = vmax.f32 %v2613, 0.0
      %v2758 = vmax.f32 %v2614, 0.0
      %v2759 = vmax.f32 %v2615, 0.0
      %v2760 = vmax.f32 %v2616, 0.0
      %v2761 = vmax.f32 %v2617, 0.0
      %v2762 = vmax.f32 %v2618, 0.0
      %v2763 = vmax.f32 %v2619, 0.0
      %v2764 = vmax.f32 %v2620, 0.0
      %v2765 = vmax.f32 %v2621, 0.0
      %v2766 = vmax.f32 %v2622, 0.0
      %v2767 = vmax.f32 %v2623, 0.0
      %v2768 = vmax.f32 %v2624, 0.0
      %v2769 = vmax.f32 %v2625, 0.0
      %v2770 = vmax.f32 %v2626, 0.0
      %v2771 = vmax.f32 %v2627, 0.0
      %v2772 = vmax.f32 %v2628, 0.0
      %v2773 = vmax.f32 %v2629, 0.0
      %v2774 = vmax.f32 %v2630, 0.0
      %v2775 = vmax.f32 %v2631, 0.0
      %v2776 = vmax.f32 %v2632, 0.0
      %v2777 = vmax.f32 %v2633, 0.0
      %v2778 = vmax.f32 %v2634, 0.0
      %v2779 = vmax.f32 %v2635, 0.0
      %v2780 = vmax.f32 %v2636, 0.0
      %v2781 = vmax.f32 %v2637, 0.0
      %v2782 = vmax.f32 %v2638, 0.0
      %v2783 = vmax.f32 %v2639, 0.0
      %v2784 = vmax.f32 %v2640, 0.0
      %v2785 = vmax.f32 %v2641, 0.0
      %v2786 = vmax.f32 %v2642, 0.0
      %v2787 = vmax.f32 %v2643, 0.0
      %v2788 = vmax.f32 %v2644, 0.0
      %v2789 = vmax.f32 %v2645, 0.0
      %v2790 = vmax.f32 %v2646, 0.0
      %v2791 = vmax.f32 %v2647, 0.0
      %v2792 = vmax.f32 %v2648, 0.0
      %v2793 = vmax.f32 %v2649, 0.0
      %v2794 = vmax.f32 %v2650, 0.0
      %v2795 = vmax.f32 %v2651, 0.0
      %v2796 = vpack.c.bf16 %v2652, %v2652
      %v2797 = vpack.c.bf16 %v2653, %v2653
      %v2798 = vpack.c.bf16 %v2654, %v2654
      %v2799 = vpack.c.bf16 %v2655, %v2655
      %v2800 = vpack.c.bf16 %v2656, %v2656
      %v2801 = vpack.c.bf16 %v2657, %v2657
      %v2802 = vpack.c.bf16 %v2658, %v2658
      %v2803 = vpack.c.bf16 %v2659, %v2659
      %v2804 = vpack.c.bf16 %v2660, %v2660
      %v2805 = vpack.c.bf16 %v2661, %v2661
      %v2806 = vpack.c.bf16 %v2662, %v2662
      %v2807 = vpack.c.bf16 %v2663, %v2663
      %v2808 = vpack.c.bf16 %v2664, %v2664
      %v2809 = vpack.c.bf16 %v2665, %v2665
      %v2810 = vpack.c.bf16 %v2666, %v2666
      %v2811 = vpack.c.bf16 %v2667, %v2667
      %v2812 = vpack.c.bf16 %v2668, %v2668
      %v2813 = vpack.c.bf16 %v2669, %v2669
      %v2814 = vpack.c.bf16 %v2670, %v2670
      %v2815 = vpack.c.bf16 %v2671, %v2671
      %v2816 = vpack.c.bf16 %v2672, %v2672
      %v2817 = vpack.c.bf16 %v2673, %v2673
      %v2818 = vpack.c.bf16 %v2674, %v2674
      %v2819 = vpack.c.bf16 %v2675, %v2675
      %v2820 = vpack.c.bf16 %v2676, %v2676
      %v2821 = vpack.c.bf16 %v2677, %v2677
      %v2822 = vpack.c.bf16 %v2678, %v2678
      %v2823 = vpack.c.bf16 %v2679, %v2679
      %v2824 = vpack.c.bf16 %v2680, %v2680
      %v2825 = vpack.c.bf16 %v2681, %v2681
      %v2826 = vpack.c.bf16 %v2682, %v2682
      %v2827 = vpack.c.bf16 %v2683, %v2683
      %v2828 = vpack.c.bf16 %v2684, %v2684
      %v2829 = vpack.c.bf16 %v2685, %v2685
      %v2830 = vpack.c.bf16 %v2686, %v2686
      %v2831 = vpack.c.bf16 %v2687, %v2687
      %v2832 = vpack.c.bf16 %v2688, %v2688
      %v2833 = vpack.c.bf16 %v2689, %v2689
      %v2834 = vpack.c.bf16 %v2690, %v2690
      %v2835 = vpack.c.bf16 %v2691, %v2691
      %v2836 = vpack.c.bf16 %v2692, %v2692
      %v2837 = vpack.c.bf16 %v2693, %v2693
      %v2838 = vpack.c.bf16 %v2694, %v2694
      %v2839 = vpack.c.bf16 %v2695, %v2695
      %v2840 = vpack.c.bf16 %v2696, %v2696
      %v2841 = vpack.c.bf16 %v2697, %v2697
      %v2842 = vpack.c.bf16 %v2698, %v2698
      %v2843 = vpack.c.bf16 %v2699, %v2699
      %v2844 = vpack.c.bf16 %v2700, %v2700
      %v2845 = vpack.c.bf16 %v2701, %v2701
      %v2846 = vpack.c.bf16 %v2702, %v2702
      %v2847 = vpack.c.bf16 %v2703, %v2703
      %v2848 = vpack.c.bf16 %v2704, %v2704
      %v2849 = vpack.c.bf16 %v2705, %v2705
      %v2850 = vpack.c.bf16 %v2706, %v2706
      %v2851 = vpack.c.bf16 %v2707, %v2707
      %v2852 = vpack.c.bf16 %v2708, %v2708
      %v2853 = vpack.c.bf16 %v2709, %v2709
      %v2854 = vpack.c.bf16 %v2710, %v2710
      %v2855 = vpack.c.bf16 %v2711, %v2711
      %v2856 = vpack.c.bf16 %v2712, %v2712
      %v2857 = vpack.c.bf16 %v2713, %v2713
      %v2858 = vpack.c.bf16 %v2714, %v2714
      %v2859 = vpack.c.bf16 %v2715, %v2715
      %v2860 = vpack.c.bf16 %v2716, %v2716
      %v2861 = vpack.c.bf16 %v2717, %v2717
      %v2862 = vpack.c.bf16 %v2718, %v2718
      %v2863 = vpack.c.bf16 %v2719, %v2719
      %v2864 = vpack.c.bf16 %v2720, %v2720
      %v2865 = vpack.c.bf16 %v2721, %v2721
      %v2866 = vpack.c.bf16 %v2722, %v2722
      %v2867 = vpack.c.bf16 %v2723, %v2723
      %v2868 = vpack.c.bf16 %v2724, %v2724
      %v2869 = vpack.c.bf16 %v2725, %v2725
      %v2870 = vpack.c.bf16 %v2726, %v2726
      %v2871 = vpack.c.bf16 %v2727, %v2727
      %v2872 = vpack.c.bf16 %v2728, %v2728
      %v2873 = vpack.c.bf16 %v2729, %v2729
      %v2874 = vpack.c.bf16 %v2730, %v2730
      %v2875 = vpack.c.bf16 %v2731, %v2731
      %v2876 = vpack.c.bf16 %v2732, %v2732
      %v2877 = vpack.c.bf16 %v2733, %v2733
      %v2878 = vpack.c.bf16 %v2734, %v2734
      %v2879 = vpack.c.bf16 %v2735, %v2735
      %v2880 = vpack.c.bf16 %v2736, %v2736
      %v2881 = vpack.c.bf16 %v2737, %v2737
      %v2882 = vpack.c.bf16 %v2738, %v2738
      %v2883 = vpack.c.bf16 %v2739, %v2739
      %v2884 = vpack.c.bf16 %v2740, %v2740
      %v2885 = vpack.c.bf16 %v2741, %v2741
      %v2886 = vpack.c.bf16 %v2742, %v2742
      %v2887 = vpack.c.bf16 %v2743, %v2743
      %v2888 = vpack.c.bf16 %v2744, %v2744
      %v2889 = vpack.c.bf16 %v2745, %v2745
      %v2890 = vpack.c.bf16 %v2746, %v2746
      %v2891 = vpack.c.bf16 %v2747, %v2747
      %v2892 = vpack.c.bf16 %v2748, %v2748
      %v2893 = vpack.c.bf16 %v2749, %v2749
      %v2894 = vpack.c.bf16 %v2750, %v2750
      %v2895 = vpack.c.bf16 %v2751, %v2751
      %v2896 = vpack.c.bf16 %v2752, %v2752
      %v2897 = vpack.c.bf16 %v2753, %v2753
      %v2898 = vpack.c.bf16 %v2754, %v2754
      %v2899 = vpack.c.bf16 %v2755, %v2755
      %v2900 = vpack.c.bf16 %v2756, %v2756
      %v2901 = vpack.c.bf16 %v2757, %v2757
      %v2902 = vpack.c.bf16 %v2758, %v2758
      %v2903 = vpack.c.bf16 %v2759, %v2759
      %v2904 = vpack.c.bf16 %v2760, %v2760
      %v2905 = vpack.c.bf16 %v2761, %v2761
      %v2906 = vpack.c.bf16 %v2762, %v2762
      %v2907 = vpack.c.bf16 %v2763, %v2763
      %v2908 = vpack.c.bf16 %v2764, %v2764
      %v2909 = vpack.c.bf16 %v2765, %v2765
      %v2910 = vpack.c.bf16 %v2766, %v2766
      %v2911 = vpack.c.bf16 %v2767, %v2767
      %v2912 = vpack.c.bf16 %v2768, %v2768
      %v2913 = vpack.c.bf16 %v2769, %v2769
      %v2914 = vpack.c.bf16 %v2770, %v2770
      %v2915 = vpack.c.bf16 %v2771, %v2771
      %v2916 = vpack.c.bf16 %v2772, %v2772
      %v2917 = vpack.c.bf16 %v2773, %v2773
      %v2918 = vpack.c.bf16 %v2774, %v2774
      %v2919 = vpack.c.bf16 %v2775, %v2775
      %v2920 = vpack.c.bf16 %v2776, %v2776
      %v2921 = vpack.c.bf16 %v2777, %v2777
      %v2922 = vpack.c.bf16 %v2778, %v2778
      %v2923 = vpack.c.bf16 %v2779, %v2779
      %v2924 = vpack.c.bf16 %v2780, %v2780
      %v2925 = vpack.c.bf16 %v2781, %v2781
      %v2926 = vpack.c.bf16 %v2782, %v2782
      %v2927 = vpack.c.bf16 %v2783, %v2783
      %v2928 = vpack.c.bf16 %v2784, %v2784
      %v2929 = vpack.c.bf16 %v2785, %v2785
      %v2930 = vpack.c.bf16 %v2786, %v2786
      %v2931 = vpack.c.bf16 %v2787, %v2787
      %v2932 = vpack.c.bf16 %v2788, %v2788
      %v2933 = vpack.c.bf16 %v2789, %v2789
      %v2934 = vpack.c.bf16 %v2790, %v2790
      %v2935 = vpack.c.bf16 %v2791, %v2791
      %v2936 = vpack.c.bf16 %v2792, %v2792
      %v2937 = vpack.c.bf16 %v2793, %v2793
      %v2938 = vpack.c.bf16 %v2794, %v2794
      %v2939 = vpack.c.bf16 %v2795, %v2795
      %2940 = vst [vmem:[#allocation8] sm:$0xf] %v2796
      %2941 = vst [vmem:[#allocation8 + $0x4] sm:$0xf] %v2797
      %2942 = vst [vmem:[#allocation8 + $0x8] sm:$0xf] %v2798
      %2943 = vst [vmem:[#allocation8 + $0xc] sm:$0xf] %v2799
      %2944 = vst [vmem:[#allocation8 + $0x10] sm:$0xf] %v2800
      %2945 = vst [vmem:[#allocation8 + $0x14] sm:$0xf] %v2801
      %2946 = vst [vmem:[#allocation8 + $0x18] sm:$0xf] %v2802
      %2947 = vst [vmem:[#allocation8 + $0x1c] sm:$0xf] %v2803
      %2948 = vst [vmem:[#allocation8 + $0x20] sm:$0xf] %v2804
      %2949 = vst [vmem:[#allocation8 + $0x24] sm:$0xf] %v2805
      %2950 = vst [vmem:[#allocation8 + $0x28] sm:$0xf] %v2806
      %2951 = vst [vmem:[#allocation8 + $0x2c] sm:$0xf] %v2807
      %2952 = vst [vmem:[#allocation8 + $0x30] sm:$0xf] %v2808
      %2953 = vst [vmem:[#allocation8 + $0x34] sm:$0xf] %v2809
      %2954 = vst [vmem:[#allocation8 + $0x38] sm:$0xf] %v2810
      %2955 = vst [vmem:[#allocation8 + $0x3c] sm:$0xf] %v2811
      %2956 = vst [vmem:[#allocation8 + $0x40] sm:$0xf] %v2812
      %2957 = vst [vmem:[#allocation8 + $0x44] sm:$0xf] %v2813
      %2958 = vst [vmem:[#allocation8 + $0x48] sm:$0xf] %v2814
      %2959 = vst [vmem:[#allocation8 + $0x4c] sm:$0xf] %v2815
      %2960 = vst [vmem:[#allocation8 + $0x50] sm:$0xf] %v2816
      %2961 = vst [vmem:[#allocation8 + $0x54] sm:$0xf] %v2817
      %2962 = vst [vmem:[#allocation8 + $0x58] sm:$0xf] %v2818
      %2963 = vst [vmem:[#allocation8 + $0x5c] sm:$0xf] %v2819
      %2964 = vst [vmem:[#allocation8 + $0x60] sm:$0xf] %v2820
      %2965 = vst [vmem:[#allocation8 + $0x64] sm:$0xf] %v2821
      %2966 = vst [vmem:[#allocation8 + $0x68] sm:$0xf] %v2822
      %2967 = vst [vmem:[#allocation8 + $0x6c] sm:$0xf] %v2823
      %2968 = vst [vmem:[#allocation8 + $0x70] sm:$0xf] %v2824
      %2969 = vst [vmem:[#allocation8 + $0x74] sm:$0xf] %v2825
      %2970 = vst [vmem:[#allocation8 + $0x78] sm:$0xf] %v2826
      %2971 = vst [vmem:[#allocation8 + $0x7c] sm:$0xf] %v2827
      %2972 = vst [vmem:[#allocation8 + $0x80] sm:$0xf] %v2828
      %2973 = vst [vmem:[#allocation8 + $0x84] sm:$0xf] %v2829
      %2974 = vst [vmem:[#allocation8 + $0x88] sm:$0xf] %v2830
      %2975 = vst [vmem:[#allocation8 + $0x8c] sm:$0xf] %v2831
      %2976 = vst [vmem:[#allocation8 + $0x90] sm:$0xf] %v2832
      %2977 = vst [vmem:[#allocation8 + $0x94] sm:$0xf] %v2833
      %2978 = vst [vmem:[#allocation8 + $0x98] sm:$0xf] %v2834
      %2979 = vst [vmem:[#allocation8 + $0x9c] sm:$0xf] %v2835
      %2980 = vst [vmem:[#allocation8 + $0xa0] sm:$0xf] %v2836
      %2981 = vst [vmem:[#allocation8 + $0xa4] sm:$0xf] %v2837
      %2982 = vst [vmem:[#allocation8 + $0xa8] sm:$0xf] %v2838
      %2983 = vst [vmem:[#allocation8 + $0xac] sm:$0xf] %v2839
      %2984 = vst [vmem:[#allocation8 + $0xb0] sm:$0xf] %v2840
      %2985 = vst [vmem:[#allocation8 + $0xb4] sm:$0xf] %v2841
      %2986 = vst [vmem:[#allocation8 + $0xb8] sm:$0xf] %v2842
      %2987 = vst [vmem:[#allocation8 + $0xbc] sm:$0xf] %v2843
      %2988 = vst [vmem:[#allocation8 + $0xc0] sm:$0xf] %v2844
      %2989 = vst [vmem:[#allocation8 + $0xc4] sm:$0xf] %v2845
      %2990 = vst [vmem:[#allocation8 + $0xc8] sm:$0xf] %v2846
      %2991 = vst [vmem:[#allocation8 + $0xcc] sm:$0xf] %v2847
      %2992 = vst [vmem:[#allocation8 + $0xd0] sm:$0xf] %v2848
      %2993 = vst [vmem:[#allocation8 + $0xd4] sm:$0xf] %v2849
      %2994 = vst [vmem:[#allocation8 + $0xd8] sm:$0xf] %v2850
      %2995 = vst [vmem:[#allocation8 + $0xdc] sm:$0xf] %v2851
      %2996 = vst [vmem:[#allocation8 + $0xe0] sm:$0xf] %v2852
      %2997 = vst [vmem:[#allocation8 + $0xe4] sm:$0xf] %v2853
      %2998 = vst [vmem:[#allocation8 + $0xe8] sm:$0xf] %v2854
      %2999 = vst [vmem:[#allocation8 + $0xec] sm:$0xf] %v2855
      %3000 = vst [vmem:[#allocation8 + $0xf0] sm:$0xf] %v2856
      %3001 = vst [vmem:[#allocation8 + $0xf4] sm:$0xf] %v2857
      %3002 = vst [vmem:[#allocation8 + $0xf8] sm:$0xf] %v2858
      %3003 = vst [vmem:[#allocation8 + $0xfc] sm:$0xf] %v2859
      %3004 = vst [vmem:[#allocation8 + $0x100] sm:$0xf] %v2860
      %3005 = vst [vmem:[#allocation8 + $0x104] sm:$0xf] %v2861
      %3006 = vst [vmem:[#allocation8 + $0x108] sm:$0xf] %v2862
      %3007 = vst [vmem:[#allocation8 + $0x10c] sm:$0xf] %v2863
      %3008 = vst [vmem:[#allocation8 + $0x110] sm:$0xf] %v2864
      %3009 = vst [vmem:[#allocation8 + $0x114] sm:$0xf] %v2865
      %3010 = vst [vmem:[#allocation8 + $0x118] sm:$0xf] %v2866
      %3011 = vst [vmem:[#allocation8 + $0x11c] sm:$0xf] %v2867
      %3012 = vst [vmem:[#allocation8 + $0x120] sm:$0xf] %v2868
      %3013 = vst [vmem:[#allocation8 + $0x124] sm:$0xf] %v2869
      %3014 = vst [vmem:[#allocation8 + $0x128] sm:$0xf] %v2870
      %3015 = vst [vmem:[#allocation8 + $0x12c] sm:$0xf] %v2871
      %3016 = vst [vmem:[#allocation8 + $0x130] sm:$0xf] %v2872
      %3017 = vst [vmem:[#allocation8 + $0x134] sm:$0xf] %v2873
      %3018 = vst [vmem:[#allocation8 + $0x138] sm:$0xf] %v2874
      %3019 = vst [vmem:[#allocation8 + $0x13c] sm:$0xf] %v2875
      %3020 = vst [vmem:[#allocation8 + $0x140] sm:$0xf] %v2876
      %3021 = vst [vmem:[#allocation8 + $0x144] sm:$0xf] %v2877
      %3022 = vst [vmem:[#allocation8 + $0x148] sm:$0xf] %v2878
      %3023 = vst [vmem:[#allocation8 + $0x14c] sm:$0xf] %v2879
      %3024 = vst [vmem:[#allocation8 + $0x150] sm:$0xf] %v2880
      %3025 = vst [vmem:[#allocation8 + $0x154] sm:$0xf] %v2881
      %3026 = vst [vmem:[#allocation8 + $0x158] sm:$0xf] %v2882
      %3027 = vst [vmem:[#allocation8 + $0x15c] sm:$0xf] %v2883
      %3028 = vst [vmem:[#allocation8 + $0x160] sm:$0xf] %v2884
      %3029 = vst [vmem:[#allocation8 + $0x164] sm:$0xf] %v2885
      %3030 = vst [vmem:[#allocation8 + $0x168] sm:$0xf] %v2886
      %3031 = vst [vmem:[#allocation8 + $0x16c] sm:$0xf] %v2887
      %3032 = vst [vmem:[#allocation8 + $0x170] sm:$0xf] %v2888
      %3033 = vst [vmem:[#allocation8 + $0x174] sm:$0xf] %v2889
      %3034 = vst [vmem:[#allocation8 + $0x178] sm:$0xf] %v2890
      %3035 = vst [vmem:[#allocation8 + $0x17c] sm:$0xf] %v2891
      %3036 = vst [vmem:[#allocation8 + $0x180] sm:$0xf] %v2892
      %3037 = vst [vmem:[#allocation8 + $0x184] sm:$0xf] %v2893
      %3038 = vst [vmem:[#allocation8 + $0x188] sm:$0xf] %v2894
      %3039 = vst [vmem:[#allocation8 + $0x18c] sm:$0xf] %v2895
      %3040 = vst [vmem:[#allocation8 + $0x190] sm:$0xf] %v2896
      %3041 = vst [vmem:[#allocation8 + $0x194] sm:$0xf] %v2897
      %3042 = vst [vmem:[#allocation8 + $0x198] sm:$0xf] %v2898
      %3043 = vst [vmem:[#allocation8 + $0x19c] sm:$0xf] %v2899
      %3044 = vst [vmem:[#allocation8 + $0x1a0] sm:$0xf] %v2900
      %3045 = vst [vmem:[#allocation8 + $0x1a4] sm:$0xf] %v2901
      %3046 = vst [vmem:[#allocation8 + $0x1a8] sm:$0xf] %v2902
      %3047 = vst [vmem:[#allocation8 + $0x1ac] sm:$0xf] %v2903
      %3048 = vst [vmem:[#allocation8 + $0x1b0] sm:$0xf] %v2904
      %3049 = vst [vmem:[#allocation8 + $0x1b4] sm:$0xf] %v2905
      %3050 = vst [vmem:[#allocation8 + $0x1b8] sm:$0xf] %v2906
      %3051 = vst [vmem:[#allocation8 + $0x1bc] sm:$0xf] %v2907
      %3052 = vst [vmem:[#allocation8 + $0x1c0] sm:$0xf] %v2908
      %3053 = vst [vmem:[#allocation8 + $0x1c4] sm:$0xf] %v2909
      %3054 = vst [vmem:[#allocation8 + $0x1c8] sm:$0xf] %v2910
      %3055 = vst [vmem:[#allocation8 + $0x1cc] sm:$0xf] %v2911
      %3056 = vst [vmem:[#allocation8 + $0x1d0] sm:$0xf] %v2912
      %3057 = vst [vmem:[#allocation8 + $0x1d4] sm:$0xf] %v2913
      %3058 = vst [vmem:[#allocation8 + $0x1d8] sm:$0xf] %v2914
      %3059 = vst [vmem:[#allocation8 + $0x1dc] sm:$0xf] %v2915
      %3060 = vst [vmem:[#allocation8 + $0x1e0] sm:$0xf] %v2916
      %3061 = vst [vmem:[#allocation8 + $0x1e4] sm:$0xf] %v2917
      %3062 = vst [vmem:[#allocation8 + $0x1e8] sm:$0xf] %v2918
      %3063 = vst [vmem:[#allocation8 + $0x1ec] sm:$0xf] %v2919
      %3064 = vst [vmem:[#allocation8 + $0x1f0] sm:$0xf] %v2920
      %3065 = vst [vmem:[#allocation8 + $0x1f4] sm:$0xf] %v2921
      %3066 = vst [vmem:[#allocation8 + $0x1f8] sm:$0xf] %v2922
      %3067 = vst [vmem:[#allocation8 + $0x1fc] sm:$0xf] %v2923
      %3068 = vst [vmem:[#allocation8 + $0x200] sm:$0xf] %v2924
      %3069 = vst [vmem:[#allocation8 + $0x204] sm:$0xf] %v2925
      %3070 = vst [vmem:[#allocation8 + $0x208] sm:$0xf] %v2926
      %3071 = vst [vmem:[#allocation8 + $0x20c] sm:$0xf] %v2927
      %3072 = vst [vmem:[#allocation8 + $0x210] sm:$0xf] %v2928
      %3073 = vst [vmem:[#allocation8 + $0x214] sm:$0xf] %v2929
      %3074 = vst [vmem:[#allocation8 + $0x218] sm:$0xf] %v2930
      %3075 = vst [vmem:[#allocation8 + $0x21c] sm:$0xf] %v2931
      %3076 = vst [vmem:[#allocation8 + $0x220] sm:$0xf] %v2932
      %3077 = vst [vmem:[#allocation8 + $0x224] sm:$0xf] %v2933
      %3078 = vst [vmem:[#allocation8 + $0x228] sm:$0xf] %v2934
      %3079 = vst [vmem:[#allocation8 + $0x22c] sm:$0xf] %v2935
      %3080 = vst [vmem:[#allocation8 + $0x230] sm:$0xf] %v2936
      %3081 = vst [vmem:[#allocation8 + $0x234] sm:$0xf] %v2937
      %3082 = vst [vmem:[#allocation8 + $0x238] sm:$0xf] %v2938
      %3083 = vst [vmem:[#allocation8 + $0x23c] sm:$0xf] %v2939
    $region29: #{tpu_custom_call.1} parent=1 // pred_fallthru
      _
    // Predicated region
    $region30: #{tpu_custom_call.1} parent=1 // pred_check
      _
    $region31: #{tpu_custom_call.1} parent=1 // pred_check_branch
      %3085 = sbr.rel (0) target = $region33
    $region32: #{tpu_custom_call.1} parent=1 // pred_region
      %3087 = vsyncadd [#allocation5], 0
      %s3088 = sshll.u32 [#allocation8], 4
      %s3089 = int_to_ptr.vmem [resolvable:$true] %s3088
      %s3090 = sshll.u32 %s3, 4
      %s3091 = int_to_ptr.hbm [resolvable:$true] %s3090
      %3096 = dma.vmem_to_hbm [thread:$0]  %s3089, 9216, %s3091, [#allocation5], 64, 64, 4
    $region33: #{tpu_custom_call.1} parent=1 // pred_fallthru
      _
    // Predicated region
    $region34: #{tpu_custom_call.1} parent=1 // pred_check
      _
    $region35: #{tpu_custom_call.1} parent=1 // pred_check_branch
      %3098 = sbr.rel (0) target = $region37
    $region36: #{tpu_custom_call.1} parent=1 // pred_region
      %3100 = dma.done [#allocation5], 9216
    $region37: #{tpu_custom_call.1} parent=1 // pred_fallthru
      _
    %3101 = vsyncpa [#allocation4], 1
    %3102 = vsyncpa [#allocation7], 1
    %3103 = vsyncpa [#allocation5], 1

</llo_original>
